<compile_context>
chip_gen: v7x
topology: tpu7x:2x2x1
jax: 0.10.0
libtpu: 0.0.40
codegen_flags: <defaults>
</compile_context>

<pallas_src>
import math

import jax
import jax.numpy as jnp
from jax.experimental import pallas as pl
from jax.experimental.pallas import tpu as pltpu

# ---- model hyper-parameters (small, consistent with the module) ----
D_MODEL = 32
N_HEADS = 4
D_K = D_MODEL // N_HEADS
D_FF = 64
N_LAYERS = 2
N_VOCAB = 64
SEQ = 8
BATCH = 2
EPS = 1e-5  # nn.LayerNorm default

# ---- bf16 weight-slab row layout (each segment lane-padded to 128) ----
W_QKV = 0            # [32,128]  fused Q|K|V projection (cols 0:96 valid)
W_O = 32             # [32,128]  output projection       (cols 0:32 valid)
W_1 = 64             # [32,128]  FFN up                   (cols 0:64 valid)
W_2 = 96             # [128,128] FFN down, zero rows 64:128 (cols 0:32 valid)
W_LAYER_STRIDE = 224
W_G = N_LAYERS * W_LAYER_STRIDE          # 448: generator [32,128] (cols 0:64)
W_EMB = W_G + D_MODEL                    # 480: emb*sqrt(d) [64,128] (cols 0:32)
W_ROWS = W_EMB + N_VOCAB                 # 544

# ---- f32 LN/bias/pos-slab row layout ----
F_POS = 0                                # [16,128] pos tiled over batch (cols 0:32)
F_LAYER_BASE = F_POS + BATCH * SEQ       # 16
F_LAYER_STRIDE = 8                       # ln1g, ln1b, bqkv, bo, ln2g, ln2b, b1, b2
F_LNFG = F_LAYER_BASE + N_LAYERS * F_LAYER_STRIDE   # 32
F_LNFB = F_LNFG + 1
F_BG = F_LNFB + 1
F_ROWS = 40                              # padded to a multiple of 8


def _layernorm(x, g, b):
    # f32 elementwise math on all generations (v5e has no bf16 VPU/EUP).
    mu = jnp.mean(x, axis=-1, keepdims=True)
    var = jnp.mean((x - mu) ** 2, axis=-1, keepdims=True)
    return (x - mu) * jax.lax.rsqrt(var + EPS) * g + b


# --------------------------------------------------------------------------
# Fused forward kernel: embedding -> 2 encoder layers -> final LN -> generator
# --------------------------------------------------------------------------
def fused_forward_kernel(tok_ref, w_ref, f_ref, o_ref):
    B, S, D, H, DK, V = BATCH, SEQ, D_MODEL, N_HEADS, D_K, N_VOCAB
    scale = 1.0 / math.sqrt(DK)

    def frow(r, cols):
        return f_ref[r:r + 1, 0:cols]                       # [1, cols] f32

    # ---- embedding: one-hot matmul (gather-free) + learned positional enc ----
    tok = tok_ref[...]                                       # [B*S, 1] int32
    iota = jax.lax.broadcasted_iota(jnp.int32, (B * S, V), 1)
    onehot = jnp.where(iota == tok, 1.0, 0.0).astype(jnp.bfloat16)
    emb = w_ref[W_EMB:W_EMB + V, 0:D]                        # [64, 32] bf16 (pre-scaled by sqrt(d))
    x = jnp.dot(onehot, emb, preferred_element_type=jnp.float32)
    x = x + f_ref[F_POS:F_POS + B * S, 0:D]                  # [B*S, D] f32

    for l in range(N_LAYERS):                                # static unroll (2)
        wl = l * W_LAYER_STRIDE
        fl = F_LAYER_BASE + l * F_LAYER_STRIDE

        # ---------------- self-attention block (pre-norm) ----------------
        z = _layernorm(x, frow(fl + 0, D), frow(fl + 1, D))  # [B*S, D] f32
        qkv = jnp.dot(z.astype(jnp.bfloat16),
                      w_ref[wl + W_QKV:wl + W_QKV + D, :],   # [32, 128] bf16
                      preferred_element_type=jnp.float32)
        # bias (zero in pad lanes 96:128); single bf16 cast for all heads
        qkv = (qkv + f_ref[fl + 2:fl + 3, :]).astype(jnp.bfloat16)   # [B*S, 128]
        qkv3 = qkv.reshape(B, S, -1)                          # [B, S, 128]

        # Head-batched operands [H*B, S, DK] built with one leading-axis concat
        # per tensor (no 4-D transpose; only major-dim data movement).
        def heads(t):
            parts = [qkv3[:, :, t * D + h * DK: t * D + (h + 1) * DK]
                     for h in range(H)]
            return jnp.concatenate(parts, axis=0)             # [H*B, S, DK] bf16

        q_g, k_g, v_g = heads(0), heads(1), heads(2)

        s_g = jnp.einsum('gsd,gtd->gst', q_g, k_g,
                         preferred_element_type=jnp.float32) * scale   # [H*B,S,S]
        m = jnp.max(s_g, axis=-1, keepdims=True)               # f32 softmax math
        p = jnp.exp(s_g - m)
        p = p * pl.reciprocal(jnp.sum(p, axis=-1, keepdims=True), approx=True)
        ctx_g = jnp.einsum('gst,gtd->gsd', p.astype(jnp.bfloat16), v_g,
                           preferred_element_type=jnp.float32)  # [H*B, S, DK]

        # lane-concat the per-head contexts -> one [16,32]x[32,32] Wo matmul
        ctx = jnp.concatenate(
            [ctx_g[h * B:(h + 1) * B].reshape(B * S, DK) for h in range(H)],
            axis=-1)                                            # [B*S, D] f32
        attn = jnp.dot(ctx.astype(jnp.bfloat16),
                       w_ref[wl + W_O:wl + W_O + D, 0:D],
                       preferred_element_type=jnp.float32) + frow(fl + 3, D)
        x = x + attn                                            # residual

        # ---------------- feed-forward block (pre-norm) -------------------
        z2 = _layernorm(x, frow(fl + 4, D), frow(fl + 5, D))
        h1 = jnp.dot(z2.astype(jnp.bfloat16),
                     w_ref[wl + W_1:wl + W_1 + D, :],           # [32, 128]
                     preferred_element_type=jnp.float32) + f_ref[fl + 6:fl + 7, :]
        h1 = jnp.maximum(h1, 0.0)                               # ReLU; pad lanes stay 0
        ff = jnp.dot(h1.astype(jnp.bfloat16),
                     w_ref[wl + W_2:wl + W_2 + 2 * D_FF, 0:D],  # [128, 32], zero pad rows
                     preferred_element_type=jnp.float32) + frow(fl + 7, D)
        x = x + ff                                              # residual

    # ---------------- final encoder LayerNorm + generator ----------------
    zf = _layernorm(x, frow(F_LNFG, D), frow(F_LNFB, D))
    logits = jnp.dot(zf.astype(jnp.bfloat16),
                     w_ref[W_G:W_G + D, 0:V],
                     preferred_element_type=jnp.float32) + frow(F_BG, V)   # [B*S, V]

    # Lane-dense [S, B*V] = [8, 128] emission (single unmasked full-lane vst);
    # the wrapper reshape to [S, B, V] is a free row-major view split.
    o_ref[...] = jnp.concatenate(
        [logits[b * S:(b + 1) * S, :] for b in range(B)], axis=-1)


# --------------------------------------------------------------------------
# pallas_call wrapper: grid-less, everything whole-array resident in VMEM
# --------------------------------------------------------------------------
def fused_forward(tok_ids, wslab, fslab):
    vmem = lambda: pl.BlockSpec(memory_space=pltpu.MemorySpace.VMEM)
    return pl.pallas_call(
        fused_forward_kernel,
        in_specs=[vmem(), vmem(), vmem()],
        out_specs=vmem(),
        out_shape=jax.ShapeDtypeStruct((SEQ, BATCH * N_VOCAB), jnp.float32),
    )(tok_ids, wslab, fslab)


# --------------------------------------------------------------------------
# Parameter init (deterministic, synthetic), packed into the two slabs.
# --------------------------------------------------------------------------
def init_params(key):
    std = 0.02
    ks = jax.random.split(key, 7)

    emb = jax.random.normal(ks[0], (N_VOCAB, D_MODEL), jnp.float32) * std
    pos = jax.random.normal(ks[1], (SEQ, D_MODEL), jnp.float32) * std
    wqkv = jax.random.normal(ks[2], (N_LAYERS, D_MODEL, 3 * D_MODEL), jnp.float32) * std
    wo = jax.random.normal(ks[3], (N_LAYERS, D_MODEL, D_MODEL), jnp.float32) * std
    w1 = jax.random.normal(ks[4], (N_LAYERS, D_MODEL, D_FF), jnp.float32) * std
    w2 = jax.random.normal(ks[5], (N_LAYERS, D_FF, D_MODEL), jnp.float32) * std
    wg = jax.random.normal(ks[6], (D_MODEL, N_VOCAB), jnp.float32) * std

    def padw(m):  # lane-pad [r, c] -> [r, 128] with zeros
        return jnp.pad(m, ((0, 0), (0, 128 - m.shape[1])))

    # --- bf16 weight slab ---
    wsegs = []
    for l in range(N_LAYERS):
        wsegs.append(padw(wqkv[l]))                                   # 32 rows
        wsegs.append(padw(wo[l]))                                     # 32 rows
        wsegs.append(padw(w1[l]))                                     # 32 rows
        wsegs.append(padw(jnp.pad(w2[l], ((0, 128 - D_FF), (0, 0))))) # 128 rows
    wsegs.append(padw(wg))                                            # 32 rows
    wsegs.append(padw(emb * math.sqrt(D_MODEL)))                      # 64 rows
    wslab = jnp.concatenate(wsegs, axis=0).astype(jnp.bfloat16)
    assert wslab.shape == (W_ROWS, 128), wslab.shape

    # --- f32 LN / bias / positional slab ---
    def row(v):
        v = jnp.asarray(v, jnp.float32).reshape(1, -1)
        return jnp.pad(v, ((0, 0), (0, 128 - v.shape[-1])))

    fsegs = [padw(jnp.tile(pos, (BATCH, 1)))]                         # 16 rows (POS)
    for _ in range(N_LAYERS):
        fsegs.append(row(jnp.ones(D_MODEL)))       # ln1 gamma
        fsegs.append(row(jnp.zeros(D_MODEL)))      # ln1 beta
        fsegs.append(row(jnp.zeros(3 * D_MODEL)))  # qkv bias
        fsegs.append(row(jnp.zeros(D_MODEL)))      # out-proj bias
        fsegs.append(row(jnp.ones(D_MODEL)))       # ln2 gamma
        fsegs.append(row(jnp.zeros(D_MODEL)))      # ln2 beta
        fsegs.append(row(jnp.zeros(D_FF)))         # ffn b1
        fsegs.append(row(jnp.zeros(D_MODEL)))      # ffn b2
    fsegs.append(row(jnp.ones(D_MODEL)))           # final ln gamma
    fsegs.append(row(jnp.zeros(D_MODEL)))          # final ln beta
    fsegs.append(row(jnp.zeros(N_VOCAB)))          # generator bias
    fslab = jnp.concatenate(fsegs, axis=0)
    fslab = jnp.pad(fslab, ((0, F_ROWS - fslab.shape[0]), (0, 0))).astype(jnp.float32)
    assert fslab.shape == (F_ROWS, 128), fslab.shape

    return dict(wslab=wslab, fslab=fslab)


# --------------------------------------------------------------------------
# Full forward: src_embed -> encoder -> generator, returns (logits, None)
# --------------------------------------------------------------------------
def transformer_mlm(tokens_sb, params):
    # tokens_sb: [seq, batch] int token ids (labml convention)
    seq, batch = tokens_sb.shape
    # (b, s) row order to match the kernel's activation layout
    tok_ids = tokens_sb.T.reshape(batch * seq, 1).astype(jnp.int32)
    out = fused_forward(tok_ids, params['wslab'], params['fslab'])    # [S, B*V]
    logits = out.reshape(seq, batch, N_VOCAB)                         # free view split
    return logits, None


if __name__ == "__main__":
    key = jax.random.PRNGKey(0)
    k_params, k_tok = jax.random.split(key)
    params = init_params(k_params)
    tokens = jax.random.randint(k_tok, (SEQ, BATCH), 0, N_VOCAB, dtype=jnp.int32)

    mlm = jax.jit(transformer_mlm)
    logits, _ = mlm(tokens, params)
    logits = jax.block_until_ready(logits)

    assert logits.shape == (SEQ, BATCH, N_VOCAB), logits.shape
    assert logits.dtype == jnp.float32
    assert bool(jnp.all(jnp.isfinite(logits)))
    print("KERNEL_OK")
</pallas_src>

<mosaic_0001>
module attributes {stable_mosaic.version = 11 : i64} {
  func.func @fused_forward_kernel(%arg0: memref<16x1xi32, #tpu.memory_space<vmem>>, %arg1: memref<544x128xbf16, #tpu.memory_space<vmem>>, %arg2: memref<40x128xf32, #tpu.memory_space<vmem>>, %arg3: memref<8x128xf32, #tpu.memory_space<vmem>>) attributes {dimension_semantics = [], scalar_prefetch = 0 : i64, scratch_operands = 0 : i64, tpu.core_type = #tpu.core_type<tc>} {
    %c0 = arith.constant 0 : index
    %c0_0 = arith.constant 0 : index
    %0 = vector.load %arg0[%c0, %c0_0] : memref<16x1xi32, #tpu.memory_space<vmem>>, vector<16x1xi32>
    %1 = tpu.iota {dimensions = array<i32: 1>} : vector<16x64xi32>
    %2 = vector.broadcast %0 : vector<16x1xi32> to vector<16x64xi32>
    %3 = arith.cmpi eq, %1, %2 : vector<16x64xi32>
    %cst = arith.constant 1.000000e+00 : f32
    %cst_1 = arith.constant 0.000000e+00 : f32
    %4 = vector.broadcast %cst : f32 to vector<16x64xf32>
    %5 = vector.broadcast %cst_1 : f32 to vector<16x64xf32>
    %6 = arith.select %3, %4, %5 : vector<16x64xi1>, vector<16x64xf32>
    %7 = arith.truncf %6 : vector<16x64xf32> to vector<16x64xbf16>
    %c480 = arith.constant 480 : index
    %c0_2 = arith.constant 0 : index
    %8 = vector.load %arg1[%c480, %c0_2] : memref<544x128xbf16, #tpu.memory_space<vmem>>, vector<64x32xbf16>
    %cst_3 = arith.constant dense<0.000000e+00> : vector<16x32xf32>
    %9 = tpu.matmul %7, %8, %cst_3 {dimension_numbers = #tpu.dot_dimension_numbers<[1], [0], [0], [1], [0, 0, 1, 1], [], []>} : vector<16x64xbf16>, vector<64x32xbf16>, vector<16x32xf32> -> vector<16x32xf32>
    %c0_4 = arith.constant 0 : index
    %c0_5 = arith.constant 0 : index
    %10 = vector.load %arg2[%c0_4, %c0_5] : memref<40x128xf32, #tpu.memory_space<vmem>>, vector<16x32xf32>
    %11 = arith.addf %9, %10 : vector<16x32xf32>
    %c16 = arith.constant 16 : index
    %c0_6 = arith.constant 0 : index
    %12 = vector.load %arg2[%c16, %c0_6] : memref<40x128xf32, #tpu.memory_space<vmem>>, vector<1x32xf32>
    %c17 = arith.constant 17 : index
    %c0_7 = arith.constant 0 : index
    %13 = vector.load %arg2[%c17, %c0_7] : memref<40x128xf32, #tpu.memory_space<vmem>>, vector<1x32xf32>
    %cst_8 = arith.constant dense<0.000000e+00> : vector<16xf32>
    %14 = vector.multi_reduction <add>, %11, %cst_8 [1] : vector<16x32xf32> to vector<16xf32>
    %15 = vector.shape_cast %14 : vector<16xf32> to vector<16x1xf32>
    %cst_9 = arith.constant 3.200000e+01 : f32
    %16 = vector.broadcast %cst_9 : f32 to vector<16x1xf32>
    %17 = arith.divf %15, %16 : vector<16x1xf32>
    %18 = vector.broadcast %17 : vector<16x1xf32> to vector<16x32xf32>
    %19 = arith.subf %11, %18 : vector<16x32xf32>
    %20 = arith.mulf %19, %19 : vector<16x32xf32>
    %cst_10 = arith.constant dense<0.000000e+00> : vector<16xf32>
    %21 = vector.multi_reduction <add>, %20, %cst_10 [1] : vector<16x32xf32> to vector<16xf32>
    %22 = vector.shape_cast %21 : vector<16xf32> to vector<16x1xf32>
    %cst_11 = arith.constant 3.200000e+01 : f32
    %23 = vector.broadcast %cst_11 : f32 to vector<16x1xf32>
    %24 = arith.divf %22, %23 : vector<16x1xf32>
    %25 = vector.broadcast %17 : vector<16x1xf32> to vector<16x32xf32>
    %26 = arith.subf %11, %25 : vector<16x32xf32>
    %cst_12 = arith.constant 9.99999974E-6 : f32
    %27 = vector.broadcast %cst_12 : f32 to vector<16x1xf32>
    %28 = arith.addf %24, %27 : vector<16x1xf32>
    %29 = math.rsqrt %28 : vector<16x1xf32>
    %30 = vector.broadcast %29 : vector<16x1xf32> to vector<16x32xf32>
    %31 = arith.mulf %26, %30 : vector<16x32xf32>
    %32 = vector.broadcast %12 : vector<1x32xf32> to vector<16x32xf32>
    %33 = arith.mulf %31, %32 : vector<16x32xf32>
    %34 = vector.broadcast %13 : vector<1x32xf32> to vector<16x32xf32>
    %35 = arith.addf %33, %34 : vector<16x32xf32>
    %36 = arith.truncf %35 : vector<16x32xf32> to vector<16x32xbf16>
    %c0_13 = arith.constant 0 : index
    %c0_14 = arith.constant 0 : index
    %37 = vector.load %arg1[%c0_13, %c0_14] : memref<544x128xbf16, #tpu.memory_space<vmem>>, vector<32x128xbf16>
    %cst_15 = arith.constant dense<0.000000e+00> : vector<16x128xf32>
    %38 = tpu.matmul %36, %37, %cst_15 {dimension_numbers = #tpu.dot_dimension_numbers<[1], [0], [0], [1], [0, 0, 1, 1], [], []>} : vector<16x32xbf16>, vector<32x128xbf16>, vector<16x128xf32> -> vector<16x128xf32>
    %c18 = arith.constant 18 : index
    %c0_16 = arith.constant 0 : index
    %39 = vector.load %arg2[%c18, %c0_16] : memref<40x128xf32, #tpu.memory_space<vmem>>, vector<1x128xf32>
    %40 = vector.broadcast %39 : vector<1x128xf32> to vector<16x128xf32>
    %41 = arith.addf %38, %40 : vector<16x128xf32>
    %42 = arith.truncf %41 : vector<16x128xf32> to vector<16x128xbf16>
    %43 = vector.shape_cast %42 : vector<16x128xbf16> to vector<2x8x128xbf16>
    %44 = vector.extract_strided_slice %43 {offsets = [0, 0, 0], sizes = [2, 8, 8], strides = [1, 1, 1]} : vector<2x8x128xbf16> to vector<2x8x8xbf16>
    %45 = vector.extract_strided_slice %43 {offsets = [0, 0, 8], sizes = [2, 8, 8], strides = [1, 1, 1]} : vector<2x8x128xbf16> to vector<2x8x8xbf16>
    %46 = vector.extract_strided_slice %43 {offsets = [0, 0, 16], sizes = [2, 8, 8], strides = [1, 1, 1]} : vector<2x8x128xbf16> to vector<2x8x8xbf16>
    %47 = vector.extract_strided_slice %43 {offsets = [0, 0, 24], sizes = [2, 8, 8], strides = [1, 1, 1]} : vector<2x8x128xbf16> to vector<2x8x8xbf16>
    %48 = tpu.concatenate %44, %45, %46, %47 in 0 : vector<2x8x8xbf16>, vector<2x8x8xbf16>, vector<2x8x8xbf16>, vector<2x8x8xbf16> -> vector<8x8x8xbf16>
    %49 = vector.extract_strided_slice %43 {offsets = [0, 0, 32], sizes = [2, 8, 8], strides = [1, 1, 1]} : vector<2x8x128xbf16> to vector<2x8x8xbf16>
    %50 = vector.extract_strided_slice %43 {offsets = [0, 0, 40], sizes = [2, 8, 8], strides = [1, 1, 1]} : vector<2x8x128xbf16> to vector<2x8x8xbf16>
    %51 = vector.extract_strided_slice %43 {offsets = [0, 0, 48], sizes = [2, 8, 8], strides = [1, 1, 1]} : vector<2x8x128xbf16> to vector<2x8x8xbf16>
    %52 = vector.extract_strided_slice %43 {offsets = [0, 0, 56], sizes = [2, 8, 8], strides = [1, 1, 1]} : vector<2x8x128xbf16> to vector<2x8x8xbf16>
    %53 = tpu.concatenate %49, %50, %51, %52 in 0 : vector<2x8x8xbf16>, vector<2x8x8xbf16>, vector<2x8x8xbf16>, vector<2x8x8xbf16> -> vector<8x8x8xbf16>
    %54 = vector.extract_strided_slice %43 {offsets = [0, 0, 64], sizes = [2, 8, 8], strides = [1, 1, 1]} : vector<2x8x128xbf16> to vector<2x8x8xbf16>
    %55 = vector.extract_strided_slice %43 {offsets = [0, 0, 72], sizes = [2, 8, 8], strides = [1, 1, 1]} : vector<2x8x128xbf16> to vector<2x8x8xbf16>
    %56 = vector.extract_strided_slice %43 {offsets = [0, 0, 80], sizes = [2, 8, 8], strides = [1, 1, 1]} : vector<2x8x128xbf16> to vector<2x8x8xbf16>
    %57 = vector.extract_strided_slice %43 {offsets = [0, 0, 88], sizes = [2, 8, 8], strides = [1, 1, 1]} : vector<2x8x128xbf16> to vector<2x8x8xbf16>
    %58 = tpu.concatenate %54, %55, %56, %57 in 0 : vector<2x8x8xbf16>, vector<2x8x8xbf16>, vector<2x8x8xbf16>, vector<2x8x8xbf16> -> vector<8x8x8xbf16>
    "tpu.trace_start"() <{level = 10 : i32, message = "gsd,gtd->gst"}> : () -> ()
    %cst_17 = arith.constant dense<0.000000e+00> : vector<8x8x8xf32>
    %59 = tpu.matmul %48, %53, %cst_17 {dimension_numbers = #tpu.dot_dimension_numbers<[2], [2], [1], [1], [0, 0, 0, 1, 1, 1], [0], [0]>} : vector<8x8x8xbf16>, vector<8x8x8xbf16>, vector<8x8x8xf32> -> vector<8x8x8xf32>
    "tpu.trace_stop"() : () -> ()
    %cst_18 = arith.constant 0.353553385 : f32
    %60 = vector.broadcast %cst_18 : f32 to vector<8x8x8xf32>
    %61 = arith.mulf %59, %60 : vector<8x8x8xf32>
    %cst_19 = arith.constant dense<0xFF800000> : vector<8x8xf32>
    %62 = vector.multi_reduction <maximumf>, %61, %cst_19 [2] : vector<8x8x8xf32> to vector<8x8xf32>
    %63 = vector.shape_cast %62 : vector<8x8xf32> to vector<8x8x1xf32>
    %64 = vector.broadcast %63 : vector<8x8x1xf32> to vector<8x8x8xf32>
    %65 = arith.subf %61, %64 : vector<8x8x8xf32>
    %66 = math.exp %65 : vector<8x8x8xf32>
    %cst_20 = arith.constant dense<0.000000e+00> : vector<8x8xf32>
    %67 = vector.multi_reduction <add>, %66, %cst_20 [2] : vector<8x8x8xf32> to vector<8x8xf32>
    %68 = vector.shape_cast %67 : vector<8x8xf32> to vector<8x8x1xf32>
    %69 = tpu.reciprocal %68 {approx = true} : vector<8x8x1xf32> -> vector<8x8x1xf32>
    %70 = vector.broadcast %69 : vector<8x8x1xf32> to vector<8x8x8xf32>
    %71 = arith.mulf %66, %70 : vector<8x8x8xf32>
    %72 = arith.truncf %71 : vector<8x8x8xf32> to vector<8x8x8xbf16>
    "tpu.trace_start"() <{level = 10 : i32, message = "gst,gtd->gsd"}> : () -> ()
    %cst_21 = arith.constant dense<0.000000e+00> : vector<8x8x8xf32>
    %73 = tpu.matmul %72, %58, %cst_21 {dimension_numbers = #tpu.dot_dimension_numbers<[2], [1], [1], [2], [0, 0, 0, 1, 1, 2], [0], [0]>} : vector<8x8x8xbf16>, vector<8x8x8xbf16>, vector<8x8x8xf32> -> vector<8x8x8xf32>
    "tpu.trace_stop"() : () -> ()
    %74 = vector.extract_strided_slice %73 {offsets = [0, 0, 0], sizes = [2, 8, 8], strides = [1, 1, 1]} : vector<8x8x8xf32> to vector<2x8x8xf32>
    %75 = vector.shape_cast %74 : vector<2x8x8xf32> to vector<16x8xf32>
    %76 = vector.extract_strided_slice %73 {offsets = [2, 0, 0], sizes = [2, 8, 8], strides = [1, 1, 1]} : vector<8x8x8xf32> to vector<2x8x8xf32>
    %77 = vector.shape_cast %76 : vector<2x8x8xf32> to vector<16x8xf32>
    %78 = vector.extract_strided_slice %73 {offsets = [4, 0, 0], sizes = [2, 8, 8], strides = [1, 1, 1]} : vector<8x8x8xf32> to vector<2x8x8xf32>
    %79 = vector.shape_cast %78 : vector<2x8x8xf32> to vector<16x8xf32>
    %80 = vector.extract_strided_slice %73 {offsets = [6, 0, 0], sizes = [2, 8, 8], strides = [1, 1, 1]} : vector<8x8x8xf32> to vector<2x8x8xf32>
    %81 = vector.shape_cast %80 : vector<2x8x8xf32> to vector<16x8xf32>
    %82 = tpu.concatenate %75, %77, %79, %81 in 1 : vector<16x8xf32>, vector<16x8xf32>, vector<16x8xf32>, vector<16x8xf32> -> vector<16x32xf32>
    %83 = arith.truncf %82 : vector<16x32xf32> to vector<16x32xbf16>
    %c32 = arith.constant 32 : index
    %c0_22 = arith.constant 0 : index
    %84 = vector.load %arg1[%c32, %c0_22] : memref<544x128xbf16, #tpu.memory_space<vmem>>, vector<32x32xbf16>
    %cst_23 = arith.constant dense<0.000000e+00> : vector<16x32xf32>
    %85 = tpu.matmul %83, %84, %cst_23 {dimension_numbers = #tpu.dot_dimension_numbers<[1], [0], [0], [1], [0, 0, 1, 1], [], []>} : vector<16x32xbf16>, vector<32x32xbf16>, vector<16x32xf32> -> vector<16x32xf32>
    %c19 = arith.constant 19 : index
    %c0_24 = arith.constant 0 : index
    %86 = vector.load %arg2[%c19, %c0_24] : memref<40x128xf32, #tpu.memory_space<vmem>>, vector<1x32xf32>
    %87 = vector.broadcast %86 : vector<1x32xf32> to vector<16x32xf32>
    %88 = arith.addf %85, %87 : vector<16x32xf32>
    %89 = arith.addf %11, %88 : vector<16x32xf32>
    %c20 = arith.constant 20 : index
    %c0_25 = arith.constant 0 : index
    %90 = vector.load %arg2[%c20, %c0_25] : memref<40x128xf32, #tpu.memory_space<vmem>>, vector<1x32xf32>
    %c21 = arith.constant 21 : index
    %c0_26 = arith.constant 0 : index
    %91 = vector.load %arg2[%c21, %c0_26] : memref<40x128xf32, #tpu.memory_space<vmem>>, vector<1x32xf32>
    %cst_27 = arith.constant dense<0.000000e+00> : vector<16xf32>
    %92 = vector.multi_reduction <add>, %89, %cst_27 [1] : vector<16x32xf32> to vector<16xf32>
    %93 = vector.shape_cast %92 : vector<16xf32> to vector<16x1xf32>
    %cst_28 = arith.constant 3.200000e+01 : f32
    %94 = vector.broadcast %cst_28 : f32 to vector<16x1xf32>
    %95 = arith.divf %93, %94 : vector<16x1xf32>
    %96 = vector.broadcast %95 : vector<16x1xf32> to vector<16x32xf32>
    %97 = arith.subf %89, %96 : vector<16x32xf32>
    %98 = arith.mulf %97, %97 : vector<16x32xf32>
    %cst_29 = arith.constant dense<0.000000e+00> : vector<16xf32>
    %99 = vector.multi_reduction <add>, %98, %cst_29 [1] : vector<16x32xf32> to vector<16xf32>
    %100 = vector.shape_cast %99 : vector<16xf32> to vector<16x1xf32>
    %cst_30 = arith.constant 3.200000e+01 : f32
    %101 = vector.broadcast %cst_30 : f32 to vector<16x1xf32>
    %102 = arith.divf %100, %101 : vector<16x1xf32>
    %103 = vector.broadcast %95 : vector<16x1xf32> to vector<16x32xf32>
    %104 = arith.subf %89, %103 : vector<16x32xf32>
    %cst_31 = arith.constant 9.99999974E-6 : f32
    %105 = vector.broadcast %cst_31 : f32 to vector<16x1xf32>
    %106 = arith.addf %102, %105 : vector<16x1xf32>
    %107 = math.rsqrt %106 : vector<16x1xf32>
    %108 = vector.broadcast %107 : vector<16x1xf32> to vector<16x32xf32>
    %109 = arith.mulf %104, %108 : vector<16x32xf32>
    %110 = vector.broadcast %90 : vector<1x32xf32> to vector<16x32xf32>
    %111 = arith.mulf %109, %110 : vector<16x32xf32>
    %112 = vector.broadcast %91 : vector<1x32xf32> to vector<16x32xf32>
    %113 = arith.addf %111, %112 : vector<16x32xf32>
    %114 = arith.truncf %113 : vector<16x32xf32> to vector<16x32xbf16>
    %c64 = arith.constant 64 : index
    %c0_32 = arith.constant 0 : index
    %115 = vector.load %arg1[%c64, %c0_32] : memref<544x128xbf16, #tpu.memory_space<vmem>>, vector<32x128xbf16>
    %cst_33 = arith.constant dense<0.000000e+00> : vector<16x128xf32>
    %116 = tpu.matmul %114, %115, %cst_33 {dimension_numbers = #tpu.dot_dimension_numbers<[1], [0], [0], [1], [0, 0, 1, 1], [], []>} : vector<16x32xbf16>, vector<32x128xbf16>, vector<16x128xf32> -> vector<16x128xf32>
    %c22 = arith.constant 22 : index
    %c0_34 = arith.constant 0 : index
    %117 = vector.load %arg2[%c22, %c0_34] : memref<40x128xf32, #tpu.memory_space<vmem>>, vector<1x128xf32>
    %118 = vector.broadcast %117 : vector<1x128xf32> to vector<16x128xf32>
    %119 = arith.addf %116, %118 : vector<16x128xf32>
    %cst_35 = arith.constant 0.000000e+00 : f32
    %120 = vector.broadcast %cst_35 : f32 to vector<16x128xf32>
    %121 = arith.maximumf %119, %120 : vector<16x128xf32>
    %122 = arith.truncf %121 : vector<16x128xf32> to vector<16x128xbf16>
    %c96 = arith.constant 96 : index
    %c0_36 = arith.constant 0 : index
    %123 = vector.load %arg1[%c96, %c0_36] : memref<544x128xbf16, #tpu.memory_space<vmem>>, vector<128x32xbf16>
    %cst_37 = arith.constant dense<0.000000e+00> : vector<16x32xf32>
    %124 = tpu.matmul %122, %123, %cst_37 {dimension_numbers = #tpu.dot_dimension_numbers<[1], [0], [0], [1], [0, 0, 1, 1], [], []>} : vector<16x128xbf16>, vector<128x32xbf16>, vector<16x32xf32> -> vector<16x32xf32>
    %c23 = arith.constant 23 : index
    %c0_38 = arith.constant 0 : index
    %125 = vector.load %arg2[%c23, %c0_38] : memref<40x128xf32, #tpu.memory_space<vmem>>, vector<1x32xf32>
    %126 = vector.broadcast %125 : vector<1x32xf32> to vector<16x32xf32>
    %127 = arith.addf %124, %126 : vector<16x32xf32>
    %128 = arith.addf %89, %127 : vector<16x32xf32>
    %c24 = arith.constant 24 : index
    %c0_39 = arith.constant 0 : index
    %129 = vector.load %arg2[%c24, %c0_39] : memref<40x128xf32, #tpu.memory_space<vmem>>, vector<1x32xf32>
    %c25 = arith.constant 25 : index
    %c0_40 = arith.constant 0 : index
    %130 = vector.load %arg2[%c25, %c0_40] : memref<40x128xf32, #tpu.memory_space<vmem>>, vector<1x32xf32>
    %cst_41 = arith.constant dense<0.000000e+00> : vector<16xf32>
    %131 = vector.multi_reduction <add>, %128, %cst_41 [1] : vector<16x32xf32> to vector<16xf32>
    %132 = vector.shape_cast %131 : vector<16xf32> to vector<16x1xf32>
    %cst_42 = arith.constant 3.200000e+01 : f32
    %133 = vector.broadcast %cst_42 : f32 to vector<16x1xf32>
    %134 = arith.divf %132, %133 : vector<16x1xf32>
    %135 = vector.broadcast %134 : vector<16x1xf32> to vector<16x32xf32>
    %136 = arith.subf %128, %135 : vector<16x32xf32>
    %137 = arith.mulf %136, %136 : vector<16x32xf32>
    %cst_43 = arith.constant dense<0.000000e+00> : vector<16xf32>
    %138 = vector.multi_reduction <add>, %137, %cst_43 [1] : vector<16x32xf32> to vector<16xf32>
    %139 = vector.shape_cast %138 : vector<16xf32> to vector<16x1xf32>
    %cst_44 = arith.constant 3.200000e+01 : f32
    %140 = vector.broadcast %cst_44 : f32 to vector<16x1xf32>
    %141 = arith.divf %139, %140 : vector<16x1xf32>
    %142 = vector.broadcast %134 : vector<16x1xf32> to vector<16x32xf32>
    %143 = arith.subf %128, %142 : vector<16x32xf32>
    %cst_45 = arith.constant 9.99999974E-6 : f32
    %144 = vector.broadcast %cst_45 : f32 to vector<16x1xf32>
    %145 = arith.addf %141, %144 : vector<16x1xf32>
    %146 = math.rsqrt %145 : vector<16x1xf32>
    %147 = vector.broadcast %146 : vector<16x1xf32> to vector<16x32xf32>
    %148 = arith.mulf %143, %147 : vector<16x32xf32>
    %149 = vector.broadcast %129 : vector<1x32xf32> to vector<16x32xf32>
    %150 = arith.mulf %148, %149 : vector<16x32xf32>
    %151 = vector.broadcast %130 : vector<1x32xf32> to vector<16x32xf32>
    %152 = arith.addf %150, %151 : vector<16x32xf32>
    %153 = arith.truncf %152 : vector<16x32xf32> to vector<16x32xbf16>
    %c224 = arith.constant 224 : index
    %c0_46 = arith.constant 0 : index
    %154 = vector.load %arg1[%c224, %c0_46] : memref<544x128xbf16, #tpu.memory_space<vmem>>, vector<32x128xbf16>
    %cst_47 = arith.constant dense<0.000000e+00> : vector<16x128xf32>
    %155 = tpu.matmul %153, %154, %cst_47 {dimension_numbers = #tpu.dot_dimension_numbers<[1], [0], [0], [1], [0, 0, 1, 1], [], []>} : vector<16x32xbf16>, vector<32x128xbf16>, vector<16x128xf32> -> vector<16x128xf32>
    %c26 = arith.constant 26 : index
    %c0_48 = arith.constant 0 : index
    %156 = vector.load %arg2[%c26, %c0_48] : memref<40x128xf32, #tpu.memory_space<vmem>>, vector<1x128xf32>
    %157 = vector.broadcast %156 : vector<1x128xf32> to vector<16x128xf32>
    %158 = arith.addf %155, %157 : vector<16x128xf32>
    %159 = arith.truncf %158 : vector<16x128xf32> to vector<16x128xbf16>
    %160 = vector.shape_cast %159 : vector<16x128xbf16> to vector<2x8x128xbf16>
    %161 = vector.extract_strided_slice %160 {offsets = [0, 0, 0], sizes = [2, 8, 8], strides = [1, 1, 1]} : vector<2x8x128xbf16> to vector<2x8x8xbf16>
    %162 = vector.extract_strided_slice %160 {offsets = [0, 0, 8], sizes = [2, 8, 8], strides = [1, 1, 1]} : vector<2x8x128xbf16> to vector<2x8x8xbf16>
    %163 = vector.extract_strided_slice %160 {offsets = [0, 0, 16], sizes = [2, 8, 8], strides = [1, 1, 1]} : vector<2x8x128xbf16> to vector<2x8x8xbf16>
    %164 = vector.extract_strided_slice %160 {offsets = [0, 0, 24], sizes = [2, 8, 8], strides = [1, 1, 1]} : vector<2x8x128xbf16> to vector<2x8x8xbf16>
    %165 = tpu.concatenate %161, %162, %163, %164 in 0 : vector<2x8x8xbf16>, vector<2x8x8xbf16>, vector<2x8x8xbf16>, vector<2x8x8xbf16> -> vector<8x8x8xbf16>
    %166 = vector.extract_strided_slice %160 {offsets = [0, 0, 32], sizes = [2, 8, 8], strides = [1, 1, 1]} : vector<2x8x128xbf16> to vector<2x8x8xbf16>
    %167 = vector.extract_strided_slice %160 {offsets = [0, 0, 40], sizes = [2, 8, 8], strides = [1, 1, 1]} : vector<2x8x128xbf16> to vector<2x8x8xbf16>
    %168 = vector.extract_strided_slice %160 {offsets = [0, 0, 48], sizes = [2, 8, 8], strides = [1, 1, 1]} : vector<2x8x128xbf16> to vector<2x8x8xbf16>
    %169 = vector.extract_strided_slice %160 {offsets = [0, 0, 56], sizes = [2, 8, 8], strides = [1, 1, 1]} : vector<2x8x128xbf16> to vector<2x8x8xbf16>
    %170 = tpu.concatenate %166, %167, %168, %169 in 0 : vector<2x8x8xbf16>, vector<2x8x8xbf16>, vector<2x8x8xbf16>, vector<2x8x8xbf16> -> vector<8x8x8xbf16>
    %171 = vector.extract_strided_slice %160 {offsets = [0, 0, 64], sizes = [2, 8, 8], strides = [1, 1, 1]} : vector<2x8x128xbf16> to vector<2x8x8xbf16>
    %172 = vector.extract_strided_slice %160 {offsets = [0, 0, 72], sizes = [2, 8, 8], strides = [1, 1, 1]} : vector<2x8x128xbf16> to vector<2x8x8xbf16>
    %173 = vector.extract_strided_slice %160 {offsets = [0, 0, 80], sizes = [2, 8, 8], strides = [1, 1, 1]} : vector<2x8x128xbf16> to vector<2x8x8xbf16>
    %174 = vector.extract_strided_slice %160 {offsets = [0, 0, 88], sizes = [2, 8, 8], strides = [1, 1, 1]} : vector<2x8x128xbf16> to vector<2x8x8xbf16>
    %175 = tpu.concatenate %171, %172, %173, %174 in 0 : vector<2x8x8xbf16>, vector<2x8x8xbf16>, vector<2x8x8xbf16>, vector<2x8x8xbf16> -> vector<8x8x8xbf16>
    "tpu.trace_start"() <{level = 10 : i32, message = "gsd,gtd->gst"}> : () -> ()
    %cst_49 = arith.constant dense<0.000000e+00> : vector<8x8x8xf32>
    %176 = tpu.matmul %165, %170, %cst_49 {dimension_numbers = #tpu.dot_dimension_numbers<[2], [2], [1], [1], [0, 0, 0, 1, 1, 1], [0], [0]>} : vector<8x8x8xbf16>, vector<8x8x8xbf16>, vector<8x8x8xf32> -> vector<8x8x8xf32>
    "tpu.trace_stop"() : () -> ()
    %cst_50 = arith.constant 0.353553385 : f32
    %177 = vector.broadcast %cst_50 : f32 to vector<8x8x8xf32>
    %178 = arith.mulf %176, %177 : vector<8x8x8xf32>
    %cst_51 = arith.constant dense<0xFF800000> : vector<8x8xf32>
    %179 = vector.multi_reduction <maximumf>, %178, %cst_51 [2] : vector<8x8x8xf32> to vector<8x8xf32>
    %180 = vector.shape_cast %179 : vector<8x8xf32> to vector<8x8x1xf32>
    %181 = vector.broadcast %180 : vector<8x8x1xf32> to vector<8x8x8xf32>
    %182 = arith.subf %178, %181 : vector<8x8x8xf32>
    %183 = math.exp %182 : vector<8x8x8xf32>
    %cst_52 = arith.constant dense<0.000000e+00> : vector<8x8xf32>
    %184 = vector.multi_reduction <add>, %183, %cst_52 [2] : vector<8x8x8xf32> to vector<8x8xf32>
    %185 = vector.shape_cast %184 : vector<8x8xf32> to vector<8x8x1xf32>
    %186 = tpu.reciprocal %185 {approx = true} : vector<8x8x1xf32> -> vector<8x8x1xf32>
    %187 = vector.broadcast %186 : vector<8x8x1xf32> to vector<8x8x8xf32>
    %188 = arith.mulf %183, %187 : vector<8x8x8xf32>
    %189 = arith.truncf %188 : vector<8x8x8xf32> to vector<8x8x8xbf16>
    "tpu.trace_start"() <{level = 10 : i32, message = "gst,gtd->gsd"}> : () -> ()
    %cst_53 = arith.constant dense<0.000000e+00> : vector<8x8x8xf32>
    %190 = tpu.matmul %189, %175, %cst_53 {dimension_numbers = #tpu.dot_dimension_numbers<[2], [1], [1], [2], [0, 0, 0, 1, 1, 2], [0], [0]>} : vector<8x8x8xbf16>, vector<8x8x8xbf16>, vector<8x8x8xf32> -> vector<8x8x8xf32>
    "tpu.trace_stop"() : () -> ()
    %191 = vector.extract_strided_slice %190 {offsets = [0, 0, 0], sizes = [2, 8, 8], strides = [1, 1, 1]} : vector<8x8x8xf32> to vector<2x8x8xf32>
    %192 = vector.shape_cast %191 : vector<2x8x8xf32> to vector<16x8xf32>
    %193 = vector.extract_strided_slice %190 {offsets = [2, 0, 0], sizes = [2, 8, 8], strides = [1, 1, 1]} : vector<8x8x8xf32> to vector<2x8x8xf32>
    %194 = vector.shape_cast %193 : vector<2x8x8xf32> to vector<16x8xf32>
    %195 = vector.extract_strided_slice %190 {offsets = [4, 0, 0], sizes = [2, 8, 8], strides = [1, 1, 1]} : vector<8x8x8xf32> to vector<2x8x8xf32>
    %196 = vector.shape_cast %195 : vector<2x8x8xf32> to vector<16x8xf32>
    %197 = vector.extract_strided_slice %190 {offsets = [6, 0, 0], sizes = [2, 8, 8], strides = [1, 1, 1]} : vector<8x8x8xf32> to vector<2x8x8xf32>
    %198 = vector.shape_cast %197 : vector<2x8x8xf32> to vector<16x8xf32>
    %199 = tpu.concatenate %192, %194, %196, %198 in 1 : vector<16x8xf32>, vector<16x8xf32>, vector<16x8xf32>, vector<16x8xf32> -> vector<16x32xf32>
    %200 = arith.truncf %199 : vector<16x32xf32> to vector<16x32xbf16>
    %c256 = arith.constant 256 : index
    %c0_54 = arith.constant 0 : index
    %201 = vector.load %arg1[%c256, %c0_54] : memref<544x128xbf16, #tpu.memory_space<vmem>>, vector<32x32xbf16>
    %cst_55 = arith.constant dense<0.000000e+00> : vector<16x32xf32>
    %202 = tpu.matmul %200, %201, %cst_55 {dimension_numbers = #tpu.dot_dimension_numbers<[1], [0], [0], [1], [0, 0, 1, 1], [], []>} : vector<16x32xbf16>, vector<32x32xbf16>, vector<16x32xf32> -> vector<16x32xf32>
    %c27 = arith.constant 27 : index
    %c0_56 = arith.constant 0 : index
    %203 = vector.load %arg2[%c27, %c0_56] : memref<40x128xf32, #tpu.memory_space<vmem>>, vector<1x32xf32>
    %204 = vector.broadcast %203 : vector<1x32xf32> to vector<16x32xf32>
    %205 = arith.addf %202, %204 : vector<16x32xf32>
    %206 = arith.addf %128, %205 : vector<16x32xf32>
    %c28 = arith.constant 28 : index
    %c0_57 = arith.constant 0 : index
    %207 = vector.load %arg2[%c28, %c0_57] : memref<40x128xf32, #tpu.memory_space<vmem>>, vector<1x32xf32>
    %c29 = arith.constant 29 : index
    %c0_58 = arith.constant 0 : index
    %208 = vector.load %arg2[%c29, %c0_58] : memref<40x128xf32, #tpu.memory_space<vmem>>, vector<1x32xf32>
    %cst_59 = arith.constant dense<0.000000e+00> : vector<16xf32>
    %209 = vector.multi_reduction <add>, %206, %cst_59 [1] : vector<16x32xf32> to vector<16xf32>
    %210 = vector.shape_cast %209 : vector<16xf32> to vector<16x1xf32>
    %cst_60 = arith.constant 3.200000e+01 : f32
    %211 = vector.broadcast %cst_60 : f32 to vector<16x1xf32>
    %212 = arith.divf %210, %211 : vector<16x1xf32>
    %213 = vector.broadcast %212 : vector<16x1xf32> to vector<16x32xf32>
    %214 = arith.subf %206, %213 : vector<16x32xf32>
    %215 = arith.mulf %214, %214 : vector<16x32xf32>
    %cst_61 = arith.constant dense<0.000000e+00> : vector<16xf32>
    %216 = vector.multi_reduction <add>, %215, %cst_61 [1] : vector<16x32xf32> to vector<16xf32>
    %217 = vector.shape_cast %216 : vector<16xf32> to vector<16x1xf32>
    %cst_62 = arith.constant 3.200000e+01 : f32
    %218 = vector.broadcast %cst_62 : f32 to vector<16x1xf32>
    %219 = arith.divf %217, %218 : vector<16x1xf32>
    %220 = vector.broadcast %212 : vector<16x1xf32> to vector<16x32xf32>
    %221 = arith.subf %206, %220 : vector<16x32xf32>
    %cst_63 = arith.constant 9.99999974E-6 : f32
    %222 = vector.broadcast %cst_63 : f32 to vector<16x1xf32>
    %223 = arith.addf %219, %222 : vector<16x1xf32>
    %224 = math.rsqrt %223 : vector<16x1xf32>
    %225 = vector.broadcast %224 : vector<16x1xf32> to vector<16x32xf32>
    %226 = arith.mulf %221, %225 : vector<16x32xf32>
    %227 = vector.broadcast %207 : vector<1x32xf32> to vector<16x32xf32>
    %228 = arith.mulf %226, %227 : vector<16x32xf32>
    %229 = vector.broadcast %208 : vector<1x32xf32> to vector<16x32xf32>
    %230 = arith.addf %228, %229 : vector<16x32xf32>
    %231 = arith.truncf %230 : vector<16x32xf32> to vector<16x32xbf16>
    %c288 = arith.constant 288 : index
    %c0_64 = arith.constant 0 : index
    %232 = vector.load %arg1[%c288, %c0_64] : memref<544x128xbf16, #tpu.memory_space<vmem>>, vector<32x128xbf16>
    %cst_65 = arith.constant dense<0.000000e+00> : vector<16x128xf32>
    %233 = tpu.matmul %231, %232, %cst_65 {dimension_numbers = #tpu.dot_dimension_numbers<[1], [0], [0], [1], [0, 0, 1, 1], [], []>} : vector<16x32xbf16>, vector<32x128xbf16>, vector<16x128xf32> -> vector<16x128xf32>
    %c30 = arith.constant 30 : index
    %c0_66 = arith.constant 0 : index
    %234 = vector.load %arg2[%c30, %c0_66] : memref<40x128xf32, #tpu.memory_space<vmem>>, vector<1x128xf32>
    %235 = vector.broadcast %234 : vector<1x128xf32> to vector<16x128xf32>
    %236 = arith.addf %233, %235 : vector<16x128xf32>
    %cst_67 = arith.constant 0.000000e+00 : f32
    %237 = vector.broadcast %cst_67 : f32 to vector<16x128xf32>
    %238 = arith.maximumf %236, %237 : vector<16x128xf32>
    %239 = arith.truncf %238 : vector<16x128xf32> to vector<16x128xbf16>
    %c320 = arith.constant 320 : index
    %c0_68 = arith.constant 0 : index
    %240 = vector.load %arg1[%c320, %c0_68] : memref<544x128xbf16, #tpu.memory_space<vmem>>, vector<128x32xbf16>
    %cst_69 = arith.constant dense<0.000000e+00> : vector<16x32xf32>
    %241 = tpu.matmul %239, %240, %cst_69 {dimension_numbers = #tpu.dot_dimension_numbers<[1], [0], [0], [1], [0, 0, 1, 1], [], []>} : vector<16x128xbf16>, vector<128x32xbf16>, vector<16x32xf32> -> vector<16x32xf32>
    %c31 = arith.constant 31 : index
    %c0_70 = arith.constant 0 : index
    %242 = vector.load %arg2[%c31, %c0_70] : memref<40x128xf32, #tpu.memory_space<vmem>>, vector<1x32xf32>
    %243 = vector.broadcast %242 : vector<1x32xf32> to vector<16x32xf32>
    %244 = arith.addf %241, %243 : vector<16x32xf32>
    %245 = arith.addf %206, %244 : vector<16x32xf32>
    %c32_71 = arith.constant 32 : index
    %c0_72 = arith.constant 0 : index
    %246 = vector.load %arg2[%c32_71, %c0_72] : memref<40x128xf32, #tpu.memory_space<vmem>>, vector<1x32xf32>
    %c33 = arith.constant 33 : index
    %c0_73 = arith.constant 0 : index
    %247 = vector.load %arg2[%c33, %c0_73] : memref<40x128xf32, #tpu.memory_space<vmem>>, vector<1x32xf32>
    %cst_74 = arith.constant dense<0.000000e+00> : vector<16xf32>
    %248 = vector.multi_reduction <add>, %245, %cst_74 [1] : vector<16x32xf32> to vector<16xf32>
    %249 = vector.shape_cast %248 : vector<16xf32> to vector<16x1xf32>
    %cst_75 = arith.constant 3.200000e+01 : f32
    %250 = vector.broadcast %cst_75 : f32 to vector<16x1xf32>
    %251 = arith.divf %249, %250 : vector<16x1xf32>
    %252 = vector.broadcast %251 : vector<16x1xf32> to vector<16x32xf32>
    %253 = arith.subf %245, %252 : vector<16x32xf32>
    %254 = arith.mulf %253, %253 : vector<16x32xf32>
    %cst_76 = arith.constant dense<0.000000e+00> : vector<16xf32>
    %255 = vector.multi_reduction <add>, %254, %cst_76 [1] : vector<16x32xf32> to vector<16xf32>
    %256 = vector.shape_cast %255 : vector<16xf32> to vector<16x1xf32>
    %cst_77 = arith.constant 3.200000e+01 : f32
    %257 = vector.broadcast %cst_77 : f32 to vector<16x1xf32>
    %258 = arith.divf %256, %257 : vector<16x1xf32>
    %259 = vector.broadcast %251 : vector<16x1xf32> to vector<16x32xf32>
    %260 = arith.subf %245, %259 : vector<16x32xf32>
    %cst_78 = arith.constant 9.99999974E-6 : f32
    %261 = vector.broadcast %cst_78 : f32 to vector<16x1xf32>
    %262 = arith.addf %258, %261 : vector<16x1xf32>
    %263 = math.rsqrt %262 : vector<16x1xf32>
    %264 = vector.broadcast %263 : vector<16x1xf32> to vector<16x32xf32>
    %265 = arith.mulf %260, %264 : vector<16x32xf32>
    %266 = vector.broadcast %246 : vector<1x32xf32> to vector<16x32xf32>
    %267 = arith.mulf %265, %266 : vector<16x32xf32>
    %268 = vector.broadcast %247 : vector<1x32xf32> to vector<16x32xf32>
    %269 = arith.addf %267, %268 : vector<16x32xf32>
    %270 = arith.truncf %269 : vector<16x32xf32> to vector<16x32xbf16>
    %c448 = arith.constant 448 : index
    %c0_79 = arith.constant 0 : index
    %271 = vector.load %arg1[%c448, %c0_79] : memref<544x128xbf16, #tpu.memory_space<vmem>>, vector<32x64xbf16>
    %cst_80 = arith.constant dense<0.000000e+00> : vector<16x64xf32>
    %272 = tpu.matmul %270, %271, %cst_80 {dimension_numbers = #tpu.dot_dimension_numbers<[1], [0], [0], [1], [0, 0, 1, 1], [], []>} : vector<16x32xbf16>, vector<32x64xbf16>, vector<16x64xf32> -> vector<16x64xf32>
    %c34 = arith.constant 34 : index
    %c0_81 = arith.constant 0 : index
    %273 = vector.load %arg2[%c34, %c0_81] : memref<40x128xf32, #tpu.memory_space<vmem>>, vector<1x64xf32>
    %274 = vector.broadcast %273 : vector<1x64xf32> to vector<16x64xf32>
    %275 = arith.addf %272, %274 : vector<16x64xf32>
    %276 = vector.extract_strided_slice %275 {offsets = [0, 0], sizes = [8, 64], strides = [1, 1]} : vector<16x64xf32> to vector<8x64xf32>
    %277 = vector.extract_strided_slice %275 {offsets = [8, 0], sizes = [8, 64], strides = [1, 1]} : vector<16x64xf32> to vector<8x64xf32>
    %278 = tpu.concatenate %276, %277 in 1 : vector<8x64xf32>, vector<8x64xf32> -> vector<8x128xf32>
    %c0_82 = arith.constant 0 : index
    %c0_83 = arith.constant 0 : index
    %279 = vector.load %arg3[%c0_82, %c0_83] : memref<8x128xf32, #tpu.memory_space<vmem>>, vector<8x128xf32>
    tpu.vector_store %arg3[%c0_82, %c0_83], %278 {strides = array<i32>} : memref<8x128xf32, #tpu.memory_space<vmem>>, vector<8x128xf32>,
    return
  }
}

</mosaic_0001>

<llo_original>
// kernel: transformer_mlm.1
$region0: #{transformer_mlm.1}
  #allocation0 [shape = 'u32[]', space=smem, size = 0x4, offset = 0x4, fixed_abs, tag = 'smem constant byte address 0x4 - core index']
  #allocation1 [shape = 'u32[144,128]{1,0:T(1,128)}', space=vmem, size = 0x12000, scoped, tag = 'internal scratch']
  %s0 = inlined_call_operand.vmem [shape: s32[16,1], index: 0, kind: input, shape index: {}]
  %s1 = inlined_call_operand.hbm [shape: bf16[544,128], index: 1, kind: input, shape index: {}]
  %s2 = inlined_call_operand.hbm [shape: f32[40,128], index: 2, kind: input, shape index: {}]
  %s3 = inlined_call_operand.vmem [shape: f32[8,128], index: 3, kind: output, shape index: {}]
  %s4 = sld [smem:[#allocation0]]
  $region30: #{transformer_mlm.1} parent=0
    _
  %s6 = ssub.s32 1, %s4
  %s7 = scalar_select 0, %s6, %s4
  $region1: #{transformer_mlm.1} parent=0
    #allocation2 [shape = 'u8[139264]{0}', space=vmem, size = 0x22000, scoped, tag = 'input window, operand 1, single buffered']
    #allocation3 [shape = 's32[1]{0}', space=sflag, size = 0x4, scoped, tag = 'scoped memory for transformer_mlm.1']
    #allocation4 [shape = 'u8[20480]{0}', space=vmem, size = 0x5000, scoped, tag = 'input window, operand 2, single buffered']
    #allocation5 [shape = 's32[1]{0}', space=sflag, size = 0x4, scoped, tag = 'scoped memory for transformer_mlm.1']
    %8 = vsyncpa [#allocation3], 0
    %9 = vsyncpa [#allocation5], 0
    // Predicated region
    $region2: #{transformer_mlm.1} parent=1 // pred_check
      _
    $region3: #{transformer_mlm.1} parent=1 // pred_check_branch
      %11 = sbr.rel (0) target = $region5
    $region4: #{transformer_mlm.1} parent=1 // pred_region
      _
    $region5: #{transformer_mlm.1} parent=1 // pred_fallthru
      _
    // Predicated region
    $region6: #{transformer_mlm.1} parent=1 // pred_check
      _
    $region7: #{transformer_mlm.1} parent=1 // pred_check_branch
      %13 = sbr.rel (0) target = $region9
    $region8: #{transformer_mlm.1} parent=1 // pred_region
      %s15 = ssub.s32 4352, 4352
      %16 = vsyncadd [#allocation3], %s15
      %s17 = sshll.u32 [#allocation2], 4
      %s18 = int_to_ptr.vmem [resolvable:$true] %s17
      %23 = dma.hbm_to_vmem [thread:$0]  %s1, 4352, %s18, [#allocation3], 64, 64, 4
    $region9: #{transformer_mlm.1} parent=1 // pred_fallthru
      _
    // Predicated region
    $region10: #{transformer_mlm.1} parent=1 // pred_check
      _
    $region11: #{transformer_mlm.1} parent=1 // pred_check_branch
      %25 = sbr.rel (0) target = $region13
    $region12: #{transformer_mlm.1} parent=1 // pred_region
      %s27 = ssub.s32 640, 640
      %28 = vsyncadd [#allocation5], %s27
      %s29 = sshll.u32 [#allocation4], 4
      %s30 = int_to_ptr.vmem [resolvable:$true] %s29
      %35 = dma.hbm_to_vmem [thread:$0]  %s2, 640, %s30, [#allocation5], 128, 128, 8
    $region13: #{transformer_mlm.1} parent=1 // pred_fallthru
      _
    // Predicated region
    $region14: #{transformer_mlm.1} parent=1 // pred_check
      _
    $region15: #{transformer_mlm.1} parent=1 // pred_check_branch
      %37 = sbr.rel (0) target = $region17
    $region16: #{transformer_mlm.1} parent=1 // pred_region
      %38 = dma.done [#allocation3], 4352
    $region17: #{transformer_mlm.1} parent=1 // pred_fallthru
      _
    // Predicated region
    $region18: #{transformer_mlm.1} parent=1 // pred_check
      _
    $region19: #{transformer_mlm.1} parent=1 // pred_check_branch
      %40 = sbr.rel (0) target = $region21
    $region20: #{transformer_mlm.1} parent=1 // pred_region
      %41 = dma.done [#allocation5], 640
    $region21: #{transformer_mlm.1} parent=1 // pred_fallthru
      _
    %v43 = vld [vmem:[%s0] sm:$0xff]
    %v44 = vld [vmem:[%s0 + $0x8] sm:$0xff]
    %v45 = vlaneseq
    %v46 = vand.u32 %v45, 127
    %47 = vset.pattern.permute.xlu0 0
    %48 = vperm.xlu0 %47, %v43
    %v49 = vpop.permute.xlu0 %48
    %50 = vset.pattern.permute.xlu0 0
    %51 = vperm.xlu0 %50, %v44
    %v52 = vpop.permute.xlu0 %51
    %vm53 = vcmp.eq.s32.totalorder %v46, %v49
    %vm54 = vcmp.eq.s32.totalorder %v46, %v52
    %v55 = vsel %vm53, 1.0, 0.0
    %v56 = vsel %vm54, 1.0, 0.0
    %v57 = vpack.c.bf16 %v56, %v55
    %v58 = vld [vmem:[#allocation2 + $0xf0] sm:$0xf]
    %v59 = vld [vmem:[#allocation2 + $0xf4] sm:$0xf]
    %v60 = vld [vmem:[#allocation2 + $0xf8] sm:$0xf]
    %v61 = vld [vmem:[#allocation2 + $0xfc] sm:$0xf]
    %v62 = vld [vmem:[#allocation2 + $0x100] sm:$0xf]
    %v63 = vld [vmem:[#allocation2 + $0x104] sm:$0xf]
    %v64 = vld [vmem:[#allocation2 + $0x108] sm:$0xf]
    %v65 = vld [vmem:[#allocation2 + $0x10c] sm:$0xf]
    %v66 = vld [vmem:[#allocation4] sm:$0xff]
    %v67 = vld [vmem:[#allocation4 + $0x8] sm:$0xff]
    %v76 = vunpack.c.l.b16 %v58
    %v77 = vunpack.c.l.b16 %v59
    %v78 = vunpack.c.l.b16 %v60
    %v79 = vunpack.c.l.b16 %v61
    %v80 = vunpack.c.l.b16 %v62
    %v81 = vunpack.c.l.b16 %v63
    %v82 = vunpack.c.l.b16 %v64
    %v83 = vunpack.c.l.b16 %v65
    %v84 = vpack.c.b16 %v77, %v76
    %v85 = vpack.c.b16 %v79, %v78
    %v86 = vpack.c.b16 %v81, %v80
    %v87 = vpack.c.b16 %v83, %v82
    %vm92 = vcmask 523264
    %v94 = vsel %vm92, %v57, 0
    %96 = vmatprep.subr.bf16.mxu0 0
    %97 = vmatpush1.bf16.msra.mxu0 %v84
    %98 = vmatprep.subr.bf16.mxu0 0
    %99 = vmatpush1.bf16.msra.mxu0 %v85
    %100 = vmatprep.subr.bf16.mxu0 0
    %101 = vmatpush1.bf16.msra.mxu0 %v86
    %102 = vmatprep.subr.bf16.mxu0 0
    %103 = vmatpush1.bf16.msra.mxu0 %v87
    %104 = vmatprep.subr.bf16.mxu0 0
    %105 = vmatpush1.bf16.msra.mxu0 0
    %106 = vmatprep.subr.bf16.mxu0 0
    %107 = vmatpush1.bf16.msra.mxu0 0
    %108 = vmatprep.subr.bf16.mxu0 0
    %109 = vmatpush1.bf16.msra.mxu0 0
    %110 = vmatprep.subr.bf16.mxu0 0
    %111 = vmatpush1.bf16.msra.mxu0 0
    %112 = vmatprep.subr.bf16.mxu0 0
    %113 = vmatpush1.bf16.msra.mxu0 0
    %114 = vmatprep.subr.bf16.mxu0 0
    %115 = vmatpush1.bf16.msra.mxu0 0
    %116 = vmatprep.subr.bf16.mxu0 0
    %117 = vmatpush1.bf16.msra.mxu0 0
    %118 = vmatprep.subr.bf16.mxu0 0
    %119 = vmatpush1.bf16.msra.mxu0 0
    %120 = vmatprep.subr.bf16.mxu0 0
    %121 = vmatpush1.bf16.msra.mxu0 0
    %122 = vmatprep.subr.bf16.mxu0 0
    %123 = vmatpush1.bf16.msra.mxu0 0
    %124 = vmatprep.subr.bf16.mxu0 0
    %125 = vmatpush1.bf16.msra.mxu0 0
    %126 = vmatprep.subr.bf16.mxu0 0
    %127 = vmatpush1.bf16.msra.mxu0 0
    %128 = vmatprep.mubr.bf16.mxu0 0
    %129 = vmatmul.mubr.bf16.gmra.mrb[0].mxu0 %v94
    %v130 = vpop.f32.mrb[0].mxu0
    %v131 = vadd.f32 %v66, %v130
    %v132 = vpop.f32.mrb[0].mxu0
    %v133 = vpop.f32.mrb[0].mxu0
    %v134 = vadd.f32 %v67, %v133
    %v135 = vpop.f32.mrb[0].mxu0
    %136 = vdwg.mxu0
    %v137 = vld [vmem:[#allocation4 + $0x10] sm:$0x1]
    %v138 = vld [vmem:[#allocation4 + $0x11] sm:$0x1]
    %vm139 = vcmask 261120
    %v140 = vsel %vm139, %v131, 0.0
    %141 = vadd.xlane.f32.xlu0 %v140
    %v142 = vpop.xlane.xlu0 %141
    %v143 = vsel %vm139, %v134, 0.0
    %144 = vadd.xlane.f32.xlu0 %v143
    %v145 = vpop.xlane.xlu0 %144
    %v146 = vrcp.pop 32.0
    %v147 = vmul.f32 %v142, %v146
    %v148 = vmul.f32 %v145, %v146
    %v149 = vsub.f32 %v131, %v147
    %v150 = vsub.f32 %v134, %v148
    %v151 = vmul.f32 %v149, %v149
    %v152 = vmul.f32 %v150, %v150
    %v153 = vsel %vm139, %v151, 0.0
    %154 = vadd.xlane.f32.xlu0 %v153
    %v155 = vpop.xlane.xlu0 %154
    %v156 = vsel %vm139, %v152, 0.0
    %157 = vadd.xlane.f32.xlu0 %v156
    %v158 = vpop.xlane.xlu0 %157
    %v159 = vmul.f32 %v155, %v146
    %v160 = vmul.f32 %v158, %v146
    %v161 = vadd.f32 %v159, 1e-05
    %v162 = vadd.f32 %v160, 1e-05
    %v163 = vrsqrt.pop %v161
    %v164 = vrsqrt.pop %v162
    %v165 = vmul.f32 %v149, %v163
    %v166 = vmul.f32 %v150, %v164
    %v167 = vlaneseq
    %v168 = vshrl.u32 %v167, 7
    %v169 = vsub.s32 0, %v168
    %v170 = vrot.slane %v137, %v169
    %v171 = vmul.f32 %v165, %v170
    %v172 = vmul.f32 %v166, %v170
    %v173 = vlaneseq
    %v174 = vshrl.u32 %v173, 7
    %v175 = vsub.s32 0, %v174
    %v176 = vrot.slane %v138, %v175
    %v177 = vadd.f32 %v171, %v176
    %v178 = vadd.f32 %v172, %v176
    %v179 = vpack.c.bf16 %v178, %v177
    %v180 = vld [vmem:[#allocation2] sm:$0xf]
    %v181 = vld [vmem:[#allocation2 + $0x4] sm:$0xf]
    %v182 = vld [vmem:[#allocation2 + $0x8] sm:$0xf]
    %v183 = vld [vmem:[#allocation2 + $0xc] sm:$0xf]
    %v184 = vld [vmem:[#allocation4 + $0x12] sm:$0x1]
    %v185 = vlaneseq
    %v186 = vshrl.u32 %v185, 7
    %v187 = vsub.s32 0, %v186
    %v188 = vrot.slane %v184, %v187
    %v193 = vunpack.c.l.b16 %v180
    %v194 = vunpack.c.l.b16 %v181
    %v195 = vunpack.c.l.b16 %v182
    %v196 = vunpack.c.l.b16 %v183
    %v197 = vpack.c.b16 %v194, %v193
    %v198 = vpack.c.b16 %v196, %v195
    %v202 = vsel %vm139, %v179, 0
    %204 = vmatprep.subr.bf16.mxu0 0
    %205 = vmatpush1.bf16.msra.mxu0 %v197
    %206 = vmatprep.subr.bf16.mxu0 0
    %207 = vmatpush1.bf16.msra.mxu0 %v198
    %208 = vmatprep.subr.bf16.mxu0 0
    %209 = vmatpush1.bf16.msra.mxu0 0
    %210 = vmatprep.subr.bf16.mxu0 0
    %211 = vmatpush1.bf16.msra.mxu0 0
    %212 = vmatprep.subr.bf16.mxu0 0
    %213 = vmatpush1.bf16.msra.mxu0 0
    %214 = vmatprep.subr.bf16.mxu0 0
    %215 = vmatpush1.bf16.msra.mxu0 0
    %216 = vmatprep.subr.bf16.mxu0 0
    %217 = vmatpush1.bf16.msra.mxu0 0
    %218 = vmatprep.subr.bf16.mxu0 0
    %219 = vmatpush1.bf16.msra.mxu0 0
    %220 = vmatprep.subr.bf16.mxu0 0
    %221 = vmatpush1.bf16.msra.mxu0 0
    %222 = vmatprep.subr.bf16.mxu0 0
    %223 = vmatpush1.bf16.msra.mxu0 0
    %224 = vmatprep.subr.bf16.mxu0 0
    %225 = vmatpush1.bf16.msra.mxu0 0
    %226 = vmatprep.subr.bf16.mxu0 0
    %227 = vmatpush1.bf16.msra.mxu0 0
    %228 = vmatprep.subr.bf16.mxu0 0
    %229 = vmatpush1.bf16.msra.mxu0 0
    %230 = vmatprep.subr.bf16.mxu0 0
    %231 = vmatpush1.bf16.msra.mxu0 0
    %232 = vmatprep.subr.bf16.mxu0 0
    %233 = vmatpush1.bf16.msra.mxu0 0
    %234 = vmatprep.subr.bf16.mxu0 0
    %235 = vmatpush1.bf16.msra.mxu0 0
    %236 = vmatprep.mubr.bf16.mxu0 0
    %237 = vmatmul.mubr.bf16.gmra.mrb[0].mxu0 %v202
    %v238 = vpop.f32.mrb[0].mxu0
    %v239 = vadd.f32 %v188, %v238
    %v240 = vpop.f32.mrb[0].mxu0
    %v241 = vpop.f32.mrb[0].mxu0
    %v242 = vadd.f32 %v188, %v241
    %v243 = vpop.f32.mrb[0].mxu0
    %244 = vdwg.mxu0
    %v245 = vpack.c.bf16 %v242, %v239
    %v247 = vunpack.c.l.b16 %v245
    %v248 = vunpack.c.h.b16 %v245
    %v249 = vpack.c.b16 %v247, %v247
    %v250 = vpack.c.b16 %v248, %v248
    %251 = vrot.lane.b32.xlu0 %v249, 120
    %v252 = vpop.permute.xlu0 %251
    %253 = vrot.lane.b32.xlu0 %v250, 120
    %v254 = vpop.permute.xlu0 %253
    %255 = vrot.lane.b32.xlu0 %v249, 112
    %v256 = vpop.permute.xlu0 %255
    %257 = vrot.lane.b32.xlu0 %v250, 112
    %v258 = vpop.permute.xlu0 %257
    %259 = vrot.lane.b32.xlu0 %v249, 104
    %v260 = vpop.permute.xlu0 %259
    %261 = vrot.lane.b32.xlu0 %v250, 104
    %v262 = vpop.permute.xlu0 %261
    %263 = vrot.lane.b32.xlu0 %v249, 96
    %v264 = vpop.permute.xlu0 %263
    %vm265 = vcmask 64512
    %v267 = vsel %vm265, %v249, 0
    %v270 = vsel %vm265, %v264, 0
    %272 = vmatprep.subr.bf16.mxu0 0
    %273 = vmatpush1.bf16.xpose.msra.mxu0 %v270
    %274 = vmatprep.subr.bf16.mxu0 0
    %275 = vmatpush1.bf16.xpose.msra.mxu0 0
    %276 = vmatprep.subr.bf16.mxu0 0
    %277 = vmatpush1.bf16.xpose.msra.mxu0 0
    %278 = vmatprep.subr.bf16.mxu0 0
    %279 = vmatpush1.bf16.xpose.msra.mxu0 0
    %280 = vmatprep.subr.bf16.mxu0 0
    %281 = vmatpush1.bf16.xpose.msra.mxu0 0
    %282 = vmatprep.subr.bf16.mxu0 0
    %283 = vmatpush1.bf16.xpose.msra.mxu0 0
    %284 = vmatprep.subr.bf16.mxu0 0
    %285 = vmatpush1.bf16.xpose.msra.mxu0 0
    %286 = vmatprep.subr.bf16.mxu0 0
    %287 = vmatpush1.bf16.xpose.msra.mxu0 0
    %288 = vmatprep.subr.bf16.mxu0 0
    %289 = vmatpush1.bf16.xpose.msra.mxu0 0
    %290 = vmatprep.subr.bf16.mxu0 0
    %291 = vmatpush1.bf16.xpose.msra.mxu0 0
    %292 = vmatprep.subr.bf16.mxu0 0
    %293 = vmatpush1.bf16.xpose.msra.mxu0 0
    %294 = vmatprep.subr.bf16.mxu0 0
    %295 = vmatpush1.bf16.xpose.msra.mxu0 0
    %296 = vmatprep.subr.bf16.mxu0 0
    %297 = vmatpush1.bf16.xpose.msra.mxu0 0
    %298 = vmatprep.subr.bf16.mxu0 0
    %299 = vmatpush1.bf16.xpose.msra.mxu0 0
    %300 = vmatprep.subr.bf16.mxu0 0
    %301 = vmatpush1.bf16.xpose.msra.mxu0 0
    %302 = vmatprep.subr.bf16.mxu0 0
    %303 = vmatpush1.bf16.xpose.msra.mxu0 0
    %304 = vmatprep.mubr.bf16.mxu0 0
    %305 = vmatmul.mubr.bf16.gmra.mrb[0].mxu0 %v267
    %v306 = vpop.f32.mrb[0].mxu0
    %v307 = vadd.f32 0.0, %v306
    %v308 = vpop.f32.mrb[0].mxu0
    %v309 = vpop.f32.mrb[0].mxu0
    %v310 = vpop.f32.mrb[0].mxu0
    %311 = vdwg.mxu0
    %312 = vrot.lane.b32.xlu0 %v250, 96
    %v313 = vpop.permute.xlu0 %312
    %v315 = vsel %vm265, %v250, 0
    %v318 = vsel %vm265, %v313, 0
    %320 = vmatprep.subr.bf16.mxu0 0
    %321 = vmatpush1.bf16.xpose.msra.mxu0 %v318
    %322 = vmatprep.subr.bf16.mxu0 0
    %323 = vmatpush1.bf16.xpose.msra.mxu0 0
    %324 = vmatprep.subr.bf16.mxu0 0
    %325 = vmatpush1.bf16.xpose.msra.mxu0 0
    %326 = vmatprep.subr.bf16.mxu0 0
    %327 = vmatpush1.bf16.xpose.msra.mxu0 0
    %328 = vmatprep.subr.bf16.mxu0 0
    %329 = vmatpush1.bf16.xpose.msra.mxu0 0
    %330 = vmatprep.subr.bf16.mxu0 0
    %331 = vmatpush1.bf16.xpose.msra.mxu0 0
    %332 = vmatprep.subr.bf16.mxu0 0
    %333 = vmatpush1.bf16.xpose.msra.mxu0 0
    %334 = vmatprep.subr.bf16.mxu0 0
    %335 = vmatpush1.bf16.xpose.msra.mxu0 0
    %336 = vmatprep.subr.bf16.mxu0 0
    %337 = vmatpush1.bf16.xpose.msra.mxu0 0
    %338 = vmatprep.subr.bf16.mxu0 0
    %339 = vmatpush1.bf16.xpose.msra.mxu0 0
    %340 = vmatprep.subr.bf16.mxu0 0
    %341 = vmatpush1.bf16.xpose.msra.mxu0 0
    %342 = vmatprep.subr.bf16.mxu0 0
    %343 = vmatpush1.bf16.xpose.msra.mxu0 0
    %344 = vmatprep.subr.bf16.mxu0 0
    %345 = vmatpush1.bf16.xpose.msra.mxu0 0
    %346 = vmatprep.subr.bf16.mxu0 0
    %347 = vmatpush1.bf16.xpose.msra.mxu0 0
    %348 = vmatprep.subr.bf16.mxu0 0
    %349 = vmatpush1.bf16.xpose.msra.mxu0 0
    %350 = vmatprep.subr.bf16.mxu0 0
    %351 = vmatpush1.bf16.xpose.msra.mxu0 0
    %352 = vmatprep.mubr.bf16.mxu0 0
    %353 = vmatmul.mubr.bf16.gmra.mrb[0].mxu0 %v315
    %v354 = vpop.f32.mrb[0].mxu0
    %v355 = vadd.f32 0.0, %v354
    %v356 = vpop.f32.mrb[0].mxu0
    %v357 = vpop.f32.mrb[0].mxu0
    %v358 = vpop.f32.mrb[0].mxu0
    %359 = vdwg.mxu0
    %v360 = vunpack.c.l.b16 %v252
    %v361 = vpack.c.b16 %v360, %v360
    %362 = vrot.lane.b32.xlu0 %v361, 96
    %v363 = vpop.permute.xlu0 %362
    %v365 = vsel %vm265, %v252, 0
    %v368 = vsel %vm265, %v363, 0
    %370 = vmatprep.subr.bf16.mxu0 0
    %371 = vmatpush1.bf16.xpose.msra.mxu0 %v368
    %372 = vmatprep.subr.bf16.mxu0 0
    %373 = vmatpush1.bf16.xpose.msra.mxu0 0
    %374 = vmatprep.subr.bf16.mxu0 0
    %375 = vmatpush1.bf16.xpose.msra.mxu0 0
    %376 = vmatprep.subr.bf16.mxu0 0
    %377 = vmatpush1.bf16.xpose.msra.mxu0 0
    %378 = vmatprep.subr.bf16.mxu0 0
    %379 = vmatpush1.bf16.xpose.msra.mxu0 0
    %380 = vmatprep.subr.bf16.mxu0 0
    %381 = vmatpush1.bf16.xpose.msra.mxu0 0
    %382 = vmatprep.subr.bf16.mxu0 0
    %383 = vmatpush1.bf16.xpose.msra.mxu0 0
    %384 = vmatprep.subr.bf16.mxu0 0
    %385 = vmatpush1.bf16.xpose.msra.mxu0 0
    %386 = vmatprep.subr.bf16.mxu0 0
    %387 = vmatpush1.bf16.xpose.msra.mxu0 0
    %388 = vmatprep.subr.bf16.mxu0 0
    %389 = vmatpush1.bf16.xpose.msra.mxu0 0
    %390 = vmatprep.subr.bf16.mxu0 0
    %391 = vmatpush1.bf16.xpose.msra.mxu0 0
    %392 = vmatprep.subr.bf16.mxu0 0
    %393 = vmatpush1.bf16.xpose.msra.mxu0 0
    %394 = vmatprep.subr.bf16.mxu0 0
    %395 = vmatpush1.bf16.xpose.msra.mxu0 0
    %396 = vmatprep.subr.bf16.mxu0 0
    %397 = vmatpush1.bf16.xpose.msra.mxu0 0
    %398 = vmatprep.subr.bf16.mxu0 0
    %399 = vmatpush1.bf16.xpose.msra.mxu0 0
    %400 = vmatprep.subr.bf16.mxu0 0
    %401 = vmatpush1.bf16.xpose.msra.mxu0 0
    %402 = vmatprep.mubr.bf16.mxu0 0
    %403 = vmatmul.mubr.bf16.gmra.mrb[0].mxu0 %v365
    %v404 = vpop.f32.mrb[0].mxu0
    %v405 = vadd.f32 0.0, %v404
    %v406 = vpop.f32.mrb[0].mxu0
    %v407 = vpop.f32.mrb[0].mxu0
    %v408 = vpop.f32.mrb[0].mxu0
    %409 = vdwg.mxu0
    %v410 = vunpack.c.l.b16 %v254
    %v411 = vpack.c.b16 %v410, %v410
    %412 = vrot.lane.b32.xlu0 %v411, 96
    %v413 = vpop.permute.xlu0 %412
    %v415 = vsel %vm265, %v254, 0
    %v418 = vsel %vm265, %v413, 0
    %420 = vmatprep.subr.bf16.mxu0 0
    %421 = vmatpush1.bf16.xpose.msra.mxu0 %v418
    %422 = vmatprep.subr.bf16.mxu0 0
    %423 = vmatpush1.bf16.xpose.msra.mxu0 0
    %424 = vmatprep.subr.bf16.mxu0 0
    %425 = vmatpush1.bf16.xpose.msra.mxu0 0
    %426 = vmatprep.subr.bf16.mxu0 0
    %427 = vmatpush1.bf16.xpose.msra.mxu0 0
    %428 = vmatprep.subr.bf16.mxu0 0
    %429 = vmatpush1.bf16.xpose.msra.mxu0 0
    %430 = vmatprep.subr.bf16.mxu0 0
    %431 = vmatpush1.bf16.xpose.msra.mxu0 0
    %432 = vmatprep.subr.bf16.mxu0 0
    %433 = vmatpush1.bf16.xpose.msra.mxu0 0
    %434 = vmatprep.subr.bf16.mxu0 0
    %435 = vmatpush1.bf16.xpose.msra.mxu0 0
    %436 = vmatprep.subr.bf16.mxu0 0
    %437 = vmatpush1.bf16.xpose.msra.mxu0 0
    %438 = vmatprep.subr.bf16.mxu0 0
    %439 = vmatpush1.bf16.xpose.msra.mxu0 0
    %440 = vmatprep.subr.bf16.mxu0 0
    %441 = vmatpush1.bf16.xpose.msra.mxu0 0
    %442 = vmatprep.subr.bf16.mxu0 0
    %443 = vmatpush1.bf16.xpose.msra.mxu0 0
    %444 = vmatprep.subr.bf16.mxu0 0
    %445 = vmatpush1.bf16.xpose.msra.mxu0 0
    %446 = vmatprep.subr.bf16.mxu0 0
    %447 = vmatpush1.bf16.xpose.msra.mxu0 0
    %448 = vmatprep.subr.bf16.mxu0 0
    %449 = vmatpush1.bf16.xpose.msra.mxu0 0
    %450 = vmatprep.subr.bf16.mxu0 0
    %451 = vmatpush1.bf16.xpose.msra.mxu0 0
    %452 = vmatprep.mubr.bf16.mxu0 0
    %453 = vmatmul.mubr.bf16.gmra.mrb[0].mxu0 %v415
    %v454 = vpop.f32.mrb[0].mxu0
    %v455 = vadd.f32 0.0, %v454
    %v456 = vpop.f32.mrb[0].mxu0
    %v457 = vpop.f32.mrb[0].mxu0
    %v458 = vpop.f32.mrb[0].mxu0
    %459 = vdwg.mxu0
    %v460 = vunpack.c.l.b16 %v256
    %v461 = vpack.c.b16 %v460, %v460
    %462 = vrot.lane.b32.xlu0 %v461, 96
    %v463 = vpop.permute.xlu0 %462
    %v465 = vsel %vm265, %v256, 0
    %v468 = vsel %vm265, %v463, 0
    %470 = vmatprep.subr.bf16.mxu0 0
    %471 = vmatpush1.bf16.xpose.msra.mxu0 %v468
    %472 = vmatprep.subr.bf16.mxu0 0
    %473 = vmatpush1.bf16.xpose.msra.mxu0 0
    %474 = vmatprep.subr.bf16.mxu0 0
    %475 = vmatpush1.bf16.xpose.msra.mxu0 0
    %476 = vmatprep.subr.bf16.mxu0 0
    %477 = vmatpush1.bf16.xpose.msra.mxu0 0
    %478 = vmatprep.subr.bf16.mxu0 0
    %479 = vmatpush1.bf16.xpose.msra.mxu0 0
    %480 = vmatprep.subr.bf16.mxu0 0
    %481 = vmatpush1.bf16.xpose.msra.mxu0 0
    %482 = vmatprep.subr.bf16.mxu0 0
    %483 = vmatpush1.bf16.xpose.msra.mxu0 0
    %484 = vmatprep.subr.bf16.mxu0 0
    %485 = vmatpush1.bf16.xpose.msra.mxu0 0
    %486 = vmatprep.subr.bf16.mxu0 0
    %487 = vmatpush1.bf16.xpose.msra.mxu0 0
    %488 = vmatprep.subr.bf16.mxu0 0
    %489 = vmatpush1.bf16.xpose.msra.mxu0 0
    %490 = vmatprep.subr.bf16.mxu0 0
    %491 = vmatpush1.bf16.xpose.msra.mxu0 0
    %492 = vmatprep.subr.bf16.mxu0 0
    %493 = vmatpush1.bf16.xpose.msra.mxu0 0
    %494 = vmatprep.subr.bf16.mxu0 0
    %495 = vmatpush1.bf16.xpose.msra.mxu0 0
    %496 = vmatprep.subr.bf16.mxu0 0
    %497 = vmatpush1.bf16.xpose.msra.mxu0 0
    %498 = vmatprep.subr.bf16.mxu0 0
    %499 = vmatpush1.bf16.xpose.msra.mxu0 0
    %500 = vmatprep.subr.bf16.mxu0 0
    %501 = vmatpush1.bf16.xpose.msra.mxu0 0
    %502 = vmatprep.mubr.bf16.mxu0 0
    %503 = vmatmul.mubr.bf16.gmra.mrb[0].mxu0 %v465
    %v504 = vpop.f32.mrb[0].mxu0
    %v505 = vadd.f32 0.0, %v504
    %v506 = vpop.f32.mrb[0].mxu0
    %v507 = vpop.f32.mrb[0].mxu0
    %v508 = vpop.f32.mrb[0].mxu0
    %509 = vdwg.mxu0
    %v510 = vunpack.c.l.b16 %v258
    %v511 = vpack.c.b16 %v510, %v510
    %512 = vrot.lane.b32.xlu0 %v511, 96
    %v513 = vpop.permute.xlu0 %512
    %v515 = vsel %vm265, %v258, 0
    %v518 = vsel %vm265, %v513, 0
    %520 = vmatprep.subr.bf16.mxu0 0
    %521 = vmatpush1.bf16.xpose.msra.mxu0 %v518
    %522 = vmatprep.subr.bf16.mxu0 0
    %523 = vmatpush1.bf16.xpose.msra.mxu0 0
    %524 = vmatprep.subr.bf16.mxu0 0
    %525 = vmatpush1.bf16.xpose.msra.mxu0 0
    %526 = vmatprep.subr.bf16.mxu0 0
    %527 = vmatpush1.bf16.xpose.msra.mxu0 0
    %528 = vmatprep.subr.bf16.mxu0 0
    %529 = vmatpush1.bf16.xpose.msra.mxu0 0
    %530 = vmatprep.subr.bf16.mxu0 0
    %531 = vmatpush1.bf16.xpose.msra.mxu0 0
    %532 = vmatprep.subr.bf16.mxu0 0
    %533 = vmatpush1.bf16.xpose.msra.mxu0 0
    %534 = vmatprep.subr.bf16.mxu0 0
    %535 = vmatpush1.bf16.xpose.msra.mxu0 0
    %536 = vmatprep.subr.bf16.mxu0 0
    %537 = vmatpush1.bf16.xpose.msra.mxu0 0
    %538 = vmatprep.subr.bf16.mxu0 0
    %539 = vmatpush1.bf16.xpose.msra.mxu0 0
    %540 = vmatprep.subr.bf16.mxu0 0
    %541 = vmatpush1.bf16.xpose.msra.mxu0 0
    %542 = vmatprep.subr.bf16.mxu0 0
    %543 = vmatpush1.bf16.xpose.msra.mxu0 0
    %544 = vmatprep.subr.bf16.mxu0 0
    %545 = vmatpush1.bf16.xpose.msra.mxu0 0
    %546 = vmatprep.subr.bf16.mxu0 0
    %547 = vmatpush1.bf16.xpose.msra.mxu0 0
    %548 = vmatprep.subr.bf16.mxu0 0
    %549 = vmatpush1.bf16.xpose.msra.mxu0 0
    %550 = vmatprep.subr.bf16.mxu0 0
    %551 = vmatpush1.bf16.xpose.msra.mxu0 0
    %552 = vmatprep.mubr.bf16.mxu0 0
    %553 = vmatmul.mubr.bf16.gmra.mrb[0].mxu0 %v515
    %v554 = vpop.f32.mrb[0].mxu0
    %v555 = vadd.f32 0.0, %v554
    %v556 = vpop.f32.mrb[0].mxu0
    %v557 = vpop.f32.mrb[0].mxu0
    %v558 = vpop.f32.mrb[0].mxu0
    %559 = vdwg.mxu0
    %v560 = vunpack.c.l.b16 %v260
    %v561 = vpack.c.b16 %v560, %v560
    %562 = vrot.lane.b32.xlu0 %v561, 96
    %v563 = vpop.permute.xlu0 %562
    %v565 = vsel %vm265, %v260, 0
    %v568 = vsel %vm265, %v563, 0
    %570 = vmatprep.subr.bf16.mxu0 0
    %571 = vmatpush1.bf16.xpose.msra.mxu0 %v568
    %572 = vmatprep.subr.bf16.mxu0 0
    %573 = vmatpush1.bf16.xpose.msra.mxu0 0
    %574 = vmatprep.subr.bf16.mxu0 0
    %575 = vmatpush1.bf16.xpose.msra.mxu0 0
    %576 = vmatprep.subr.bf16.mxu0 0
    %577 = vmatpush1.bf16.xpose.msra.mxu0 0
    %578 = vmatprep.subr.bf16.mxu0 0
    %579 = vmatpush1.bf16.xpose.msra.mxu0 0
    %580 = vmatprep.subr.bf16.mxu0 0
    %581 = vmatpush1.bf16.xpose.msra.mxu0 0
    %582 = vmatprep.subr.bf16.mxu0 0
    %583 = vmatpush1.bf16.xpose.msra.mxu0 0
    %584 = vmatprep.subr.bf16.mxu0 0
    %585 = vmatpush1.bf16.xpose.msra.mxu0 0
    %586 = vmatprep.subr.bf16.mxu0 0
    %587 = vmatpush1.bf16.xpose.msra.mxu0 0
    %588 = vmatprep.subr.bf16.mxu0 0
    %589 = vmatpush1.bf16.xpose.msra.mxu0 0
    %590 = vmatprep.subr.bf16.mxu0 0
    %591 = vmatpush1.bf16.xpose.msra.mxu0 0
    %592 = vmatprep.subr.bf16.mxu0 0
    %593 = vmatpush1.bf16.xpose.msra.mxu0 0
    %594 = vmatprep.subr.bf16.mxu0 0
    %595 = vmatpush1.bf16.xpose.msra.mxu0 0
    %596 = vmatprep.subr.bf16.mxu0 0
    %597 = vmatpush1.bf16.xpose.msra.mxu0 0
    %598 = vmatprep.subr.bf16.mxu0 0
    %599 = vmatpush1.bf16.xpose.msra.mxu0 0
    %600 = vmatprep.subr.bf16.mxu0 0
    %601 = vmatpush1.bf16.xpose.msra.mxu0 0
    %602 = vmatprep.mubr.bf16.mxu0 0
    %603 = vmatmul.mubr.bf16.gmra.mrb[0].mxu0 %v565
    %v604 = vpop.f32.mrb[0].mxu0
    %v605 = vadd.f32 0.0, %v604
    %v606 = vpop.f32.mrb[0].mxu0
    %v607 = vpop.f32.mrb[0].mxu0
    %v608 = vpop.f32.mrb[0].mxu0
    %609 = vdwg.mxu0
    %v610 = vunpack.c.l.b16 %v262
    %v611 = vpack.c.b16 %v610, %v610
    %612 = vrot.lane.b32.xlu0 %v611, 96
    %v613 = vpop.permute.xlu0 %612
    %v615 = vsel %vm265, %v262, 0
    %v618 = vsel %vm265, %v613, 0
    %620 = vmatprep.subr.bf16.mxu0 0
    %621 = vmatpush1.bf16.xpose.msra.mxu0 %v618
    %622 = vmatprep.subr.bf16.mxu0 0
    %623 = vmatpush1.bf16.xpose.msra.mxu0 0
    %624 = vmatprep.subr.bf16.mxu0 0
    %625 = vmatpush1.bf16.xpose.msra.mxu0 0
    %626 = vmatprep.subr.bf16.mxu0 0
    %627 = vmatpush1.bf16.xpose.msra.mxu0 0
    %628 = vmatprep.subr.bf16.mxu0 0
    %629 = vmatpush1.bf16.xpose.msra.mxu0 0
    %630 = vmatprep.subr.bf16.mxu0 0
    %631 = vmatpush1.bf16.xpose.msra.mxu0 0
    %632 = vmatprep.subr.bf16.mxu0 0
    %633 = vmatpush1.bf16.xpose.msra.mxu0 0
    %634 = vmatprep.subr.bf16.mxu0 0
    %635 = vmatpush1.bf16.xpose.msra.mxu0 0
    %636 = vmatprep.subr.bf16.mxu0 0
    %637 = vmatpush1.bf16.xpose.msra.mxu0 0
    %638 = vmatprep.subr.bf16.mxu0 0
    %639 = vmatpush1.bf16.xpose.msra.mxu0 0
    %640 = vmatprep.subr.bf16.mxu0 0
    %641 = vmatpush1.bf16.xpose.msra.mxu0 0
    %642 = vmatprep.subr.bf16.mxu0 0
    %643 = vmatpush1.bf16.xpose.msra.mxu0 0
    %644 = vmatprep.subr.bf16.mxu0 0
    %645 = vmatpush1.bf16.xpose.msra.mxu0 0
    %646 = vmatprep.subr.bf16.mxu0 0
    %647 = vmatpush1.bf16.xpose.msra.mxu0 0
    %648 = vmatprep.subr.bf16.mxu0 0
    %649 = vmatpush1.bf16.xpose.msra.mxu0 0
    %650 = vmatprep.subr.bf16.mxu0 0
    %651 = vmatpush1.bf16.xpose.msra.mxu0 0
    %652 = vmatprep.mubr.bf16.mxu0 0
    %653 = vmatmul.mubr.bf16.gmra.mrb[0].mxu0 %v615
    %v654 = vpop.f32.mrb[0].mxu0
    %v655 = vadd.f32 0.0, %v654
    %v656 = vpop.f32.mrb[0].mxu0
    %v657 = vpop.f32.mrb[0].mxu0
    %v658 = vpop.f32.mrb[0].mxu0
    %659 = vdwg.mxu0
    %v660 = vmul.f32 %v307, 0.35355338
    %v661 = vmul.f32 %v355, 0.35355338
    %v662 = vmul.f32 %v405, 0.35355338
    %v663 = vmul.f32 %v455, 0.35355338
    %v664 = vmul.f32 %v505, 0.35355338
    %v665 = vmul.f32 %v555, 0.35355338
    %v666 = vmul.f32 %v605, 0.35355338
    %v667 = vmul.f32 %v655, 0.35355338
    %v668 = vsel %vm265, %v660, -inf
    %669 = vmax.xlane.f32.xlu0 %v668
    %v670 = vpop.xlane.xlu0 %669
    %v671 = vsel %vm265, %v661, -inf
    %672 = vmax.xlane.f32.xlu0 %v671
    %v673 = vpop.xlane.xlu0 %672
    %v674 = vsel %vm265, %v662, -inf
    %675 = vmax.xlane.f32.xlu0 %v674
    %v676 = vpop.xlane.xlu0 %675
    %v677 = vsel %vm265, %v663, -inf
    %678 = vmax.xlane.f32.xlu0 %v677
    %v679 = vpop.xlane.xlu0 %678
    %v680 = vsel %vm265, %v664, -inf
    %681 = vmax.xlane.f32.xlu0 %v680
    %v682 = vpop.xlane.xlu0 %681
    %v683 = vsel %vm265, %v665, -inf
    %684 = vmax.xlane.f32.xlu0 %v683
    %v685 = vpop.xlane.xlu0 %684
    %v686 = vsel %vm265, %v666, -inf
    %687 = vmax.xlane.f32.xlu0 %v686
    %v688 = vpop.xlane.xlu0 %687
    %v689 = vsel %vm265, %v667, -inf
    %690 = vmax.xlane.f32.xlu0 %v689
    %v691 = vpop.xlane.xlu0 %690
    %v692 = vsub.f32 %v660, %v670
    %v693 = vsub.f32 %v661, %v673
    %v694 = vsub.f32 %v662, %v676
    %v695 = vsub.f32 %v663, %v679
    %v696 = vsub.f32 %v664, %v682
    %v697 = vsub.f32 %v665, %v685
    %v698 = vsub.f32 %v666, %v688
    %v699 = vsub.f32 %v667, %v691
    %v700 = vmul.f32 %v692, 1.442695
    %v701 = vpow.pop %v700
    %v702 = vmul.f32 %v693, 1.442695
    %v703 = vpow.pop %v702
    %v704 = vmul.f32 %v694, 1.442695
    %v705 = vpow.pop %v704
    %v706 = vmul.f32 %v695, 1.442695
    %v707 = vpow.pop %v706
    %v708 = vmul.f32 %v696, 1.442695
    %v709 = vpow.pop %v708
    %v710 = vmul.f32 %v697, 1.442695
    %v711 = vpow.pop %v710
    %v712 = vmul.f32 %v698, 1.442695
    %v713 = vpow.pop %v712
    %v714 = vmul.f32 %v699, 1.442695
    %v715 = vpow.pop %v714
    %v716 = vsel %vm265, %v701, 0.0
    %717 = vadd.xlane.f32.xlu0 %v716
    %v718 = vpop.xlane.xlu0 %717
    %v719 = vsel %vm265, %v703, 0.0
    %720 = vadd.xlane.f32.xlu0 %v719
    %v721 = vpop.xlane.xlu0 %720
    %v722 = vsel %vm265, %v705, 0.0
    %723 = vadd.xlane.f32.xlu0 %v722
    %v724 = vpop.xlane.xlu0 %723
    %v725 = vsel %vm265, %v707, 0.0
    %726 = vadd.xlane.f32.xlu0 %v725
    %v727 = vpop.xlane.xlu0 %726
    %v728 = vsel %vm265, %v709, 0.0
    %729 = vadd.xlane.f32.xlu0 %v728
    %v730 = vpop.xlane.xlu0 %729
    %v731 = vsel %vm265, %v711, 0.0
    %732 = vadd.xlane.f32.xlu0 %v731
    %v733 = vpop.xlane.xlu0 %732
    %v734 = vsel %vm265, %v713, 0.0
    %735 = vadd.xlane.f32.xlu0 %v734
    %v736 = vpop.xlane.xlu0 %735
    %v737 = vsel %vm265, %v715, 0.0
    %738 = vadd.xlane.f32.xlu0 %v737
    %v739 = vpop.xlane.xlu0 %738
    %v740 = vrcp.pop %v718
    %v741 = vrcp.pop %v721
    %v742 = vrcp.pop %v724
    %v743 = vrcp.pop %v727
    %v744 = vrcp.pop %v730
    %v745 = vrcp.pop %v733
    %v746 = vrcp.pop %v736
    %v747 = vrcp.pop %v739
    %v748 = vmul.f32 %v701, %v740
    %v749 = vmul.f32 %v703, %v741
    %v750 = vmul.f32 %v705, %v742
    %v751 = vmul.f32 %v707, %v743
    %v752 = vmul.f32 %v709, %v744
    %v753 = vmul.f32 %v711, %v745
    %v754 = vmul.f32 %v713, %v746
    %v755 = vmul.f32 %v715, %v747
    %v756 = vpack.c.bf16 %v748, %v748
    %v757 = vpack.c.bf16 %v749, %v749
    %v758 = vpack.c.bf16 %v750, %v750
    %v759 = vpack.c.bf16 %v751, %v751
    %v760 = vpack.c.bf16 %v752, %v752
    %v761 = vpack.c.bf16 %v753, %v753
    %v762 = vpack.c.bf16 %v754, %v754
    %v763 = vpack.c.bf16 %v755, %v755
    %764 = vrot.lane.b32.xlu0 %v249, 64
    %v765 = vpop.permute.xlu0 %764
    %v767 = vsel %vm265, %v756, 0
    %vm769 = vcmask 1043456
    %v771 = vsel %vm769, %v765, 0
    %773 = vmatprep.subr.bf16.mxu0 0
    %774 = vmatpush1.bf16.msra.mxu0 %v771
    %775 = vmatprep.subr.bf16.mxu0 0
    %776 = vmatpush1.bf16.msra.mxu0 0
    %777 = vmatprep.subr.bf16.mxu0 0
    %778 = vmatpush1.bf16.msra.mxu0 0
    %779 = vmatprep.subr.bf16.mxu0 0
    %780 = vmatpush1.bf16.msra.mxu0 0
    %781 = vmatprep.subr.bf16.mxu0 0
    %782 = vmatpush1.bf16.msra.mxu0 0
    %783 = vmatprep.subr.bf16.mxu0 0
    %784 = vmatpush1.bf16.msra.mxu0 0
    %785 = vmatprep.subr.bf16.mxu0 0
    %786 = vmatpush1.bf16.msra.mxu0 0
    %787 = vmatprep.subr.bf16.mxu0 0
    %788 = vmatpush1.bf16.msra.mxu0 0
    %789 = vmatprep.subr.bf16.mxu0 0
    %790 = vmatpush1.bf16.msra.mxu0 0
    %791 = vmatprep.subr.bf16.mxu0 0
    %792 = vmatpush1.bf16.msra.mxu0 0
    %793 = vmatprep.subr.bf16.mxu0 0
    %794 = vmatpush1.bf16.msra.mxu0 0
    %795 = vmatprep.subr.bf16.mxu0 0
    %796 = vmatpush1.bf16.msra.mxu0 0
    %797 = vmatprep.subr.bf16.mxu0 0
    %798 = vmatpush1.bf16.msra.mxu0 0
    %799 = vmatprep.subr.bf16.mxu0 0
    %800 = vmatpush1.bf16.msra.mxu0 0
    %801 = vmatprep.subr.bf16.mxu0 0
    %802 = vmatpush1.bf16.msra.mxu0 0
    %803 = vmatprep.subr.bf16.mxu0 0
    %804 = vmatpush1.bf16.msra.mxu0 0
    %805 = vmatprep.mubr.bf16.mxu0 0
    %806 = vmatmul.mubr.bf16.gmra.mrb[0].mxu0 %v767
    %v807 = vpop.f32.mrb[0].mxu0
    %v808 = vadd.f32 0.0, %v807
    %v809 = vpop.f32.mrb[0].mxu0
    %v810 = vpop.f32.mrb[0].mxu0
    %v811 = vpop.f32.mrb[0].mxu0
    %812 = vdwg.mxu0
    %813 = vrot.lane.b32.xlu0 %v250, 64
    %v814 = vpop.permute.xlu0 %813
    %v816 = vsel %vm265, %v757, 0
    %v819 = vsel %vm769, %v814, 0
    %821 = vmatprep.subr.bf16.mxu0 0
    %822 = vmatpush1.bf16.msra.mxu0 %v819
    %823 = vmatprep.subr.bf16.mxu0 0
    %824 = vmatpush1.bf16.msra.mxu0 0
    %825 = vmatprep.subr.bf16.mxu0 0
    %826 = vmatpush1.bf16.msra.mxu0 0
    %827 = vmatprep.subr.bf16.mxu0 0
    %828 = vmatpush1.bf16.msra.mxu0 0
    %829 = vmatprep.subr.bf16.mxu0 0
    %830 = vmatpush1.bf16.msra.mxu0 0
    %831 = vmatprep.subr.bf16.mxu0 0
    %832 = vmatpush1.bf16.msra.mxu0 0
    %833 = vmatprep.subr.bf16.mxu0 0
    %834 = vmatpush1.bf16.msra.mxu0 0
    %835 = vmatprep.subr.bf16.mxu0 0
    %836 = vmatpush1.bf16.msra.mxu0 0
    %837 = vmatprep.subr.bf16.mxu0 0
    %838 = vmatpush1.bf16.msra.mxu0 0
    %839 = vmatprep.subr.bf16.mxu0 0
    %840 = vmatpush1.bf16.msra.mxu0 0
    %841 = vmatprep.subr.bf16.mxu0 0
    %842 = vmatpush1.bf16.msra.mxu0 0
    %843 = vmatprep.subr.bf16.mxu0 0
    %844 = vmatpush1.bf16.msra.mxu0 0
    %845 = vmatprep.subr.bf16.mxu0 0
    %846 = vmatpush1.bf16.msra.mxu0 0
    %847 = vmatprep.subr.bf16.mxu0 0
    %848 = vmatpush1.bf16.msra.mxu0 0
    %849 = vmatprep.subr.bf16.mxu0 0
    %850 = vmatpush1.bf16.msra.mxu0 0
    %851 = vmatprep.subr.bf16.mxu0 0
    %852 = vmatpush1.bf16.msra.mxu0 0
    %853 = vmatprep.mubr.bf16.mxu0 0
    %854 = vmatmul.mubr.bf16.gmra.mrb[0].mxu0 %v816
    %v855 = vpop.f32.mrb[0].mxu0
    %v856 = vadd.f32 0.0, %v855
    %v857 = vpop.f32.mrb[0].mxu0
    %v858 = vpop.f32.mrb[0].mxu0
    %v859 = vpop.f32.mrb[0].mxu0
    %860 = vdwg.mxu0
    %861 = vrot.lane.b32.xlu0 %v361, 64
    %v862 = vpop.permute.xlu0 %861
    %v864 = vsel %vm265, %v758, 0
    %v867 = vsel %vm769, %v862, 0
    %869 = vmatprep.subr.bf16.mxu0 0
    %870 = vmatpush1.bf16.msra.mxu0 %v867
    %871 = vmatprep.subr.bf16.mxu0 0
    %872 = vmatpush1.bf16.msra.mxu0 0
    %873 = vmatprep.subr.bf16.mxu0 0
    %874 = vmatpush1.bf16.msra.mxu0 0
    %875 = vmatprep.subr.bf16.mxu0 0
    %876 = vmatpush1.bf16.msra.mxu0 0
    %877 = vmatprep.subr.bf16.mxu0 0
    %878 = vmatpush1.bf16.msra.mxu0 0
    %879 = vmatprep.subr.bf16.mxu0 0
    %880 = vmatpush1.bf16.msra.mxu0 0
    %881 = vmatprep.subr.bf16.mxu0 0
    %882 = vmatpush1.bf16.msra.mxu0 0
    %883 = vmatprep.subr.bf16.mxu0 0
    %884 = vmatpush1.bf16.msra.mxu0 0
    %885 = vmatprep.subr.bf16.mxu0 0
    %886 = vmatpush1.bf16.msra.mxu0 0
    %887 = vmatprep.subr.bf16.mxu0 0
    %888 = vmatpush1.bf16.msra.mxu0 0
    %889 = vmatprep.subr.bf16.mxu0 0
    %890 = vmatpush1.bf16.msra.mxu0 0
    %891 = vmatprep.subr.bf16.mxu0 0
    %892 = vmatpush1.bf16.msra.mxu0 0
    %893 = vmatprep.subr.bf16.mxu0 0
    %894 = vmatpush1.bf16.msra.mxu0 0
    %895 = vmatprep.subr.bf16.mxu0 0
    %896 = vmatpush1.bf16.msra.mxu0 0
    %897 = vmatprep.subr.bf16.mxu0 0
    %898 = vmatpush1.bf16.msra.mxu0 0
    %899 = vmatprep.subr.bf16.mxu0 0
    %900 = vmatpush1.bf16.msra.mxu0 0
    %901 = vmatprep.mubr.bf16.mxu0 0
    %902 = vmatmul.mubr.bf16.gmra.mrb[0].mxu0 %v864
    %v903 = vpop.f32.mrb[0].mxu0
    %v904 = vadd.f32 0.0, %v903
    %v905 = vpop.f32.mrb[0].mxu0
    %v906 = vpop.f32.mrb[0].mxu0
    %v907 = vpop.f32.mrb[0].mxu0
    %908 = vdwg.mxu0
    %909 = vrot.lane.b32.xlu0 %v411, 64
    %v910 = vpop.permute.xlu0 %909
    %v912 = vsel %vm265, %v759, 0
    %v915 = vsel %vm769, %v910, 0
    %917 = vmatprep.subr.bf16.mxu0 0
    %918 = vmatpush1.bf16.msra.mxu0 %v915
    %919 = vmatprep.subr.bf16.mxu0 0
    %920 = vmatpush1.bf16.msra.mxu0 0
    %921 = vmatprep.subr.bf16.mxu0 0
    %922 = vmatpush1.bf16.msra.mxu0 0
    %923 = vmatprep.subr.bf16.mxu0 0
    %924 = vmatpush1.bf16.msra.mxu0 0
    %925 = vmatprep.subr.bf16.mxu0 0
    %926 = vmatpush1.bf16.msra.mxu0 0
    %927 = vmatprep.subr.bf16.mxu0 0
    %928 = vmatpush1.bf16.msra.mxu0 0
    %929 = vmatprep.subr.bf16.mxu0 0
    %930 = vmatpush1.bf16.msra.mxu0 0
    %931 = vmatprep.subr.bf16.mxu0 0
    %932 = vmatpush1.bf16.msra.mxu0 0
    %933 = vmatprep.subr.bf16.mxu0 0
    %934 = vmatpush1.bf16.msra.mxu0 0
    %935 = vmatprep.subr.bf16.mxu0 0
    %936 = vmatpush1.bf16.msra.mxu0 0
    %937 = vmatprep.subr.bf16.mxu0 0
    %938 = vmatpush1.bf16.msra.mxu0 0
    %939 = vmatprep.subr.bf16.mxu0 0
    %940 = vmatpush1.bf16.msra.mxu0 0
    %941 = vmatprep.subr.bf16.mxu0 0
    %942 = vmatpush1.bf16.msra.mxu0 0
    %943 = vmatprep.subr.bf16.mxu0 0
    %944 = vmatpush1.bf16.msra.mxu0 0
    %945 = vmatprep.subr.bf16.mxu0 0
    %946 = vmatpush1.bf16.msra.mxu0 0
    %947 = vmatprep.subr.bf16.mxu0 0
    %948 = vmatpush1.bf16.msra.mxu0 0
    %949 = vmatprep.mubr.bf16.mxu0 0
    %950 = vmatmul.mubr.bf16.gmra.mrb[0].mxu0 %v912
    %v951 = vpop.f32.mrb[0].mxu0
    %v952 = vadd.f32 0.0, %v951
    %v953 = vpop.f32.mrb[0].mxu0
    %v954 = vpop.f32.mrb[0].mxu0
    %v955 = vpop.f32.mrb[0].mxu0
    %956 = vdwg.mxu0
    %957 = vrot.lane.b32.xlu0 %v461, 64
    %v958 = vpop.permute.xlu0 %957
    %v960 = vsel %vm265, %v760, 0
    %v963 = vsel %vm769, %v958, 0
    %965 = vmatprep.subr.bf16.mxu0 0
    %966 = vmatpush1.bf16.msra.mxu0 %v963
    %967 = vmatprep.subr.bf16.mxu0 0
    %968 = vmatpush1.bf16.msra.mxu0 0
    %969 = vmatprep.subr.bf16.mxu0 0
    %970 = vmatpush1.bf16.msra.mxu0 0
    %971 = vmatprep.subr.bf16.mxu0 0
    %972 = vmatpush1.bf16.msra.mxu0 0
    %973 = vmatprep.subr.bf16.mxu0 0
    %974 = vmatpush1.bf16.msra.mxu0 0
    %975 = vmatprep.subr.bf16.mxu0 0
    %976 = vmatpush1.bf16.msra.mxu0 0
    %977 = vmatprep.subr.bf16.mxu0 0
    %978 = vmatpush1.bf16.msra.mxu0 0
    %979 = vmatprep.subr.bf16.mxu0 0
    %980 = vmatpush1.bf16.msra.mxu0 0
    %981 = vmatprep.subr.bf16.mxu0 0
    %982 = vmatpush1.bf16.msra.mxu0 0
    %983 = vmatprep.subr.bf16.mxu0 0
    %984 = vmatpush1.bf16.msra.mxu0 0
    %985 = vmatprep.subr.bf16.mxu0 0
    %986 = vmatpush1.bf16.msra.mxu0 0
    %987 = vmatprep.subr.bf16.mxu0 0
    %988 = vmatpush1.bf16.msra.mxu0 0
    %989 = vmatprep.subr.bf16.mxu0 0
    %990 = vmatpush1.bf16.msra.mxu0 0
    %991 = vmatprep.subr.bf16.mxu0 0
    %992 = vmatpush1.bf16.msra.mxu0 0
    %993 = vmatprep.subr.bf16.mxu0 0
    %994 = vmatpush1.bf16.msra.mxu0 0
    %995 = vmatprep.subr.bf16.mxu0 0
    %996 = vmatpush1.bf16.msra.mxu0 0
    %997 = vmatprep.mubr.bf16.mxu0 0
    %998 = vmatmul.mubr.bf16.gmra.mrb[0].mxu0 %v960
    %v999 = vpop.f32.mrb[0].mxu0
    %v1000 = vadd.f32 0.0, %v999
    %v1001 = vpop.f32.mrb[0].mxu0
    %v1002 = vpop.f32.mrb[0].mxu0
    %v1003 = vpop.f32.mrb[0].mxu0
    %1004 = vdwg.mxu0
    %1005 = vrot.lane.b32.xlu0 %v511, 64
    %v1006 = vpop.permute.xlu0 %1005
    %v1008 = vsel %vm265, %v761, 0
    %v1011 = vsel %vm769, %v1006, 0
    %1013 = vmatprep.subr.bf16.mxu0 0
    %1014 = vmatpush1.bf16.msra.mxu0 %v1011
    %1015 = vmatprep.subr.bf16.mxu0 0
    %1016 = vmatpush1.bf16.msra.mxu0 0
    %1017 = vmatprep.subr.bf16.mxu0 0
    %1018 = vmatpush1.bf16.msra.mxu0 0
    %1019 = vmatprep.subr.bf16.mxu0 0
    %1020 = vmatpush1.bf16.msra.mxu0 0
    %1021 = vmatprep.subr.bf16.mxu0 0
    %1022 = vmatpush1.bf16.msra.mxu0 0
    %1023 = vmatprep.subr.bf16.mxu0 0
    %1024 = vmatpush1.bf16.msra.mxu0 0
    %1025 = vmatprep.subr.bf16.mxu0 0
    %1026 = vmatpush1.bf16.msra.mxu0 0
    %1027 = vmatprep.subr.bf16.mxu0 0
    %1028 = vmatpush1.bf16.msra.mxu0 0
    %1029 = vmatprep.subr.bf16.mxu0 0
    %1030 = vmatpush1.bf16.msra.mxu0 0
    %1031 = vmatprep.subr.bf16.mxu0 0
    %1032 = vmatpush1.bf16.msra.mxu0 0
    %1033 = vmatprep.subr.bf16.mxu0 0
    %1034 = vmatpush1.bf16.msra.mxu0 0
    %1035 = vmatprep.subr.bf16.mxu0 0
    %1036 = vmatpush1.bf16.msra.mxu0 0
    %1037 = vmatprep.subr.bf16.mxu0 0
    %1038 = vmatpush1.bf16.msra.mxu0 0
    %1039 = vmatprep.subr.bf16.mxu0 0
    %1040 = vmatpush1.bf16.msra.mxu0 0
    %1041 = vmatprep.subr.bf16.mxu0 0
    %1042 = vmatpush1.bf16.msra.mxu0 0
    %1043 = vmatprep.subr.bf16.mxu0 0
    %1044 = vmatpush1.bf16.msra.mxu0 0
    %1045 = vmatprep.mubr.bf16.mxu0 0
    %1046 = vmatmul.mubr.bf16.gmra.mrb[0].mxu0 %v1008
    %v1047 = vpop.f32.mrb[0].mxu0
    %v1048 = vadd.f32 0.0, %v1047
    %v1049 = vpop.f32.mrb[0].mxu0
    %v1050 = vpop.f32.mrb[0].mxu0
    %v1051 = vpop.f32.mrb[0].mxu0
    %1052 = vdwg.mxu0
    %1053 = vrot.lane.b32.xlu0 %v561, 64
    %v1054 = vpop.permute.xlu0 %1053
    %v1056 = vsel %vm265, %v762, 0
    %v1059 = vsel %vm769, %v1054, 0
    %1061 = vmatprep.subr.bf16.mxu0 0
    %1062 = vmatpush1.bf16.msra.mxu0 %v1059
    %1063 = vmatprep.subr.bf16.mxu0 0
    %1064 = vmatpush1.bf16.msra.mxu0 0
    %1065 = vmatprep.subr.bf16.mxu0 0
    %1066 = vmatpush1.bf16.msra.mxu0 0
    %1067 = vmatprep.subr.bf16.mxu0 0
    %1068 = vmatpush1.bf16.msra.mxu0 0
    %1069 = vmatprep.subr.bf16.mxu0 0
    %1070 = vmatpush1.bf16.msra.mxu0 0
    %1071 = vmatprep.subr.bf16.mxu0 0
    %1072 = vmatpush1.bf16.msra.mxu0 0
    %1073 = vmatprep.subr.bf16.mxu0 0
    %1074 = vmatpush1.bf16.msra.mxu0 0
    %1075 = vmatprep.subr.bf16.mxu0 0
    %1076 = vmatpush1.bf16.msra.mxu0 0
    %1077 = vmatprep.subr.bf16.mxu0 0
    %1078 = vmatpush1.bf16.msra.mxu0 0
    %1079 = vmatprep.subr.bf16.mxu0 0
    %1080 = vmatpush1.bf16.msra.mxu0 0
    %1081 = vmatprep.subr.bf16.mxu0 0
    %1082 = vmatpush1.bf16.msra.mxu0 0
    %1083 = vmatprep.subr.bf16.mxu0 0
    %1084 = vmatpush1.bf16.msra.mxu0 0
    %1085 = vmatprep.subr.bf16.mxu0 0
    %1086 = vmatpush1.bf16.msra.mxu0 0
    %1087 = vmatprep.subr.bf16.mxu0 0
    %1088 = vmatpush1.bf16.msra.mxu0 0
    %1089 = vmatprep.subr.bf16.mxu0 0
    %1090 = vmatpush1.bf16.msra.mxu0 0
    %1091 = vmatprep.subr.bf16.mxu0 0
    %1092 = vmatpush1.bf16.msra.mxu0 0
    %1093 = vmatprep.mubr.bf16.mxu0 0
    %1094 = vmatmul.mubr.bf16.gmra.mrb[0].mxu0 %v1056
    %v1095 = vpop.f32.mrb[0].mxu0
    %v1096 = vadd.f32 0.0, %v1095
    %v1097 = vpop.f32.mrb[0].mxu0
    %v1098 = vpop.f32.mrb[0].mxu0
    %v1099 = vpop.f32.mrb[0].mxu0
    %1100 = vdwg.mxu0
    %1101 = vrot.lane.b32.xlu0 %v611, 64
    %v1102 = vpop.permute.xlu0 %1101
    %v1104 = vsel %vm265, %v763, 0
    %v1107 = vsel %vm769, %v1102, 0
    %1109 = vmatprep.subr.bf16.mxu0 0
    %1110 = vmatpush1.bf16.msra.mxu0 %v1107
    %1111 = vmatprep.subr.bf16.mxu0 0
    %1112 = vmatpush1.bf16.msra.mxu0 0
    %1113 = vmatprep.subr.bf16.mxu0 0
    %1114 = vmatpush1.bf16.msra.mxu0 0
    %1115 = vmatprep.subr.bf16.mxu0 0
    %1116 = vmatpush1.bf16.msra.mxu0 0
    %1117 = vmatprep.subr.bf16.mxu0 0
    %1118 = vmatpush1.bf16.msra.mxu0 0
    %1119 = vmatprep.subr.bf16.mxu0 0
    %1120 = vmatpush1.bf16.msra.mxu0 0
    %1121 = vmatprep.subr.bf16.mxu0 0
    %1122 = vmatpush1.bf16.msra.mxu0 0
    %1123 = vmatprep.subr.bf16.mxu0 0
    %1124 = vmatpush1.bf16.msra.mxu0 0
    %1125 = vmatprep.subr.bf16.mxu0 0
    %1126 = vmatpush1.bf16.msra.mxu0 0
    %1127 = vmatprep.subr.bf16.mxu0 0
    %1128 = vmatpush1.bf16.msra.mxu0 0
    %1129 = vmatprep.subr.bf16.mxu0 0
    %1130 = vmatpush1.bf16.msra.mxu0 0
    %1131 = vmatprep.subr.bf16.mxu0 0
    %1132 = vmatpush1.bf16.msra.mxu0 0
    %1133 = vmatprep.subr.bf16.mxu0 0
    %1134 = vmatpush1.bf16.msra.mxu0 0
    %1135 = vmatprep.subr.bf16.mxu0 0
    %1136 = vmatpush1.bf16.msra.mxu0 0
    %1137 = vmatprep.subr.bf16.mxu0 0
    %1138 = vmatpush1.bf16.msra.mxu0 0
    %1139 = vmatprep.subr.bf16.mxu0 0
    %1140 = vmatpush1.bf16.msra.mxu0 0
    %1141 = vmatprep.mubr.bf16.mxu0 0
    %1142 = vmatmul.mubr.bf16.gmra.mrb[0].mxu0 %v1104
    %v1143 = vpop.f32.mrb[0].mxu0
    %v1144 = vadd.f32 0.0, %v1143
    %v1145 = vpop.f32.mrb[0].mxu0
    %v1146 = vpop.f32.mrb[0].mxu0
    %v1147 = vpop.f32.mrb[0].mxu0
    %1148 = vdwg.mxu0
    %1151 = vrot.lane.b32.xlu0 %v904, 8
    %v1152 = vpop.permute.xlu0 %1151
    %1153 = vrot.lane.b32.xlu0 %v952, 8
    %v1154 = vpop.permute.xlu0 %1153
    %1159 = vrot.lane.b32.xlu0 %v1000, 16
    %v1160 = vpop.permute.xlu0 %1159
    %1161 = vrot.lane.b32.xlu0 %v1048, 16
    %v1162 = vpop.permute.xlu0 %1161
    %1167 = vrot.lane.b32.xlu0 %v1096, 24
    %v1168 = vpop.permute.xlu0 %1167
    %1169 = vrot.lane.b32.xlu0 %v1144, 24
    %v1170 = vpop.permute.xlu0 %1169
    %v1173 = vsel %vm265, %v808, %v1152
    %v1174 = vsel %vm265, %v856, %v1154
    %vm1175 = vcmask 130048
    %v1176 = vsel %vm1175, %v1173, %v1160
    %v1177 = vsel %vm1175, %v1174, %v1162
    %vm1178 = vcmask 195584
    %v1179 = vsel %vm1178, %v1176, %v1168
    %v1180 = vsel %vm1178, %v1177, %v1170
    %v1181 = vpack.c.bf16 %v1180, %v1179
    %v1182 = vld [vmem:[#allocation2 + $0x10] sm:$0xf]
    %v1183 = vld [vmem:[#allocation2 + $0x14] sm:$0xf]
    %v1184 = vld [vmem:[#allocation2 + $0x18] sm:$0xf]
    %v1185 = vld [vmem:[#allocation2 + $0x1c] sm:$0xf]
    %v1186 = vld [vmem:[#allocation4 + $0x13] sm:$0x1]
    %v1187 = vlaneseq
    %v1188 = vshrl.u32 %v1187, 7
    %v1189 = vsub.s32 0, %v1188
    %v1190 = vrot.slane %v1186, %v1189
    %v1195 = vunpack.c.l.b16 %v1182
    %v1196 = vunpack.c.l.b16 %v1183
    %v1197 = vunpack.c.l.b16 %v1184
    %v1198 = vunpack.c.l.b16 %v1185
    %v1199 = vpack.c.b16 %v1196, %v1195
    %v1200 = vpack.c.b16 %v1198, %v1197
    %v1204 = vsel %vm139, %v1181, 0
    %1206 = vmatprep.subr.bf16.mxu0 0
    %1207 = vmatpush1.bf16.msra.mxu0 %v1199
    %1208 = vmatprep.subr.bf16.mxu0 0
    %1209 = vmatpush1.bf16.msra.mxu0 %v1200
    %1210 = vmatprep.subr.bf16.mxu0 0
    %1211 = vmatpush1.bf16.msra.mxu0 0
    %1212 = vmatprep.subr.bf16.mxu0 0
    %1213 = vmatpush1.bf16.msra.mxu0 0
    %1214 = vmatprep.subr.bf16.mxu0 0
    %1215 = vmatpush1.bf16.msra.mxu0 0
    %1216 = vmatprep.subr.bf16.mxu0 0
    %1217 = vmatpush1.bf16.msra.mxu0 0
    %1218 = vmatprep.subr.bf16.mxu0 0
    %1219 = vmatpush1.bf16.msra.mxu0 0
    %1220 = vmatprep.subr.bf16.mxu0 0
    %1221 = vmatpush1.bf16.msra.mxu0 0
    %1222 = vmatprep.subr.bf16.mxu0 0
    %1223 = vmatpush1.bf16.msra.mxu0 0
    %1224 = vmatprep.subr.bf16.mxu0 0
    %1225 = vmatpush1.bf16.msra.mxu0 0
    %1226 = vmatprep.subr.bf16.mxu0 0
    %1227 = vmatpush1.bf16.msra.mxu0 0
    %1228 = vmatprep.subr.bf16.mxu0 0
    %1229 = vmatpush1.bf16.msra.mxu0 0
    %1230 = vmatprep.subr.bf16.mxu0 0
    %1231 = vmatpush1.bf16.msra.mxu0 0
    %1232 = vmatprep.subr.bf16.mxu0 0
    %1233 = vmatpush1.bf16.msra.mxu0 0
    %1234 = vmatprep.subr.bf16.mxu0 0
    %1235 = vmatpush1.bf16.msra.mxu0 0
    %1236 = vmatprep.subr.bf16.mxu0 0
    %1237 = vmatpush1.bf16.msra.mxu0 0
    %1238 = vmatprep.mubr.bf16.mxu0 0
    %1239 = vmatmul.mubr.bf16.gmra.mrb[0].mxu0 %v1204
    %v1240 = vpop.f32.mrb[0].mxu0
    %v1241 = vadd.f32 %v1190, %v1240
    %v1242 = vpop.f32.mrb[0].mxu0
    %v1243 = vpop.f32.mrb[0].mxu0
    %v1244 = vadd.f32 %v1190, %v1243
    %v1245 = vpop.f32.mrb[0].mxu0
    %1246 = vdwg.mxu0
    %v1247 = vadd.f32 %v131, %v1241
    %v1248 = vadd.f32 %v134, %v1244
    %v1249 = vld [vmem:[#allocation4 + $0x14] sm:$0x1]
    %v1250 = vld [vmem:[#allocation4 + $0x15] sm:$0x1]
    %v1251 = vsel %vm139, %v1247, 0.0
    %1252 = vadd.xlane.f32.xlu0 %v1251
    %v1253 = vpop.xlane.xlu0 %1252
    %v1254 = vsel %vm139, %v1248, 0.0
    %1255 = vadd.xlane.f32.xlu0 %v1254
    %v1256 = vpop.xlane.xlu0 %1255
    %v1257 = vmul.f32 %v1253, %v146
    %v1258 = vmul.f32 %v1256, %v146
    %v1259 = vsub.f32 %v1247, %v1257
    %v1260 = vsub.f32 %v1248, %v1258
    %v1261 = vmul.f32 %v1259, %v1259
    %v1262 = vmul.f32 %v1260, %v1260
    %v1263 = vsel %vm139, %v1261, 0.0
    %1264 = vadd.xlane.f32.xlu0 %v1263
    %v1265 = vpop.xlane.xlu0 %1264
    %v1266 = vsel %vm139, %v1262, 0.0
    %1267 = vadd.xlane.f32.xlu0 %v1266
    %v1268 = vpop.xlane.xlu0 %1267
    %v1269 = vmul.f32 %v1265, %v146
    %v1270 = vmul.f32 %v1268, %v146
    %v1271 = vadd.f32 %v1269, 1e-05
    %v1272 = vadd.f32 %v1270, 1e-05
    %v1273 = vrsqrt.pop %v1271
    %v1274 = vrsqrt.pop %v1272
    %v1275 = vmul.f32 %v1259, %v1273
    %v1276 = vmul.f32 %v1260, %v1274
    %v1277 = vlaneseq
    %v1278 = vshrl.u32 %v1277, 7
    %v1279 = vsub.s32 0, %v1278
    %v1280 = vrot.slane %v1249, %v1279
    %v1281 = vmul.f32 %v1275, %v1280
    %v1282 = vmul.f32 %v1276, %v1280
    %v1283 = vlaneseq
    %v1284 = vshrl.u32 %v1283, 7
    %v1285 = vsub.s32 0, %v1284
    %v1286 = vrot.slane %v1250, %v1285
    %v1287 = vadd.f32 %v1281, %v1286
    %v1288 = vadd.f32 %v1282, %v1286
    %v1289 = vpack.c.bf16 %v1288, %v1287
    %v1290 = vld [vmem:[#allocation2 + $0x20] sm:$0xf]
    %v1291 = vld [vmem:[#allocation2 + $0x24] sm:$0xf]
    %v1292 = vld [vmem:[#allocation2 + $0x28] sm:$0xf]
    %v1293 = vld [vmem:[#allocation2 + $0x2c] sm:$0xf]
    %v1294 = vld [vmem:[#allocation4 + $0x16] sm:$0x1]
    %v1295 = vlaneseq
    %v1296 = vshrl.u32 %v1295, 7
    %v1297 = vsub.s32 0, %v1296
    %v1298 = vrot.slane %v1294, %v1297
    %v1303 = vunpack.c.l.b16 %v1290
    %v1304 = vunpack.c.l.b16 %v1291
    %v1305 = vunpack.c.l.b16 %v1292
    %v1306 = vunpack.c.l.b16 %v1293
    %v1307 = vpack.c.b16 %v1304, %v1303
    %v1308 = vpack.c.b16 %v1306, %v1305
    %v1312 = vsel %vm139, %v1289, 0
    %1314 = vmatprep.subr.bf16.mxu0 0
    %1315 = vmatpush1.bf16.msra.mxu0 %v1307
    %1316 = vmatprep.subr.bf16.mxu0 0
    %1317 = vmatpush1.bf16.msra.mxu0 %v1308
    %1318 = vmatprep.subr.bf16.mxu0 0
    %1319 = vmatpush1.bf16.msra.mxu0 0
    %1320 = vmatprep.subr.bf16.mxu0 0
    %1321 = vmatpush1.bf16.msra.mxu0 0
    %1322 = vmatprep.subr.bf16.mxu0 0
    %1323 = vmatpush1.bf16.msra.mxu0 0
    %1324 = vmatprep.subr.bf16.mxu0 0
    %1325 = vmatpush1.bf16.msra.mxu0 0
    %1326 = vmatprep.subr.bf16.mxu0 0
    %1327 = vmatpush1.bf16.msra.mxu0 0
    %1328 = vmatprep.subr.bf16.mxu0 0
    %1329 = vmatpush1.bf16.msra.mxu0 0
    %1330 = vmatprep.subr.bf16.mxu0 0
    %1331 = vmatpush1.bf16.msra.mxu0 0
    %1332 = vmatprep.subr.bf16.mxu0 0
    %1333 = vmatpush1.bf16.msra.mxu0 0
    %1334 = vmatprep.subr.bf16.mxu0 0
    %1335 = vmatpush1.bf16.msra.mxu0 0
    %1336 = vmatprep.subr.bf16.mxu0 0
    %1337 = vmatpush1.bf16.msra.mxu0 0
    %1338 = vmatprep.subr.bf16.mxu0 0
    %1339 = vmatpush1.bf16.msra.mxu0 0
    %1340 = vmatprep.subr.bf16.mxu0 0
    %1341 = vmatpush1.bf16.msra.mxu0 0
    %1342 = vmatprep.subr.bf16.mxu0 0
    %1343 = vmatpush1.bf16.msra.mxu0 0
    %1344 = vmatprep.subr.bf16.mxu0 0
    %1345 = vmatpush1.bf16.msra.mxu0 0
    %1346 = vmatprep.mubr.bf16.mxu0 0
    %1347 = vmatmul.mubr.bf16.gmra.mrb[0].mxu0 %v1312
    %v1348 = vpop.f32.mrb[0].mxu0
    %v1349 = vadd.f32 %v1298, %v1348
    %v1350 = vpop.f32.mrb[0].mxu0
    %v1351 = vpop.f32.mrb[0].mxu0
    %v1352 = vadd.f32 %v1298, %v1351
    %v1353 = vpop.f32.mrb[0].mxu0
    %1354 = vdwg.mxu0
    %v1355 = vmax.f32 %v1349, 0.0
    %v1356 = vmax.f32 %v1352, 0.0
    %v1357 = vpack.c.bf16 %v1356, %v1355
    %v1358 = vld [vmem:[#allocation2 + $0x30] sm:$0xf]
    %v1359 = vld [vmem:[#allocation2 + $0x34] sm:$0xf]
    %v1360 = vld [vmem:[#allocation2 + $0x38] sm:$0xf]
    %v1361 = vld [vmem:[#allocation2 + $0x3c] sm:$0xf]
    %v1362 = vld [vmem:[#allocation2 + $0x40] sm:$0xf]
    %v1363 = vld [vmem:[#allocation2 + $0x44] sm:$0xf]
    %v1364 = vld [vmem:[#allocation2 + $0x48] sm:$0xf]
    %v1365 = vld [vmem:[#allocation2 + $0x4c] sm:$0xf]
    %v1366 = vld [vmem:[#allocation2 + $0x50] sm:$0xf]
    %v1367 = vld [vmem:[#allocation2 + $0x54] sm:$0xf]
    %v1368 = vld [vmem:[#allocation2 + $0x58] sm:$0xf]
    %v1369 = vld [vmem:[#allocation2 + $0x5c] sm:$0xf]
    %v1370 = vld [vmem:[#allocation2 + $0x60] sm:$0xf]
    %v1371 = vld [vmem:[#allocation2 + $0x64] sm:$0xf]
    %v1372 = vld [vmem:[#allocation2 + $0x68] sm:$0xf]
    %v1373 = vld [vmem:[#allocation2 + $0x6c] sm:$0xf]
    %v1374 = vld [vmem:[#allocation4 + $0x17] sm:$0x1]
    %v1375 = vlaneseq
    %v1376 = vshrl.u32 %v1375, 7
    %v1377 = vsub.s32 0, %v1376
    %v1378 = vrot.slane %v1374, %v1377
    %v1395 = vunpack.c.l.b16 %v1358
    %v1396 = vunpack.c.l.b16 %v1359
    %v1397 = vunpack.c.l.b16 %v1360
    %v1398 = vunpack.c.l.b16 %v1361
    %v1399 = vunpack.c.l.b16 %v1362
    %v1400 = vunpack.c.l.b16 %v1363
    %v1401 = vunpack.c.l.b16 %v1364
    %v1402 = vunpack.c.l.b16 %v1365
    %v1403 = vunpack.c.l.b16 %v1366
    %v1404 = vunpack.c.l.b16 %v1367
    %v1405 = vunpack.c.l.b16 %v1368
    %v1406 = vunpack.c.l.b16 %v1369
    %v1407 = vunpack.c.l.b16 %v1370
    %v1408 = vunpack.c.l.b16 %v1371
    %v1409 = vunpack.c.l.b16 %v1372
    %v1410 = vunpack.c.l.b16 %v1373
    %v1411 = vpack.c.b16 %v1396, %v1395
    %v1412 = vpack.c.b16 %v1398, %v1397
    %v1413 = vpack.c.b16 %v1400, %v1399
    %v1414 = vpack.c.b16 %v1402, %v1401
    %v1415 = vpack.c.b16 %v1404, %v1403
    %v1416 = vpack.c.b16 %v1406, %v1405
    %v1417 = vpack.c.b16 %v1408, %v1407
    %v1418 = vpack.c.b16 %v1410, %v1409
    %1427 = vmatprep.subr.bf16.mxu0 0
    %1428 = vmatpush1.bf16.msra.mxu0 %v1411
    %1429 = vmatprep.subr.bf16.mxu0 0
    %1430 = vmatpush1.bf16.msra.mxu0 %v1412
    %1431 = vmatprep.subr.bf16.mxu0 0
    %1432 = vmatpush1.bf16.msra.mxu0 %v1413
    %1433 = vmatprep.subr.bf16.mxu0 0
    %1434 = vmatpush1.bf16.msra.mxu0 %v1414
    %1435 = vmatprep.subr.bf16.mxu0 0
    %1436 = vmatpush1.bf16.msra.mxu0 %v1415
    %1437 = vmatprep.subr.bf16.mxu0 0
    %1438 = vmatpush1.bf16.msra.mxu0 %v1416
    %1439 = vmatprep.subr.bf16.mxu0 0
    %1440 = vmatpush1.bf16.msra.mxu0 %v1417
    %1441 = vmatprep.subr.bf16.mxu0 0
    %1442 = vmatpush1.bf16.msra.mxu0 %v1418
    %1443 = vmatprep.subr.bf16.mxu0 0
    %1444 = vmatpush1.bf16.msra.mxu0 0
    %1445 = vmatprep.subr.bf16.mxu0 0
    %1446 = vmatpush1.bf16.msra.mxu0 0
    %1447 = vmatprep.subr.bf16.mxu0 0
    %1448 = vmatpush1.bf16.msra.mxu0 0
    %1449 = vmatprep.subr.bf16.mxu0 0
    %1450 = vmatpush1.bf16.msra.mxu0 0
    %1451 = vmatprep.subr.bf16.mxu0 0
    %1452 = vmatpush1.bf16.msra.mxu0 0
    %1453 = vmatprep.subr.bf16.mxu0 0
    %1454 = vmatpush1.bf16.msra.mxu0 0
    %1455 = vmatprep.subr.bf16.mxu0 0
    %1456 = vmatpush1.bf16.msra.mxu0 0
    %1457 = vmatprep.subr.bf16.mxu0 0
    %1458 = vmatpush1.bf16.msra.mxu0 0
    %1459 = vmatprep.mubr.bf16.mxu0 0
    %1460 = vmatmul.mubr.bf16.gmra.mrb[0].mxu0 %v1357
    %v1461 = vpop.f32.mrb[0].mxu0
    %v1462 = vadd.f32 %v1378, %v1461
    %v1463 = vpop.f32.mrb[0].mxu0
    %v1464 = vpop.f32.mrb[0].mxu0
    %v1465 = vadd.f32 %v1378, %v1464
    %v1466 = vpop.f32.mrb[0].mxu0
    %1467 = vdwg.mxu0
    %v1468 = vadd.f32 %v1247, %v1462
    %v1469 = vadd.f32 %v1248, %v1465
    %v1470 = vld [vmem:[#allocation4 + $0x18] sm:$0x1]
    %v1471 = vld [vmem:[#allocation4 + $0x19] sm:$0x1]
    %v1472 = vsel %vm139, %v1468, 0.0
    %1473 = vadd.xlane.f32.xlu0 %v1472
    %v1474 = vpop.xlane.xlu0 %1473
    %v1475 = vsel %vm139, %v1469, 0.0
    %1476 = vadd.xlane.f32.xlu0 %v1475
    %v1477 = vpop.xlane.xlu0 %1476
    %v1478 = vmul.f32 %v1474, %v146
    %v1479 = vmul.f32 %v1477, %v146
    %v1480 = vsub.f32 %v1468, %v1478
    %v1481 = vsub.f32 %v1469, %v1479
    %v1482 = vmul.f32 %v1480, %v1480
    %v1483 = vmul.f32 %v1481, %v1481
    %v1484 = vsel %vm139, %v1482, 0.0
    %1485 = vadd.xlane.f32.xlu0 %v1484
    %v1486 = vpop.xlane.xlu0 %1485
    %v1487 = vsel %vm139, %v1483, 0.0
    %1488 = vadd.xlane.f32.xlu0 %v1487
    %v1489 = vpop.xlane.xlu0 %1488
    %v1490 = vmul.f32 %v1486, %v146
    %v1491 = vmul.f32 %v1489, %v146
    %v1492 = vadd.f32 %v1490, 1e-05
    %v1493 = vadd.f32 %v1491, 1e-05
    %v1494 = vrsqrt.pop %v1492
    %v1495 = vrsqrt.pop %v1493
    %v1496 = vmul.f32 %v1480, %v1494
    %v1497 = vmul.f32 %v1481, %v1495
    %v1498 = vlaneseq
    %v1499 = vshrl.u32 %v1498, 7
    %v1500 = vsub.s32 0, %v1499
    %v1501 = vrot.slane %v1470, %v1500
    %v1502 = vmul.f32 %v1496, %v1501
    %v1503 = vmul.f32 %v1497, %v1501
    %v1504 = vlaneseq
    %v1505 = vshrl.u32 %v1504, 7
    %v1506 = vsub.s32 0, %v1505
    %v1507 = vrot.slane %v1471, %v1506
    %v1508 = vadd.f32 %v1502, %v1507
    %v1509 = vadd.f32 %v1503, %v1507
    %v1510 = vpack.c.bf16 %v1509, %v1508
    %v1511 = vld [vmem:[#allocation2 + $0x70] sm:$0xf]
    %v1512 = vld [vmem:[#allocation2 + $0x74] sm:$0xf]
    %v1513 = vld [vmem:[#allocation2 + $0x78] sm:$0xf]
    %v1514 = vld [vmem:[#allocation2 + $0x7c] sm:$0xf]
    %v1515 = vld [vmem:[#allocation4 + $0x1a] sm:$0x1]
    %v1516 = vlaneseq
    %v1517 = vshrl.u32 %v1516, 7
    %v1518 = vsub.s32 0, %v1517
    %v1519 = vrot.slane %v1515, %v1518
    %v1524 = vunpack.c.l.b16 %v1511
    %v1525 = vunpack.c.l.b16 %v1512
    %v1526 = vunpack.c.l.b16 %v1513
    %v1527 = vunpack.c.l.b16 %v1514
    %v1528 = vpack.c.b16 %v1525, %v1524
    %v1529 = vpack.c.b16 %v1527, %v1526
    %v1533 = vsel %vm139, %v1510, 0
    %1535 = vmatprep.subr.bf16.mxu0 0
    %1536 = vmatpush1.bf16.msra.mxu0 %v1528
    %1537 = vmatprep.subr.bf16.mxu0 0
    %1538 = vmatpush1.bf16.msra.mxu0 %v1529
    %1539 = vmatprep.subr.bf16.mxu0 0
    %1540 = vmatpush1.bf16.msra.mxu0 0
    %1541 = vmatprep.subr.bf16.mxu0 0
    %1542 = vmatpush1.bf16.msra.mxu0 0
    %1543 = vmatprep.subr.bf16.mxu0 0
    %1544 = vmatpush1.bf16.msra.mxu0 0
    %1545 = vmatprep.subr.bf16.mxu0 0
    %1546 = vmatpush1.bf16.msra.mxu0 0
    %1547 = vmatprep.subr.bf16.mxu0 0
    %1548 = vmatpush1.bf16.msra.mxu0 0
    %1549 = vmatprep.subr.bf16.mxu0 0
    %1550 = vmatpush1.bf16.msra.mxu0 0
    %1551 = vmatprep.subr.bf16.mxu0 0
    %1552 = vmatpush1.bf16.msra.mxu0 0
    %1553 = vmatprep.subr.bf16.mxu0 0
    %1554 = vmatpush1.bf16.msra.mxu0 0
    %1555 = vmatprep.subr.bf16.mxu0 0
    %1556 = vmatpush1.bf16.msra.mxu0 0
    %1557 = vmatprep.subr.bf16.mxu0 0
    %1558 = vmatpush1.bf16.msra.mxu0 0
    %1559 = vmatprep.subr.bf16.mxu0 0
    %1560 = vmatpush1.bf16.msra.mxu0 0
    %1561 = vmatprep.subr.bf16.mxu0 0
    %1562 = vmatpush1.bf16.msra.mxu0 0
    %1563 = vmatprep.subr.bf16.mxu0 0
    %1564 = vmatpush1.bf16.msra.mxu0 0
    %1565 = vmatprep.subr.bf16.mxu0 0
    %1566 = vmatpush1.bf16.msra.mxu0 0
    %1567 = vmatprep.mubr.bf16.mxu0 0
    %1568 = vmatmul.mubr.bf16.gmra.mrb[0].mxu0 %v1533
    %v1569 = vpop.f32.mrb[0].mxu0
    %v1570 = vadd.f32 %v1519, %v1569
    %v1571 = vpop.f32.mrb[0].mxu0
    %v1572 = vpop.f32.mrb[0].mxu0
    %v1573 = vadd.f32 %v1519, %v1572
    %v1574 = vpop.f32.mrb[0].mxu0
    %1575 = vdwg.mxu0
    %v1576 = vpack.c.bf16 %v1573, %v1570
    %v1578 = vunpack.c.l.b16 %v1576
    %v1579 = vunpack.c.h.b16 %v1576
    %v1580 = vpack.c.b16 %v1578, %v1578
    %v1581 = vpack.c.b16 %v1579, %v1579
    %1582 = vrot.lane.b32.xlu0 %v1580, 120
    %v1583 = vpop.permute.xlu0 %1582
    %1584 = vrot.lane.b32.xlu0 %v1581, 120
    %v1585 = vpop.permute.xlu0 %1584
    %1586 = vrot.lane.b32.xlu0 %v1580, 112
    %v1587 = vpop.permute.xlu0 %1586
    %1588 = vrot.lane.b32.xlu0 %v1581, 112
    %v1589 = vpop.permute.xlu0 %1588
    %1590 = vrot.lane.b32.xlu0 %v1580, 104
    %v1591 = vpop.permute.xlu0 %1590
    %1592 = vrot.lane.b32.xlu0 %v1581, 104
    %v1593 = vpop.permute.xlu0 %1592
    %1594 = vrot.lane.b32.xlu0 %v1580, 96
    %v1595 = vpop.permute.xlu0 %1594
    %v1597 = vsel %vm265, %v1580, 0
    %v1600 = vsel %vm265, %v1595, 0
    %1602 = vmatprep.subr.bf16.mxu0 0
    %1603 = vmatpush1.bf16.xpose.msra.mxu0 %v1600
    %1604 = vmatprep.subr.bf16.mxu0 0
    %1605 = vmatpush1.bf16.xpose.msra.mxu0 0
    %1606 = vmatprep.subr.bf16.mxu0 0
    %1607 = vmatpush1.bf16.xpose.msra.mxu0 0
    %1608 = vmatprep.subr.bf16.mxu0 0
    %1609 = vmatpush1.bf16.xpose.msra.mxu0 0
    %1610 = vmatprep.subr.bf16.mxu0 0
    %1611 = vmatpush1.bf16.xpose.msra.mxu0 0
    %1612 = vmatprep.subr.bf16.mxu0 0
    %1613 = vmatpush1.bf16.xpose.msra.mxu0 0
    %1614 = vmatprep.subr.bf16.mxu0 0
    %1615 = vmatpush1.bf16.xpose.msra.mxu0 0
    %1616 = vmatprep.subr.bf16.mxu0 0
    %1617 = vmatpush1.bf16.xpose.msra.mxu0 0
    %1618 = vmatprep.subr.bf16.mxu0 0
    %1619 = vmatpush1.bf16.xpose.msra.mxu0 0
    %1620 = vmatprep.subr.bf16.mxu0 0
    %1621 = vmatpush1.bf16.xpose.msra.mxu0 0
    %1622 = vmatprep.subr.bf16.mxu0 0
    %1623 = vmatpush1.bf16.xpose.msra.mxu0 0
    %1624 = vmatprep.subr.bf16.mxu0 0
    %1625 = vmatpush1.bf16.xpose.msra.mxu0 0
    %1626 = vmatprep.subr.bf16.mxu0 0
    %1627 = vmatpush1.bf16.xpose.msra.mxu0 0
    %1628 = vmatprep.subr.bf16.mxu0 0
    %1629 = vmatpush1.bf16.xpose.msra.mxu0 0
    %1630 = vmatprep.subr.bf16.mxu0 0
    %1631 = vmatpush1.bf16.xpose.msra.mxu0 0
    %1632 = vmatprep.subr.bf16.mxu0 0
    %1633 = vmatpush1.bf16.xpose.msra.mxu0 0
    %1634 = vmatprep.mubr.bf16.mxu0 0
    %1635 = vmatmul.mubr.bf16.gmra.mrb[0].mxu0 %v1597
    %v1636 = vpop.f32.mrb[0].mxu0
    %v1637 = vadd.f32 0.0, %v1636
    %v1638 = vpop.f32.mrb[0].mxu0
    %v1639 = vpop.f32.mrb[0].mxu0
    %v1640 = vpop.f32.mrb[0].mxu0
    %1641 = vdwg.mxu0
    %1642 = vrot.lane.b32.xlu0 %v1581, 96
    %v1643 = vpop.permute.xlu0 %1642
    %v1645 = vsel %vm265, %v1581, 0
    %v1648 = vsel %vm265, %v1643, 0
    %1650 = vmatprep.subr.bf16.mxu0 0
    %1651 = vmatpush1.bf16.xpose.msra.mxu0 %v1648
    %1652 = vmatprep.subr.bf16.mxu0 0
    %1653 = vmatpush1.bf16.xpose.msra.mxu0 0
    %1654 = vmatprep.subr.bf16.mxu0 0
    %1655 = vmatpush1.bf16.xpose.msra.mxu0 0
    %1656 = vmatprep.subr.bf16.mxu0 0
    %1657 = vmatpush1.bf16.xpose.msra.mxu0 0
    %1658 = vmatprep.subr.bf16.mxu0 0
    %1659 = vmatpush1.bf16.xpose.msra.mxu0 0
    %1660 = vmatprep.subr.bf16.mxu0 0
    %1661 = vmatpush1.bf16.xpose.msra.mxu0 0
    %1662 = vmatprep.subr.bf16.mxu0 0
    %1663 = vmatpush1.bf16.xpose.msra.mxu0 0
    %1664 = vmatprep.subr.bf16.mxu0 0
    %1665 = vmatpush1.bf16.xpose.msra.mxu0 0
    %1666 = vmatprep.subr.bf16.mxu0 0
    %1667 = vmatpush1.bf16.xpose.msra.mxu0 0
    %1668 = vmatprep.subr.bf16.mxu0 0
    %1669 = vmatpush1.bf16.xpose.msra.mxu0 0
    %1670 = vmatprep.subr.bf16.mxu0 0
    %1671 = vmatpush1.bf16.xpose.msra.mxu0 0
    %1672 = vmatprep.subr.bf16.mxu0 0
    %1673 = vmatpush1.bf16.xpose.msra.mxu0 0
    %1674 = vmatprep.subr.bf16.mxu0 0
    %1675 = vmatpush1.bf16.xpose.msra.mxu0 0
    %1676 = vmatprep.subr.bf16.mxu0 0
    %1677 = vmatpush1.bf16.xpose.msra.mxu0 0
    %1678 = vmatprep.subr.bf16.mxu0 0
    %1679 = vmatpush1.bf16.xpose.msra.mxu0 0
    %1680 = vmatprep.subr.bf16.mxu0 0
    %1681 = vmatpush1.bf16.xpose.msra.mxu0 0
    %1682 = vmatprep.mubr.bf16.mxu0 0
    %1683 = vmatmul.mubr.bf16.gmra.mrb[0].mxu0 %v1645
    %v1684 = vpop.f32.mrb[0].mxu0
    %v1685 = vadd.f32 0.0, %v1684
    %v1686 = vpop.f32.mrb[0].mxu0
    %v1687 = vpop.f32.mrb[0].mxu0
    %v1688 = vpop.f32.mrb[0].mxu0
    %1689 = vdwg.mxu0
    %v1690 = vunpack.c.l.b16 %v1583
    %v1691 = vpack.c.b16 %v1690, %v1690
    %1692 = vrot.lane.b32.xlu0 %v1691, 96
    %v1693 = vpop.permute.xlu0 %1692
    %v1695 = vsel %vm265, %v1583, 0
    %v1698 = vsel %vm265, %v1693, 0
    %1700 = vmatprep.subr.bf16.mxu0 0
    %1701 = vmatpush1.bf16.xpose.msra.mxu0 %v1698
    %1702 = vmatprep.subr.bf16.mxu0 0
    %1703 = vmatpush1.bf16.xpose.msra.mxu0 0
    %1704 = vmatprep.subr.bf16.mxu0 0
    %1705 = vmatpush1.bf16.xpose.msra.mxu0 0
    %1706 = vmatprep.subr.bf16.mxu0 0
    %1707 = vmatpush1.bf16.xpose.msra.mxu0 0
    %1708 = vmatprep.subr.bf16.mxu0 0
    %1709 = vmatpush1.bf16.xpose.msra.mxu0 0
    %1710 = vmatprep.subr.bf16.mxu0 0
    %1711 = vmatpush1.bf16.xpose.msra.mxu0 0
    %1712 = vmatprep.subr.bf16.mxu0 0
    %1713 = vmatpush1.bf16.xpose.msra.mxu0 0
    %1714 = vmatprep.subr.bf16.mxu0 0
    %1715 = vmatpush1.bf16.xpose.msra.mxu0 0
    %1716 = vmatprep.subr.bf16.mxu0 0
    %1717 = vmatpush1.bf16.xpose.msra.mxu0 0
    %1718 = vmatprep.subr.bf16.mxu0 0
    %1719 = vmatpush1.bf16.xpose.msra.mxu0 0
    %1720 = vmatprep.subr.bf16.mxu0 0
    %1721 = vmatpush1.bf16.xpose.msra.mxu0 0
    %1722 = vmatprep.subr.bf16.mxu0 0
    %1723 = vmatpush1.bf16.xpose.msra.mxu0 0
    %1724 = vmatprep.subr.bf16.mxu0 0
    %1725 = vmatpush1.bf16.xpose.msra.mxu0 0
    %1726 = vmatprep.subr.bf16.mxu0 0
    %1727 = vmatpush1.bf16.xpose.msra.mxu0 0
    %1728 = vmatprep.subr.bf16.mxu0 0
    %1729 = vmatpush1.bf16.xpose.msra.mxu0 0
    %1730 = vmatprep.subr.bf16.mxu0 0
    %1731 = vmatpush1.bf16.xpose.msra.mxu0 0
    %1732 = vmatprep.mubr.bf16.mxu0 0
    %1733 = vmatmul.mubr.bf16.gmra.mrb[0].mxu0 %v1695
    %v1734 = vpop.f32.mrb[0].mxu0
    %v1735 = vadd.f32 0.0, %v1734
    %v1736 = vpop.f32.mrb[0].mxu0
    %v1737 = vpop.f32.mrb[0].mxu0
    %v1738 = vpop.f32.mrb[0].mxu0
    %1739 = vdwg.mxu0
    %v1740 = vunpack.c.l.b16 %v1585
    %v1741 = vpack.c.b16 %v1740, %v1740
    %1742 = vrot.lane.b32.xlu0 %v1741, 96
    %v1743 = vpop.permute.xlu0 %1742
    %v1745 = vsel %vm265, %v1585, 0
    %v1748 = vsel %vm265, %v1743, 0
    %1750 = vmatprep.subr.bf16.mxu0 0
    %1751 = vmatpush1.bf16.xpose.msra.mxu0 %v1748
    %1752 = vmatprep.subr.bf16.mxu0 0
    %1753 = vmatpush1.bf16.xpose.msra.mxu0 0
    %1754 = vmatprep.subr.bf16.mxu0 0
    %1755 = vmatpush1.bf16.xpose.msra.mxu0 0
    %1756 = vmatprep.subr.bf16.mxu0 0
    %1757 = vmatpush1.bf16.xpose.msra.mxu0 0
    %1758 = vmatprep.subr.bf16.mxu0 0
    %1759 = vmatpush1.bf16.xpose.msra.mxu0 0
    %1760 = vmatprep.subr.bf16.mxu0 0
    %1761 = vmatpush1.bf16.xpose.msra.mxu0 0
    %1762 = vmatprep.subr.bf16.mxu0 0
    %1763 = vmatpush1.bf16.xpose.msra.mxu0 0
    %1764 = vmatprep.subr.bf16.mxu0 0
    %1765 = vmatpush1.bf16.xpose.msra.mxu0 0
    %1766 = vmatprep.subr.bf16.mxu0 0
    %1767 = vmatpush1.bf16.xpose.msra.mxu0 0
    %1768 = vmatprep.subr.bf16.mxu0 0
    %1769 = vmatpush1.bf16.xpose.msra.mxu0 0
    %1770 = vmatprep.subr.bf16.mxu0 0
    %1771 = vmatpush1.bf16.xpose.msra.mxu0 0
    %1772 = vmatprep.subr.bf16.mxu0 0
    %1773 = vmatpush1.bf16.xpose.msra.mxu0 0
    %1774 = vmatprep.subr.bf16.mxu0 0
    %1775 = vmatpush1.bf16.xpose.msra.mxu0 0
    %1776 = vmatprep.subr.bf16.mxu0 0
    %1777 = vmatpush1.bf16.xpose.msra.mxu0 0
    %1778 = vmatprep.subr.bf16.mxu0 0
    %1779 = vmatpush1.bf16.xpose.msra.mxu0 0
    %1780 = vmatprep.subr.bf16.mxu0 0
    %1781 = vmatpush1.bf16.xpose.msra.mxu0 0
    %1782 = vmatprep.mubr.bf16.mxu0 0
    %1783 = vmatmul.mubr.bf16.gmra.mrb[0].mxu0 %v1745
    %v1784 = vpop.f32.mrb[0].mxu0
    %v1785 = vadd.f32 0.0, %v1784
    %v1786 = vpop.f32.mrb[0].mxu0
    %v1787 = vpop.f32.mrb[0].mxu0
    %v1788 = vpop.f32.mrb[0].mxu0
    %1789 = vdwg.mxu0
    %v1790 = vunpack.c.l.b16 %v1587
    %v1791 = vpack.c.b16 %v1790, %v1790
    %1792 = vrot.lane.b32.xlu0 %v1791, 96
    %v1793 = vpop.permute.xlu0 %1792
    %v1795 = vsel %vm265, %v1587, 0
    %v1798 = vsel %vm265, %v1793, 0
    %1800 = vmatprep.subr.bf16.mxu0 0
    %1801 = vmatpush1.bf16.xpose.msra.mxu0 %v1798
    %1802 = vmatprep.subr.bf16.mxu0 0
    %1803 = vmatpush1.bf16.xpose.msra.mxu0 0
    %1804 = vmatprep.subr.bf16.mxu0 0
    %1805 = vmatpush1.bf16.xpose.msra.mxu0 0
    %1806 = vmatprep.subr.bf16.mxu0 0
    %1807 = vmatpush1.bf16.xpose.msra.mxu0 0
    %1808 = vmatprep.subr.bf16.mxu0 0
    %1809 = vmatpush1.bf16.xpose.msra.mxu0 0
    %1810 = vmatprep.subr.bf16.mxu0 0
    %1811 = vmatpush1.bf16.xpose.msra.mxu0 0
    %1812 = vmatprep.subr.bf16.mxu0 0
    %1813 = vmatpush1.bf16.xpose.msra.mxu0 0
    %1814 = vmatprep.subr.bf16.mxu0 0
    %1815 = vmatpush1.bf16.xpose.msra.mxu0 0
    %1816 = vmatprep.subr.bf16.mxu0 0
    %1817 = vmatpush1.bf16.xpose.msra.mxu0 0
    %1818 = vmatprep.subr.bf16.mxu0 0
    %1819 = vmatpush1.bf16.xpose.msra.mxu0 0
    %1820 = vmatprep.subr.bf16.mxu0 0
    %1821 = vmatpush1.bf16.xpose.msra.mxu0 0
    %1822 = vmatprep.subr.bf16.mxu0 0
    %1823 = vmatpush1.bf16.xpose.msra.mxu0 0
    %1824 = vmatprep.subr.bf16.mxu0 0
    %1825 = vmatpush1.bf16.xpose.msra.mxu0 0
    %1826 = vmatprep.subr.bf16.mxu0 0
    %1827 = vmatpush1.bf16.xpose.msra.mxu0 0
    %1828 = vmatprep.subr.bf16.mxu0 0
    %1829 = vmatpush1.bf16.xpose.msra.mxu0 0
    %1830 = vmatprep.subr.bf16.mxu0 0
    %1831 = vmatpush1.bf16.xpose.msra.mxu0 0
    %1832 = vmatprep.mubr.bf16.mxu0 0
    %1833 = vmatmul.mubr.bf16.gmra.mrb[0].mxu0 %v1795
    %v1834 = vpop.f32.mrb[0].mxu0
    %v1835 = vadd.f32 0.0, %v1834
    %v1836 = vpop.f32.mrb[0].mxu0
    %v1837 = vpop.f32.mrb[0].mxu0
    %v1838 = vpop.f32.mrb[0].mxu0
    %1839 = vdwg.mxu0
    %v1840 = vunpack.c.l.b16 %v1589
    %v1841 = vpack.c.b16 %v1840, %v1840
    %1842 = vrot.lane.b32.xlu0 %v1841, 96
    %v1843 = vpop.permute.xlu0 %1842
    %v1845 = vsel %vm265, %v1589, 0
    %v1848 = vsel %vm265, %v1843, 0
    %1850 = vmatprep.subr.bf16.mxu0 0
    %1851 = vmatpush1.bf16.xpose.msra.mxu0 %v1848
    %1852 = vmatprep.subr.bf16.mxu0 0
    %1853 = vmatpush1.bf16.xpose.msra.mxu0 0
    %1854 = vmatprep.subr.bf16.mxu0 0
    %1855 = vmatpush1.bf16.xpose.msra.mxu0 0
    %1856 = vmatprep.subr.bf16.mxu0 0
    %1857 = vmatpush1.bf16.xpose.msra.mxu0 0
    %1858 = vmatprep.subr.bf16.mxu0 0
    %1859 = vmatpush1.bf16.xpose.msra.mxu0 0
    %1860 = vmatprep.subr.bf16.mxu0 0
    %1861 = vmatpush1.bf16.xpose.msra.mxu0 0
    %1862 = vmatprep.subr.bf16.mxu0 0
    %1863 = vmatpush1.bf16.xpose.msra.mxu0 0
    %1864 = vmatprep.subr.bf16.mxu0 0
    %1865 = vmatpush1.bf16.xpose.msra.mxu0 0
    %1866 = vmatprep.subr.bf16.mxu0 0
    %1867 = vmatpush1.bf16.xpose.msra.mxu0 0
    %1868 = vmatprep.subr.bf16.mxu0 0
    %1869 = vmatpush1.bf16.xpose.msra.mxu0 0
    %1870 = vmatprep.subr.bf16.mxu0 0
    %1871 = vmatpush1.bf16.xpose.msra.mxu0 0
    %1872 = vmatprep.subr.bf16.mxu0 0
    %1873 = vmatpush1.bf16.xpose.msra.mxu0 0
    %1874 = vmatprep.subr.bf16.mxu0 0
    %1875 = vmatpush1.bf16.xpose.msra.mxu0 0
    %1876 = vmatprep.subr.bf16.mxu0 0
    %1877 = vmatpush1.bf16.xpose.msra.mxu0 0
    %1878 = vmatprep.subr.bf16.mxu0 0
    %1879 = vmatpush1.bf16.xpose.msra.mxu0 0
    %1880 = vmatprep.subr.bf16.mxu0 0
    %1881 = vmatpush1.bf16.xpose.msra.mxu0 0
    %1882 = vmatprep.mubr.bf16.mxu0 0
    %1883 = vmatmul.mubr.bf16.gmra.mrb[0].mxu0 %v1845
    %v1884 = vpop.f32.mrb[0].mxu0
    %v1885 = vadd.f32 0.0, %v1884
    %v1886 = vpop.f32.mrb[0].mxu0
    %v1887 = vpop.f32.mrb[0].mxu0
    %v1888 = vpop.f32.mrb[0].mxu0
    %1889 = vdwg.mxu0
    %v1890 = vunpack.c.l.b16 %v1591
    %v1891 = vpack.c.b16 %v1890, %v1890
    %1892 = vrot.lane.b32.xlu0 %v1891, 96
    %v1893 = vpop.permute.xlu0 %1892
    %v1895 = vsel %vm265, %v1591, 0
    %v1898 = vsel %vm265, %v1893, 0
    %1900 = vmatprep.subr.bf16.mxu0 0
    %1901 = vmatpush1.bf16.xpose.msra.mxu0 %v1898
    %1902 = vmatprep.subr.bf16.mxu0 0
    %1903 = vmatpush1.bf16.xpose.msra.mxu0 0
    %1904 = vmatprep.subr.bf16.mxu0 0
    %1905 = vmatpush1.bf16.xpose.msra.mxu0 0
    %1906 = vmatprep.subr.bf16.mxu0 0
    %1907 = vmatpush1.bf16.xpose.msra.mxu0 0
    %1908 = vmatprep.subr.bf16.mxu0 0
    %1909 = vmatpush1.bf16.xpose.msra.mxu0 0
    %1910 = vmatprep.subr.bf16.mxu0 0
    %1911 = vmatpush1.bf16.xpose.msra.mxu0 0
    %1912 = vmatprep.subr.bf16.mxu0 0
    %1913 = vmatpush1.bf16.xpose.msra.mxu0 0
    %1914 = vmatprep.subr.bf16.mxu0 0
    %1915 = vmatpush1.bf16.xpose.msra.mxu0 0
    %1916 = vmatprep.subr.bf16.mxu0 0
    %1917 = vmatpush1.bf16.xpose.msra.mxu0 0
    %1918 = vmatprep.subr.bf16.mxu0 0
    %1919 = vmatpush1.bf16.xpose.msra.mxu0 0
    %1920 = vmatprep.subr.bf16.mxu0 0
    %1921 = vmatpush1.bf16.xpose.msra.mxu0 0
    %1922 = vmatprep.subr.bf16.mxu0 0
    %1923 = vmatpush1.bf16.xpose.msra.mxu0 0
    %1924 = vmatprep.subr.bf16.mxu0 0
    %1925 = vmatpush1.bf16.xpose.msra.mxu0 0
    %1926 = vmatprep.subr.bf16.mxu0 0
    %1927 = vmatpush1.bf16.xpose.msra.mxu0 0
    %1928 = vmatprep.subr.bf16.mxu0 0
    %1929 = vmatpush1.bf16.xpose.msra.mxu0 0
    %1930 = vmatprep.subr.bf16.mxu0 0
    %1931 = vmatpush1.bf16.xpose.msra.mxu0 0
    %1932 = vmatprep.mubr.bf16.mxu0 0
    %1933 = vmatmul.mubr.bf16.gmra.mrb[0].mxu0 %v1895
    %v1934 = vpop.f32.mrb[0].mxu0
    %v1935 = vadd.f32 0.0, %v1934
    %v1936 = vpop.f32.mrb[0].mxu0
    %v1937 = vpop.f32.mrb[0].mxu0
    %v1938 = vpop.f32.mrb[0].mxu0
    %1939 = vdwg.mxu0
    %v1940 = vunpack.c.l.b16 %v1593
    %v1941 = vpack.c.b16 %v1940, %v1940
    %1942 = vrot.lane.b32.xlu0 %v1941, 96
    %v1943 = vpop.permute.xlu0 %1942
    %v1945 = vsel %vm265, %v1593, 0
    %v1948 = vsel %vm265, %v1943, 0
    %1950 = vmatprep.subr.bf16.mxu0 0
    %1951 = vmatpush1.bf16.xpose.msra.mxu0 %v1948
    %1952 = vmatprep.subr.bf16.mxu0 0
    %1953 = vmatpush1.bf16.xpose.msra.mxu0 0
    %1954 = vmatprep.subr.bf16.mxu0 0
    %1955 = vmatpush1.bf16.xpose.msra.mxu0 0
    %1956 = vmatprep.subr.bf16.mxu0 0
    %1957 = vmatpush1.bf16.xpose.msra.mxu0 0
    %1958 = vmatprep.subr.bf16.mxu0 0
    %1959 = vmatpush1.bf16.xpose.msra.mxu0 0
    %1960 = vmatprep.subr.bf16.mxu0 0
    %1961 = vmatpush1.bf16.xpose.msra.mxu0 0
    %1962 = vmatprep.subr.bf16.mxu0 0
    %1963 = vmatpush1.bf16.xpose.msra.mxu0 0
    %1964 = vmatprep.subr.bf16.mxu0 0
    %1965 = vmatpush1.bf16.xpose.msra.mxu0 0
    %1966 = vmatprep.subr.bf16.mxu0 0
    %1967 = vmatpush1.bf16.xpose.msra.mxu0 0
    %1968 = vmatprep.subr.bf16.mxu0 0
    %1969 = vmatpush1.bf16.xpose.msra.mxu0 0
    %1970 = vmatprep.subr.bf16.mxu0 0
    %1971 = vmatpush1.bf16.xpose.msra.mxu0 0
    %1972 = vmatprep.subr.bf16.mxu0 0
    %1973 = vmatpush1.bf16.xpose.msra.mxu0 0
    %1974 = vmatprep.subr.bf16.mxu0 0
    %1975 = vmatpush1.bf16.xpose.msra.mxu0 0
    %1976 = vmatprep.subr.bf16.mxu0 0
    %1977 = vmatpush1.bf16.xpose.msra.mxu0 0
    %1978 = vmatprep.subr.bf16.mxu0 0
    %1979 = vmatpush1.bf16.xpose.msra.mxu0 0
    %1980 = vmatprep.subr.bf16.mxu0 0
    %1981 = vmatpush1.bf16.xpose.msra.mxu0 0
    %1982 = vmatprep.mubr.bf16.mxu0 0
    %1983 = vmatmul.mubr.bf16.gmra.mrb[0].mxu0 %v1945
    %v1984 = vpop.f32.mrb[0].mxu0
    %v1985 = vadd.f32 0.0, %v1984
    %v1986 = vpop.f32.mrb[0].mxu0
    %v1987 = vpop.f32.mrb[0].mxu0
    %v1988 = vpop.f32.mrb[0].mxu0
    %1989 = vdwg.mxu0
    %v1990 = vmul.f32 %v1637, 0.35355338
    %v1991 = vmul.f32 %v1685, 0.35355338
    %v1992 = vmul.f32 %v1735, 0.35355338
    %v1993 = vmul.f32 %v1785, 0.35355338
    %v1994 = vmul.f32 %v1835, 0.35355338
    %v1995 = vmul.f32 %v1885, 0.35355338
    %v1996 = vmul.f32 %v1935, 0.35355338
    %v1997 = vmul.f32 %v1985, 0.35355338
    %v1998 = vsel %vm265, %v1990, -inf
    %1999 = vmax.xlane.f32.xlu0 %v1998
    %v2000 = vpop.xlane.xlu0 %1999
    %v2001 = vsel %vm265, %v1991, -inf
    %2002 = vmax.xlane.f32.xlu0 %v2001
    %v2003 = vpop.xlane.xlu0 %2002
    %v2004 = vsel %vm265, %v1992, -inf
    %2005 = vmax.xlane.f32.xlu0 %v2004
    %v2006 = vpop.xlane.xlu0 %2005
    %v2007 = vsel %vm265, %v1993, -inf
    %2008 = vmax.xlane.f32.xlu0 %v2007
    %v2009 = vpop.xlane.xlu0 %2008
    %v2010 = vsel %vm265, %v1994, -inf
    %2011 = vmax.xlane.f32.xlu0 %v2010
    %v2012 = vpop.xlane.xlu0 %2011
    %v2013 = vsel %vm265, %v1995, -inf
    %2014 = vmax.xlane.f32.xlu0 %v2013
    %v2015 = vpop.xlane.xlu0 %2014
    %v2016 = vsel %vm265, %v1996, -inf
    %2017 = vmax.xlane.f32.xlu0 %v2016
    %v2018 = vpop.xlane.xlu0 %2017
    %v2019 = vsel %vm265, %v1997, -inf
    %2020 = vmax.xlane.f32.xlu0 %v2019
    %v2021 = vpop.xlane.xlu0 %2020
    %v2022 = vsub.f32 %v1990, %v2000
    %v2023 = vsub.f32 %v1991, %v2003
    %v2024 = vsub.f32 %v1992, %v2006
    %v2025 = vsub.f32 %v1993, %v2009
    %v2026 = vsub.f32 %v1994, %v2012
    %v2027 = vsub.f32 %v1995, %v2015
    %v2028 = vsub.f32 %v1996, %v2018
    %v2029 = vsub.f32 %v1997, %v2021
    %v2030 = vmul.f32 %v2022, 1.442695
    %v2031 = vpow.pop %v2030
    %v2032 = vmul.f32 %v2023, 1.442695
    %v2033 = vpow.pop %v2032
    %v2034 = vmul.f32 %v2024, 1.442695
    %v2035 = vpow.pop %v2034
    %v2036 = vmul.f32 %v2025, 1.442695
    %v2037 = vpow.pop %v2036
    %v2038 = vmul.f32 %v2026, 1.442695
    %v2039 = vpow.pop %v2038
    %v2040 = vmul.f32 %v2027, 1.442695
    %v2041 = vpow.pop %v2040
    %v2042 = vmul.f32 %v2028, 1.442695
    %v2043 = vpow.pop %v2042
    %v2044 = vmul.f32 %v2029, 1.442695
    %v2045 = vpow.pop %v2044
    %v2046 = vsel %vm265, %v2031, 0.0
    %2047 = vadd.xlane.f32.xlu0 %v2046
    %v2048 = vpop.xlane.xlu0 %2047
    %v2049 = vsel %vm265, %v2033, 0.0
    %2050 = vadd.xlane.f32.xlu0 %v2049
    %v2051 = vpop.xlane.xlu0 %2050
    %v2052 = vsel %vm265, %v2035, 0.0
    %2053 = vadd.xlane.f32.xlu0 %v2052
    %v2054 = vpop.xlane.xlu0 %2053
    %v2055 = vsel %vm265, %v2037, 0.0
    %2056 = vadd.xlane.f32.xlu0 %v2055
    %v2057 = vpop.xlane.xlu0 %2056
    %v2058 = vsel %vm265, %v2039, 0.0
    %2059 = vadd.xlane.f32.xlu0 %v2058
    %v2060 = vpop.xlane.xlu0 %2059
    %v2061 = vsel %vm265, %v2041, 0.0
    %2062 = vadd.xlane.f32.xlu0 %v2061
    %v2063 = vpop.xlane.xlu0 %2062
    %v2064 = vsel %vm265, %v2043, 0.0
    %2065 = vadd.xlane.f32.xlu0 %v2064
    %v2066 = vpop.xlane.xlu0 %2065
    %v2067 = vsel %vm265, %v2045, 0.0
    %2068 = vadd.xlane.f32.xlu0 %v2067
    %v2069 = vpop.xlane.xlu0 %2068
    %v2070 = vrcp.pop %v2048
    %v2071 = vrcp.pop %v2051
    %v2072 = vrcp.pop %v2054
    %v2073 = vrcp.pop %v2057
    %v2074 = vrcp.pop %v2060
    %v2075 = vrcp.pop %v2063
    %v2076 = vrcp.pop %v2066
    %v2077 = vrcp.pop %v2069
    %v2078 = vmul.f32 %v2031, %v2070
    %v2079 = vmul.f32 %v2033, %v2071
    %v2080 = vmul.f32 %v2035, %v2072
    %v2081 = vmul.f32 %v2037, %v2073
    %v2082 = vmul.f32 %v2039, %v2074
    %v2083 = vmul.f32 %v2041, %v2075
    %v2084 = vmul.f32 %v2043, %v2076
    %v2085 = vmul.f32 %v2045, %v2077
    %v2086 = vpack.c.bf16 %v2078, %v2078
    %v2087 = vpack.c.bf16 %v2079, %v2079
    %v2088 = vpack.c.bf16 %v2080, %v2080
    %v2089 = vpack.c.bf16 %v2081, %v2081
    %v2090 = vpack.c.bf16 %v2082, %v2082
    %v2091 = vpack.c.bf16 %v2083, %v2083
    %v2092 = vpack.c.bf16 %v2084, %v2084
    %v2093 = vpack.c.bf16 %v2085, %v2085
    %2094 = vrot.lane.b32.xlu0 %v1580, 64
    %v2095 = vpop.permute.xlu0 %2094
    %v2097 = vsel %vm265, %v2086, 0
    %v2100 = vsel %vm769, %v2095, 0
    %2102 = vmatprep.subr.bf16.mxu0 0
    %2103 = vmatpush1.bf16.msra.mxu0 %v2100
    %2104 = vmatprep.subr.bf16.mxu0 0
    %2105 = vmatpush1.bf16.msra.mxu0 0
    %2106 = vmatprep.subr.bf16.mxu0 0
    %2107 = vmatpush1.bf16.msra.mxu0 0
    %2108 = vmatprep.subr.bf16.mxu0 0
    %2109 = vmatpush1.bf16.msra.mxu0 0
    %2110 = vmatprep.subr.bf16.mxu0 0
    %2111 = vmatpush1.bf16.msra.mxu0 0
    %2112 = vmatprep.subr.bf16.mxu0 0
    %2113 = vmatpush1.bf16.msra.mxu0 0
    %2114 = vmatprep.subr.bf16.mxu0 0
    %2115 = vmatpush1.bf16.msra.mxu0 0
    %2116 = vmatprep.subr.bf16.mxu0 0
    %2117 = vmatpush1.bf16.msra.mxu0 0
    %2118 = vmatprep.subr.bf16.mxu0 0
    %2119 = vmatpush1.bf16.msra.mxu0 0
    %2120 = vmatprep.subr.bf16.mxu0 0
    %2121 = vmatpush1.bf16.msra.mxu0 0
    %2122 = vmatprep.subr.bf16.mxu0 0
    %2123 = vmatpush1.bf16.msra.mxu0 0
    %2124 = vmatprep.subr.bf16.mxu0 0
    %2125 = vmatpush1.bf16.msra.mxu0 0
    %2126 = vmatprep.subr.bf16.mxu0 0
    %2127 = vmatpush1.bf16.msra.mxu0 0
    %2128 = vmatprep.subr.bf16.mxu0 0
    %2129 = vmatpush1.bf16.msra.mxu0 0
    %2130 = vmatprep.subr.bf16.mxu0 0
    %2131 = vmatpush1.bf16.msra.mxu0 0
    %2132 = vmatprep.subr.bf16.mxu0 0
    %2133 = vmatpush1.bf16.msra.mxu0 0
    %2134 = vmatprep.mubr.bf16.mxu0 0
    %2135 = vmatmul.mubr.bf16.gmra.mrb[0].mxu0 %v2097
    %v2136 = vpop.f32.mrb[0].mxu0
    %v2137 = vadd.f32 0.0, %v2136
    %v2138 = vpop.f32.mrb[0].mxu0
    %v2139 = vpop.f32.mrb[0].mxu0
    %v2140 = vpop.f32.mrb[0].mxu0
    %2141 = vdwg.mxu0
    %2142 = vrot.lane.b32.xlu0 %v1581, 64
    %v2143 = vpop.permute.xlu0 %2142
    %v2145 = vsel %vm265, %v2087, 0
    %v2148 = vsel %vm769, %v2143, 0
    %2150 = vmatprep.subr.bf16.mxu0 0
    %2151 = vmatpush1.bf16.msra.mxu0 %v2148
    %2152 = vmatprep.subr.bf16.mxu0 0
    %2153 = vmatpush1.bf16.msra.mxu0 0
    %2154 = vmatprep.subr.bf16.mxu0 0
    %2155 = vmatpush1.bf16.msra.mxu0 0
    %2156 = vmatprep.subr.bf16.mxu0 0
    %2157 = vmatpush1.bf16.msra.mxu0 0
    %2158 = vmatprep.subr.bf16.mxu0 0
    %2159 = vmatpush1.bf16.msra.mxu0 0
    %2160 = vmatprep.subr.bf16.mxu0 0
    %2161 = vmatpush1.bf16.msra.mxu0 0
    %2162 = vmatprep.subr.bf16.mxu0 0
    %2163 = vmatpush1.bf16.msra.mxu0 0
    %2164 = vmatprep.subr.bf16.mxu0 0
    %2165 = vmatpush1.bf16.msra.mxu0 0
    %2166 = vmatprep.subr.bf16.mxu0 0
    %2167 = vmatpush1.bf16.msra.mxu0 0
    %2168 = vmatprep.subr.bf16.mxu0 0
    %2169 = vmatpush1.bf16.msra.mxu0 0
    %2170 = vmatprep.subr.bf16.mxu0 0
    %2171 = vmatpush1.bf16.msra.mxu0 0
    %2172 = vmatprep.subr.bf16.mxu0 0
    %2173 = vmatpush1.bf16.msra.mxu0 0
    %2174 = vmatprep.subr.bf16.mxu0 0
    %2175 = vmatpush1.bf16.msra.mxu0 0
    %2176 = vmatprep.subr.bf16.mxu0 0
    %2177 = vmatpush1.bf16.msra.mxu0 0
    %2178 = vmatprep.subr.bf16.mxu0 0
    %2179 = vmatpush1.bf16.msra.mxu0 0
    %2180 = vmatprep.subr.bf16.mxu0 0
    %2181 = vmatpush1.bf16.msra.mxu0 0
    %2182 = vmatprep.mubr.bf16.mxu0 0
    %2183 = vmatmul.mubr.bf16.gmra.mrb[0].mxu0 %v2145
    %v2184 = vpop.f32.mrb[0].mxu0
    %v2185 = vadd.f32 0.0, %v2184
    %v2186 = vpop.f32.mrb[0].mxu0
    %v2187 = vpop.f32.mrb[0].mxu0
    %v2188 = vpop.f32.mrb[0].mxu0
    %2189 = vdwg.mxu0
    %2190 = vrot.lane.b32.xlu0 %v1691, 64
    %v2191 = vpop.permute.xlu0 %2190
    %v2193 = vsel %vm265, %v2088, 0
    %v2196 = vsel %vm769, %v2191, 0
    %2198 = vmatprep.subr.bf16.mxu0 0
    %2199 = vmatpush1.bf16.msra.mxu0 %v2196
    %2200 = vmatprep.subr.bf16.mxu0 0
    %2201 = vmatpush1.bf16.msra.mxu0 0
    %2202 = vmatprep.subr.bf16.mxu0 0
    %2203 = vmatpush1.bf16.msra.mxu0 0
    %2204 = vmatprep.subr.bf16.mxu0 0
    %2205 = vmatpush1.bf16.msra.mxu0 0
    %2206 = vmatprep.subr.bf16.mxu0 0
    %2207 = vmatpush1.bf16.msra.mxu0 0
    %2208 = vmatprep.subr.bf16.mxu0 0
    %2209 = vmatpush1.bf16.msra.mxu0 0
    %2210 = vmatprep.subr.bf16.mxu0 0
    %2211 = vmatpush1.bf16.msra.mxu0 0
    %2212 = vmatprep.subr.bf16.mxu0 0
    %2213 = vmatpush1.bf16.msra.mxu0 0
    %2214 = vmatprep.subr.bf16.mxu0 0
    %2215 = vmatpush1.bf16.msra.mxu0 0
    %2216 = vmatprep.subr.bf16.mxu0 0
    %2217 = vmatpush1.bf16.msra.mxu0 0
    %2218 = vmatprep.subr.bf16.mxu0 0
    %2219 = vmatpush1.bf16.msra.mxu0 0
    %2220 = vmatprep.subr.bf16.mxu0 0
    %2221 = vmatpush1.bf16.msra.mxu0 0
    %2222 = vmatprep.subr.bf16.mxu0 0
    %2223 = vmatpush1.bf16.msra.mxu0 0
    %2224 = vmatprep.subr.bf16.mxu0 0
    %2225 = vmatpush1.bf16.msra.mxu0 0
    %2226 = vmatprep.subr.bf16.mxu0 0
    %2227 = vmatpush1.bf16.msra.mxu0 0
    %2228 = vmatprep.subr.bf16.mxu0 0
    %2229 = vmatpush1.bf16.msra.mxu0 0
    %2230 = vmatprep.mubr.bf16.mxu0 0
    %2231 = vmatmul.mubr.bf16.gmra.mrb[0].mxu0 %v2193
    %v2232 = vpop.f32.mrb[0].mxu0
    %v2233 = vadd.f32 0.0, %v2232
    %v2234 = vpop.f32.mrb[0].mxu0
    %v2235 = vpop.f32.mrb[0].mxu0
    %v2236 = vpop.f32.mrb[0].mxu0
    %2237 = vdwg.mxu0
    %2238 = vrot.lane.b32.xlu0 %v1741, 64
    %v2239 = vpop.permute.xlu0 %2238
    %v2241 = vsel %vm265, %v2089, 0
    %v2244 = vsel %vm769, %v2239, 0
    %2246 = vmatprep.subr.bf16.mxu0 0
    %2247 = vmatpush1.bf16.msra.mxu0 %v2244
    %2248 = vmatprep.subr.bf16.mxu0 0
    %2249 = vmatpush1.bf16.msra.mxu0 0
    %2250 = vmatprep.subr.bf16.mxu0 0
    %2251 = vmatpush1.bf16.msra.mxu0 0
    %2252 = vmatprep.subr.bf16.mxu0 0
    %2253 = vmatpush1.bf16.msra.mxu0 0
    %2254 = vmatprep.subr.bf16.mxu0 0
    %2255 = vmatpush1.bf16.msra.mxu0 0
    %2256 = vmatprep.subr.bf16.mxu0 0
    %2257 = vmatpush1.bf16.msra.mxu0 0
    %2258 = vmatprep.subr.bf16.mxu0 0
    %2259 = vmatpush1.bf16.msra.mxu0 0
    %2260 = vmatprep.subr.bf16.mxu0 0
    %2261 = vmatpush1.bf16.msra.mxu0 0
    %2262 = vmatprep.subr.bf16.mxu0 0
    %2263 = vmatpush1.bf16.msra.mxu0 0
    %2264 = vmatprep.subr.bf16.mxu0 0
    %2265 = vmatpush1.bf16.msra.mxu0 0
    %2266 = vmatprep.subr.bf16.mxu0 0
    %2267 = vmatpush1.bf16.msra.mxu0 0
    %2268 = vmatprep.subr.bf16.mxu0 0
    %2269 = vmatpush1.bf16.msra.mxu0 0
    %2270 = vmatprep.subr.bf16.mxu0 0
    %2271 = vmatpush1.bf16.msra.mxu0 0
    %2272 = vmatprep.subr.bf16.mxu0 0
    %2273 = vmatpush1.bf16.msra.mxu0 0
    %2274 = vmatprep.subr.bf16.mxu0 0
    %2275 = vmatpush1.bf16.msra.mxu0 0
    %2276 = vmatprep.subr.bf16.mxu0 0
    %2277 = vmatpush1.bf16.msra.mxu0 0
    %2278 = vmatprep.mubr.bf16.mxu0 0
    %2279 = vmatmul.mubr.bf16.gmra.mrb[0].mxu0 %v2241
    %v2280 = vpop.f32.mrb[0].mxu0
    %v2281 = vadd.f32 0.0, %v2280
    %v2282 = vpop.f32.mrb[0].mxu0
    %v2283 = vpop.f32.mrb[0].mxu0
    %v2284 = vpop.f32.mrb[0].mxu0
    %2285 = vdwg.mxu0
    %2286 = vrot.lane.b32.xlu0 %v1791, 64
    %v2287 = vpop.permute.xlu0 %2286
    %v2289 = vsel %vm265, %v2090, 0
    %v2292 = vsel %vm769, %v2287, 0
    %2294 = vmatprep.subr.bf16.mxu0 0
    %2295 = vmatpush1.bf16.msra.mxu0 %v2292
    %2296 = vmatprep.subr.bf16.mxu0 0
    %2297 = vmatpush1.bf16.msra.mxu0 0
    %2298 = vmatprep.subr.bf16.mxu0 0
    %2299 = vmatpush1.bf16.msra.mxu0 0
    %2300 = vmatprep.subr.bf16.mxu0 0
    %2301 = vmatpush1.bf16.msra.mxu0 0
    %2302 = vmatprep.subr.bf16.mxu0 0
    %2303 = vmatpush1.bf16.msra.mxu0 0
    %2304 = vmatprep.subr.bf16.mxu0 0
    %2305 = vmatpush1.bf16.msra.mxu0 0
    %2306 = vmatprep.subr.bf16.mxu0 0
    %2307 = vmatpush1.bf16.msra.mxu0 0
    %2308 = vmatprep.subr.bf16.mxu0 0
    %2309 = vmatpush1.bf16.msra.mxu0 0
    %2310 = vmatprep.subr.bf16.mxu0 0
    %2311 = vmatpush1.bf16.msra.mxu0 0
    %2312 = vmatprep.subr.bf16.mxu0 0
    %2313 = vmatpush1.bf16.msra.mxu0 0
    %2314 = vmatprep.subr.bf16.mxu0 0
    %2315 = vmatpush1.bf16.msra.mxu0 0
    %2316 = vmatprep.subr.bf16.mxu0 0
    %2317 = vmatpush1.bf16.msra.mxu0 0
    %2318 = vmatprep.subr.bf16.mxu0 0
    %2319 = vmatpush1.bf16.msra.mxu0 0
    %2320 = vmatprep.subr.bf16.mxu0 0
    %2321 = vmatpush1.bf16.msra.mxu0 0
    %2322 = vmatprep.subr.bf16.mxu0 0
    %2323 = vmatpush1.bf16.msra.mxu0 0
    %2324 = vmatprep.subr.bf16.mxu0 0
    %2325 = vmatpush1.bf16.msra.mxu0 0
    %2326 = vmatprep.mubr.bf16.mxu0 0
    %2327 = vmatmul.mubr.bf16.gmra.mrb[0].mxu0 %v2289
    %v2328 = vpop.f32.mrb[0].mxu0
    %v2329 = vadd.f32 0.0, %v2328
    %v2330 = vpop.f32.mrb[0].mxu0
    %v2331 = vpop.f32.mrb[0].mxu0
    %v2332 = vpop.f32.mrb[0].mxu0
    %2333 = vdwg.mxu0
    %2334 = vrot.lane.b32.xlu0 %v1841, 64
    %v2335 = vpop.permute.xlu0 %2334
    %v2337 = vsel %vm265, %v2091, 0
    %v2340 = vsel %vm769, %v2335, 0
    %2342 = vmatprep.subr.bf16.mxu0 0
    %2343 = vmatpush1.bf16.msra.mxu0 %v2340
    %2344 = vmatprep.subr.bf16.mxu0 0
    %2345 = vmatpush1.bf16.msra.mxu0 0
    %2346 = vmatprep.subr.bf16.mxu0 0
    %2347 = vmatpush1.bf16.msra.mxu0 0
    %2348 = vmatprep.subr.bf16.mxu0 0
    %2349 = vmatpush1.bf16.msra.mxu0 0
    %2350 = vmatprep.subr.bf16.mxu0 0
    %2351 = vmatpush1.bf16.msra.mxu0 0
    %2352 = vmatprep.subr.bf16.mxu0 0
    %2353 = vmatpush1.bf16.msra.mxu0 0
    %2354 = vmatprep.subr.bf16.mxu0 0
    %2355 = vmatpush1.bf16.msra.mxu0 0
    %2356 = vmatprep.subr.bf16.mxu0 0
    %2357 = vmatpush1.bf16.msra.mxu0 0
    %2358 = vmatprep.subr.bf16.mxu0 0
    %2359 = vmatpush1.bf16.msra.mxu0 0
    %2360 = vmatprep.subr.bf16.mxu0 0
    %2361 = vmatpush1.bf16.msra.mxu0 0
    %2362 = vmatprep.subr.bf16.mxu0 0
    %2363 = vmatpush1.bf16.msra.mxu0 0
    %2364 = vmatprep.subr.bf16.mxu0 0
    %2365 = vmatpush1.bf16.msra.mxu0 0
    %2366 = vmatprep.subr.bf16.mxu0 0
    %2367 = vmatpush1.bf16.msra.mxu0 0
    %2368 = vmatprep.subr.bf16.mxu0 0
    %2369 = vmatpush1.bf16.msra.mxu0 0
    %2370 = vmatprep.subr.bf16.mxu0 0
    %2371 = vmatpush1.bf16.msra.mxu0 0
    %2372 = vmatprep.subr.bf16.mxu0 0
    %2373 = vmatpush1.bf16.msra.mxu0 0
    %2374 = vmatprep.mubr.bf16.mxu0 0
    %2375 = vmatmul.mubr.bf16.gmra.mrb[0].mxu0 %v2337
    %v2376 = vpop.f32.mrb[0].mxu0
    %v2377 = vadd.f32 0.0, %v2376
    %v2378 = vpop.f32.mrb[0].mxu0
    %v2379 = vpop.f32.mrb[0].mxu0
    %v2380 = vpop.f32.mrb[0].mxu0
    %2381 = vdwg.mxu0
    %2382 = vrot.lane.b32.xlu0 %v1891, 64
    %v2383 = vpop.permute.xlu0 %2382
    %v2385 = vsel %vm265, %v2092, 0
    %v2388 = vsel %vm769, %v2383, 0
    %2390 = vmatprep.subr.bf16.mxu0 0
    %2391 = vmatpush1.bf16.msra.mxu0 %v2388
    %2392 = vmatprep.subr.bf16.mxu0 0
    %2393 = vmatpush1.bf16.msra.mxu0 0
    %2394 = vmatprep.subr.bf16.mxu0 0
    %2395 = vmatpush1.bf16.msra.mxu0 0
    %2396 = vmatprep.subr.bf16.mxu0 0
    %2397 = vmatpush1.bf16.msra.mxu0 0
    %2398 = vmatprep.subr.bf16.mxu0 0
    %2399 = vmatpush1.bf16.msra.mxu0 0
    %2400 = vmatprep.subr.bf16.mxu0 0
    %2401 = vmatpush1.bf16.msra.mxu0 0
    %2402 = vmatprep.subr.bf16.mxu0 0
    %2403 = vmatpush1.bf16.msra.mxu0 0
    %2404 = vmatprep.subr.bf16.mxu0 0
    %2405 = vmatpush1.bf16.msra.mxu0 0
    %2406 = vmatprep.subr.bf16.mxu0 0
    %2407 = vmatpush1.bf16.msra.mxu0 0
    %2408 = vmatprep.subr.bf16.mxu0 0
    %2409 = vmatpush1.bf16.msra.mxu0 0
    %2410 = vmatprep.subr.bf16.mxu0 0
    %2411 = vmatpush1.bf16.msra.mxu0 0
    %2412 = vmatprep.subr.bf16.mxu0 0
    %2413 = vmatpush1.bf16.msra.mxu0 0
    %2414 = vmatprep.subr.bf16.mxu0 0
    %2415 = vmatpush1.bf16.msra.mxu0 0
    %2416 = vmatprep.subr.bf16.mxu0 0
    %2417 = vmatpush1.bf16.msra.mxu0 0
    %2418 = vmatprep.subr.bf16.mxu0 0
    %2419 = vmatpush1.bf16.msra.mxu0 0
    %2420 = vmatprep.subr.bf16.mxu0 0
    %2421 = vmatpush1.bf16.msra.mxu0 0
    %2422 = vmatprep.mubr.bf16.mxu0 0
    %2423 = vmatmul.mubr.bf16.gmra.mrb[0].mxu0 %v2385
    %v2424 = vpop.f32.mrb[0].mxu0
    %v2425 = vadd.f32 0.0, %v2424
    %v2426 = vpop.f32.mrb[0].mxu0
    %v2427 = vpop.f32.mrb[0].mxu0
    %v2428 = vpop.f32.mrb[0].mxu0
    %2429 = vdwg.mxu0
    %2430 = vrot.lane.b32.xlu0 %v1941, 64
    %v2431 = vpop.permute.xlu0 %2430
    %v2433 = vsel %vm265, %v2093, 0
    %v2436 = vsel %vm769, %v2431, 0
    %2438 = vmatprep.subr.bf16.mxu0 0
    %2439 = vmatpush1.bf16.msra.mxu0 %v2436
    %2440 = vmatprep.subr.bf16.mxu0 0
    %2441 = vmatpush1.bf16.msra.mxu0 0
    %2442 = vmatprep.subr.bf16.mxu0 0
    %2443 = vmatpush1.bf16.msra.mxu0 0
    %2444 = vmatprep.subr.bf16.mxu0 0
    %2445 = vmatpush1.bf16.msra.mxu0 0
    %2446 = vmatprep.subr.bf16.mxu0 0
    %2447 = vmatpush1.bf16.msra.mxu0 0
    %2448 = vmatprep.subr.bf16.mxu0 0
    %2449 = vmatpush1.bf16.msra.mxu0 0
    %2450 = vmatprep.subr.bf16.mxu0 0
    %2451 = vmatpush1.bf16.msra.mxu0 0
    %2452 = vmatprep.subr.bf16.mxu0 0
    %2453 = vmatpush1.bf16.msra.mxu0 0
    %2454 = vmatprep.subr.bf16.mxu0 0
    %2455 = vmatpush1.bf16.msra.mxu0 0
    %2456 = vmatprep.subr.bf16.mxu0 0
    %2457 = vmatpush1.bf16.msra.mxu0 0
    %2458 = vmatprep.subr.bf16.mxu0 0
    %2459 = vmatpush1.bf16.msra.mxu0 0
    %2460 = vmatprep.subr.bf16.mxu0 0
    %2461 = vmatpush1.bf16.msra.mxu0 0
    %2462 = vmatprep.subr.bf16.mxu0 0
    %2463 = vmatpush1.bf16.msra.mxu0 0
    %2464 = vmatprep.subr.bf16.mxu0 0
    %2465 = vmatpush1.bf16.msra.mxu0 0
    %2466 = vmatprep.subr.bf16.mxu0 0
    %2467 = vmatpush1.bf16.msra.mxu0 0
    %2468 = vmatprep.subr.bf16.mxu0 0
    %2469 = vmatpush1.bf16.msra.mxu0 0
    %2470 = vmatprep.mubr.bf16.mxu0 0
    %2471 = vmatmul.mubr.bf16.gmra.mrb[0].mxu0 %v2433
    %v2472 = vpop.f32.mrb[0].mxu0
    %v2473 = vadd.f32 0.0, %v2472
    %v2474 = vpop.f32.mrb[0].mxu0
    %v2475 = vpop.f32.mrb[0].mxu0
    %v2476 = vpop.f32.mrb[0].mxu0
    %2477 = vdwg.mxu0
    %2480 = vrot.lane.b32.xlu0 %v2233, 8
    %v2481 = vpop.permute.xlu0 %2480
    %2482 = vrot.lane.b32.xlu0 %v2281, 8
    %v2483 = vpop.permute.xlu0 %2482
    %2488 = vrot.lane.b32.xlu0 %v2329, 16
    %v2489 = vpop.permute.xlu0 %2488
    %2490 = vrot.lane.b32.xlu0 %v2377, 16
    %v2491 = vpop.permute.xlu0 %2490
    %2496 = vrot.lane.b32.xlu0 %v2425, 24
    %v2497 = vpop.permute.xlu0 %2496
    %2498 = vrot.lane.b32.xlu0 %v2473, 24
    %v2499 = vpop.permute.xlu0 %2498
    %v2502 = vsel %vm265, %v2137, %v2481
    %v2503 = vsel %vm265, %v2185, %v2483
    %v2504 = vsel %vm1175, %v2502, %v2489
    %v2505 = vsel %vm1175, %v2503, %v2491
    %v2506 = vsel %vm1178, %v2504, %v2497
    %v2507 = vsel %vm1178, %v2505, %v2499
    %v2508 = vpack.c.bf16 %v2507, %v2506
    %v2509 = vld [vmem:[#allocation2 + $0x80] sm:$0xf]
    %v2510 = vld [vmem:[#allocation2 + $0x84] sm:$0xf]
    %v2511 = vld [vmem:[#allocation2 + $0x88] sm:$0xf]
    %v2512 = vld [vmem:[#allocation2 + $0x8c] sm:$0xf]
    %v2513 = vld [vmem:[#allocation4 + $0x1b] sm:$0x1]
    %v2514 = vlaneseq
    %v2515 = vshrl.u32 %v2514, 7
    %v2516 = vsub.s32 0, %v2515
    %v2517 = vrot.slane %v2513, %v2516
    %v2522 = vunpack.c.l.b16 %v2509
    %v2523 = vunpack.c.l.b16 %v2510
    %v2524 = vunpack.c.l.b16 %v2511
    %v2525 = vunpack.c.l.b16 %v2512
    %v2526 = vpack.c.b16 %v2523, %v2522
    %v2527 = vpack.c.b16 %v2525, %v2524
    %v2531 = vsel %vm139, %v2508, 0
    %2533 = vmatprep.subr.bf16.mxu0 0
    %2534 = vmatpush1.bf16.msra.mxu0 %v2526
    %2535 = vmatprep.subr.bf16.mxu0 0
    %2536 = vmatpush1.bf16.msra.mxu0 %v2527
    %2537 = vmatprep.subr.bf16.mxu0 0
    %2538 = vmatpush1.bf16.msra.mxu0 0
    %2539 = vmatprep.subr.bf16.mxu0 0
    %2540 = vmatpush1.bf16.msra.mxu0 0
    %2541 = vmatprep.subr.bf16.mxu0 0
    %2542 = vmatpush1.bf16.msra.mxu0 0
    %2543 = vmatprep.subr.bf16.mxu0 0
    %2544 = vmatpush1.bf16.msra.mxu0 0
    %2545 = vmatprep.subr.bf16.mxu0 0
    %2546 = vmatpush1.bf16.msra.mxu0 0
    %2547 = vmatprep.subr.bf16.mxu0 0
    %2548 = vmatpush1.bf16.msra.mxu0 0
    %2549 = vmatprep.subr.bf16.mxu0 0
    %2550 = vmatpush1.bf16.msra.mxu0 0
    %2551 = vmatprep.subr.bf16.mxu0 0
    %2552 = vmatpush1.bf16.msra.mxu0 0
    %2553 = vmatprep.subr.bf16.mxu0 0
    %2554 = vmatpush1.bf16.msra.mxu0 0
    %2555 = vmatprep.subr.bf16.mxu0 0
    %2556 = vmatpush1.bf16.msra.mxu0 0
    %2557 = vmatprep.subr.bf16.mxu0 0
    %2558 = vmatpush1.bf16.msra.mxu0 0
    %2559 = vmatprep.subr.bf16.mxu0 0
    %2560 = vmatpush1.bf16.msra.mxu0 0
    %2561 = vmatprep.subr.bf16.mxu0 0
    %2562 = vmatpush1.bf16.msra.mxu0 0
    %2563 = vmatprep.subr.bf16.mxu0 0
    %2564 = vmatpush1.bf16.msra.mxu0 0
    %2565 = vmatprep.mubr.bf16.mxu0 0
    %2566 = vmatmul.mubr.bf16.gmra.mrb[0].mxu0 %v2531
    %v2567 = vpop.f32.mrb[0].mxu0
    %v2568 = vadd.f32 %v2517, %v2567
    %v2569 = vpop.f32.mrb[0].mxu0
    %v2570 = vpop.f32.mrb[0].mxu0
    %v2571 = vadd.f32 %v2517, %v2570
    %v2572 = vpop.f32.mrb[0].mxu0
    %2573 = vdwg.mxu0
    %v2574 = vadd.f32 %v1468, %v2568
    %v2575 = vadd.f32 %v1469, %v2571
    %v2576 = vld [vmem:[#allocation4 + $0x1c] sm:$0x1]
    %v2577 = vld [vmem:[#allocation4 + $0x1d] sm:$0x1]
    %v2578 = vsel %vm139, %v2574, 0.0
    %2579 = vadd.xlane.f32.xlu0 %v2578
    %v2580 = vpop.xlane.xlu0 %2579
    %v2581 = vsel %vm139, %v2575, 0.0
    %2582 = vadd.xlane.f32.xlu0 %v2581
    %v2583 = vpop.xlane.xlu0 %2582
    %v2584 = vmul.f32 %v2580, %v146
    %v2585 = vmul.f32 %v2583, %v146
    %v2586 = vsub.f32 %v2574, %v2584
    %v2587 = vsub.f32 %v2575, %v2585
    %v2588 = vmul.f32 %v2586, %v2586
    %v2589 = vmul.f32 %v2587, %v2587
    %v2590 = vsel %vm139, %v2588, 0.0
    %2591 = vadd.xlane.f32.xlu0 %v2590
    %v2592 = vpop.xlane.xlu0 %2591
    %v2593 = vsel %vm139, %v2589, 0.0
    %2594 = vadd.xlane.f32.xlu0 %v2593
    %v2595 = vpop.xlane.xlu0 %2594
    %v2596 = vmul.f32 %v2592, %v146
    %v2597 = vmul.f32 %v2595, %v146
    %v2598 = vadd.f32 %v2596, 1e-05
    %v2599 = vadd.f32 %v2597, 1e-05
    %v2600 = vrsqrt.pop %v2598
    %v2601 = vrsqrt.pop %v2599
    %v2602 = vmul.f32 %v2586, %v2600
    %v2603 = vmul.f32 %v2587, %v2601
    %v2604 = vlaneseq
    %v2605 = vshrl.u32 %v2604, 7
    %v2606 = vsub.s32 0, %v2605
    %v2607 = vrot.slane %v2576, %v2606
    %v2608 = vmul.f32 %v2602, %v2607
    %v2609 = vmul.f32 %v2603, %v2607
    %v2610 = vlaneseq
    %v2611 = vshrl.u32 %v2610, 7
    %v2612 = vsub.s32 0, %v2611
    %v2613 = vrot.slane %v2577, %v2612
    %v2614 = vadd.f32 %v2608, %v2613
    %v2615 = vadd.f32 %v2609, %v2613
    %v2616 = vpack.c.bf16 %v2615, %v2614
    %v2617 = vld [vmem:[#allocation2 + $0x90] sm:$0xf]
    %v2618 = vld [vmem:[#allocation2 + $0x94] sm:$0xf]
    %v2619 = vld [vmem:[#allocation2 + $0x98] sm:$0xf]
    %v2620 = vld [vmem:[#allocation2 + $0x9c] sm:$0xf]
    %v2621 = vld [vmem:[#allocation4 + $0x1e] sm:$0x1]
    %v2622 = vlaneseq
    %v2623 = vshrl.u32 %v2622, 7
    %v2624 = vsub.s32 0, %v2623
    %v2625 = vrot.slane %v2621, %v2624
    %v2630 = vunpack.c.l.b16 %v2617
    %v2631 = vunpack.c.l.b16 %v2618
    %v2632 = vunpack.c.l.b16 %v2619
    %v2633 = vunpack.c.l.b16 %v2620
    %v2634 = vpack.c.b16 %v2631, %v2630
    %v2635 = vpack.c.b16 %v2633, %v2632
    %v2639 = vsel %vm139, %v2616, 0
    %2641 = vmatprep.subr.bf16.mxu0 0
    %2642 = vmatpush1.bf16.msra.mxu0 %v2634
    %2643 = vmatprep.subr.bf16.mxu0 0
    %2644 = vmatpush1.bf16.msra.mxu0 %v2635
    %2645 = vmatprep.subr.bf16.mxu0 0
    %2646 = vmatpush1.bf16.msra.mxu0 0
    %2647 = vmatprep.subr.bf16.mxu0 0
    %2648 = vmatpush1.bf16.msra.mxu0 0
    %2649 = vmatprep.subr.bf16.mxu0 0
    %2650 = vmatpush1.bf16.msra.mxu0 0
    %2651 = vmatprep.subr.bf16.mxu0 0
    %2652 = vmatpush1.bf16.msra.mxu0 0
    %2653 = vmatprep.subr.bf16.mxu0 0
    %2654 = vmatpush1.bf16.msra.mxu0 0
    %2655 = vmatprep.subr.bf16.mxu0 0
    %2656 = vmatpush1.bf16.msra.mxu0 0
    %2657 = vmatprep.subr.bf16.mxu0 0
    %2658 = vmatpush1.bf16.msra.mxu0 0
    %2659 = vmatprep.subr.bf16.mxu0 0
    %2660 = vmatpush1.bf16.msra.mxu0 0
    %2661 = vmatprep.subr.bf16.mxu0 0
    %2662 = vmatpush1.bf16.msra.mxu0 0
    %2663 = vmatprep.subr.bf16.mxu0 0
    %2664 = vmatpush1.bf16.msra.mxu0 0
    %2665 = vmatprep.subr.bf16.mxu0 0
    %2666 = vmatpush1.bf16.msra.mxu0 0
    %2667 = vmatprep.subr.bf16.mxu0 0
    %2668 = vmatpush1.bf16.msra.mxu0 0
    %2669 = vmatprep.subr.bf16.mxu0 0
    %2670 = vmatpush1.bf16.msra.mxu0 0
    %2671 = vmatprep.subr.bf16.mxu0 0
    %2672 = vmatpush1.bf16.msra.mxu0 0
    %2673 = vmatprep.mubr.bf16.mxu0 0
    %2674 = vmatmul.mubr.bf16.gmra.mrb[0].mxu0 %v2639
    %v2675 = vpop.f32.mrb[0].mxu0
    %v2676 = vadd.f32 %v2625, %v2675
    %v2677 = vpop.f32.mrb[0].mxu0
    %v2678 = vpop.f32.mrb[0].mxu0
    %v2679 = vadd.f32 %v2625, %v2678
    %v2680 = vpop.f32.mrb[0].mxu0
    %2681 = vdwg.mxu0
    %v2682 = vmax.f32 %v2676, 0.0
    %v2683 = vmax.f32 %v2679, 0.0
    %v2684 = vpack.c.bf16 %v2683, %v2682
    %v2685 = vld [vmem:[#allocation2 + $0xa0] sm:$0xf]
    %v2686 = vld [vmem:[#allocation2 + $0xa4] sm:$0xf]
    %v2687 = vld [vmem:[#allocation2 + $0xa8] sm:$0xf]
    %v2688 = vld [vmem:[#allocation2 + $0xac] sm:$0xf]
    %v2689 = vld [vmem:[#allocation2 + $0xb0] sm:$0xf]
    %v2690 = vld [vmem:[#allocation2 + $0xb4] sm:$0xf]
    %v2691 = vld [vmem:[#allocation2 + $0xb8] sm:$0xf]
    %v2692 = vld [vmem:[#allocation2 + $0xbc] sm:$0xf]
    %v2693 = vld [vmem:[#allocation2 + $0xc0] sm:$0xf]
    %v2694 = vld [vmem:[#allocation2 + $0xc4] sm:$0xf]
    %v2695 = vld [vmem:[#allocation2 + $0xc8] sm:$0xf]
    %v2696 = vld [vmem:[#allocation2 + $0xcc] sm:$0xf]
    %v2697 = vld [vmem:[#allocation2 + $0xd0] sm:$0xf]
    %v2698 = vld [vmem:[#allocation2 + $0xd4] sm:$0xf]
    %v2699 = vld [vmem:[#allocation2 + $0xd8] sm:$0xf]
    %v2700 = vld [vmem:[#allocation2 + $0xdc] sm:$0xf]
    %v2701 = vld [vmem:[#allocation4 + $0x1f] sm:$0x1]
    %v2702 = vlaneseq
    %v2703 = vshrl.u32 %v2702, 7
    %v2704 = vsub.s32 0, %v2703
    %v2705 = vrot.slane %v2701, %v2704
    %v2722 = vunpack.c.l.b16 %v2685
    %v2723 = vunpack.c.l.b16 %v2686
    %v2724 = vunpack.c.l.b16 %v2687
    %v2725 = vunpack.c.l.b16 %v2688
    %v2726 = vunpack.c.l.b16 %v2689
    %v2727 = vunpack.c.l.b16 %v2690
    %v2728 = vunpack.c.l.b16 %v2691
    %v2729 = vunpack.c.l.b16 %v2692
    %v2730 = vunpack.c.l.b16 %v2693
    %v2731 = vunpack.c.l.b16 %v2694
    %v2732 = vunpack.c.l.b16 %v2695
    %v2733 = vunpack.c.l.b16 %v2696
    %v2734 = vunpack.c.l.b16 %v2697
    %v2735 = vunpack.c.l.b16 %v2698
    %v2736 = vunpack.c.l.b16 %v2699
    %v2737 = vunpack.c.l.b16 %v2700
    %v2738 = vpack.c.b16 %v2723, %v2722
    %v2739 = vpack.c.b16 %v2725, %v2724
    %v2740 = vpack.c.b16 %v2727, %v2726
    %v2741 = vpack.c.b16 %v2729, %v2728
    %v2742 = vpack.c.b16 %v2731, %v2730
    %v2743 = vpack.c.b16 %v2733, %v2732
    %v2744 = vpack.c.b16 %v2735, %v2734
    %v2745 = vpack.c.b16 %v2737, %v2736
    %2754 = vmatprep.subr.bf16.mxu0 0
    %2755 = vmatpush1.bf16.msra.mxu0 %v2738
    %2756 = vmatprep.subr.bf16.mxu0 0
    %2757 = vmatpush1.bf16.msra.mxu0 %v2739
    %2758 = vmatprep.subr.bf16.mxu0 0
    %2759 = vmatpush1.bf16.msra.mxu0 %v2740
    %2760 = vmatprep.subr.bf16.mxu0 0
    %2761 = vmatpush1.bf16.msra.mxu0 %v2741
    %2762 = vmatprep.subr.bf16.mxu0 0
    %2763 = vmatpush1.bf16.msra.mxu0 %v2742
    %2764 = vmatprep.subr.bf16.mxu0 0
    %2765 = vmatpush1.bf16.msra.mxu0 %v2743
    %2766 = vmatprep.subr.bf16.mxu0 0
    %2767 = vmatpush1.bf16.msra.mxu0 %v2744
    %2768 = vmatprep.subr.bf16.mxu0 0
    %2769 = vmatpush1.bf16.msra.mxu0 %v2745
    %2770 = vmatprep.subr.bf16.mxu0 0
    %2771 = vmatpush1.bf16.msra.mxu0 0
    %2772 = vmatprep.subr.bf16.mxu0 0
    %2773 = vmatpush1.bf16.msra.mxu0 0
    %2774 = vmatprep.subr.bf16.mxu0 0
    %2775 = vmatpush1.bf16.msra.mxu0 0
    %2776 = vmatprep.subr.bf16.mxu0 0
    %2777 = vmatpush1.bf16.msra.mxu0 0
    %2778 = vmatprep.subr.bf16.mxu0 0
    %2779 = vmatpush1.bf16.msra.mxu0 0
    %2780 = vmatprep.subr.bf16.mxu0 0
    %2781 = vmatpush1.bf16.msra.mxu0 0
    %2782 = vmatprep.subr.bf16.mxu0 0
    %2783 = vmatpush1.bf16.msra.mxu0 0
    %2784 = vmatprep.subr.bf16.mxu0 0
    %2785 = vmatpush1.bf16.msra.mxu0 0
    %2786 = vmatprep.mubr.bf16.mxu0 0
    %2787 = vmatmul.mubr.bf16.gmra.mrb[0].mxu0 %v2684
    %v2788 = vpop.f32.mrb[0].mxu0
    %v2789 = vadd.f32 %v2705, %v2788
    %v2790 = vpop.f32.mrb[0].mxu0
    %v2791 = vpop.f32.mrb[0].mxu0
    %v2792 = vadd.f32 %v2705, %v2791
    %v2793 = vpop.f32.mrb[0].mxu0
    %2794 = vdwg.mxu0
    %v2795 = vadd.f32 %v2574, %v2789
    %v2796 = vadd.f32 %v2575, %v2792
    %v2797 = vld [vmem:[#allocation4 + $0x20] sm:$0x1]
    %v2798 = vld [vmem:[#allocation4 + $0x21] sm:$0x1]
    %v2799 = vsel %vm139, %v2795, 0.0
    %2800 = vadd.xlane.f32.xlu0 %v2799
    %v2801 = vpop.xlane.xlu0 %2800
    %v2802 = vsel %vm139, %v2796, 0.0
    %2803 = vadd.xlane.f32.xlu0 %v2802
    %v2804 = vpop.xlane.xlu0 %2803
    %v2805 = vmul.f32 %v2801, %v146
    %v2806 = vmul.f32 %v2804, %v146
    %v2807 = vsub.f32 %v2795, %v2805
    %v2808 = vsub.f32 %v2796, %v2806
    %v2809 = vmul.f32 %v2807, %v2807
    %v2810 = vmul.f32 %v2808, %v2808
    %v2811 = vsel %vm139, %v2809, 0.0
    %2812 = vadd.xlane.f32.xlu0 %v2811
    %v2813 = vpop.xlane.xlu0 %2812
    %v2814 = vsel %vm139, %v2810, 0.0
    %2815 = vadd.xlane.f32.xlu0 %v2814
    %v2816 = vpop.xlane.xlu0 %2815
    %v2817 = vmul.f32 %v2813, %v146
    %v2818 = vmul.f32 %v2816, %v146
    %v2819 = vadd.f32 %v2817, 1e-05
    %v2820 = vadd.f32 %v2818, 1e-05
    %v2821 = vrsqrt.pop %v2819
    %v2822 = vrsqrt.pop %v2820
    %v2823 = vmul.f32 %v2807, %v2821
    %v2824 = vmul.f32 %v2808, %v2822
    %v2825 = vlaneseq
    %v2826 = vshrl.u32 %v2825, 7
    %v2827 = vsub.s32 0, %v2826
    %v2828 = vrot.slane %v2797, %v2827
    %v2829 = vmul.f32 %v2823, %v2828
    %v2830 = vmul.f32 %v2824, %v2828
    %v2831 = vlaneseq
    %v2832 = vshrl.u32 %v2831, 7
    %v2833 = vsub.s32 0, %v2832
    %v2834 = vrot.slane %v2798, %v2833
    %v2835 = vadd.f32 %v2829, %v2834
    %v2836 = vadd.f32 %v2830, %v2834
    %v2837 = vpack.c.bf16 %v2836, %v2835
    %v2838 = vld [vmem:[#allocation2 + $0xe0] sm:$0xf]
    %v2839 = vld [vmem:[#allocation2 + $0xe4] sm:$0xf]
    %v2840 = vld [vmem:[#allocation2 + $0xe8] sm:$0xf]
    %v2841 = vld [vmem:[#allocation2 + $0xec] sm:$0xf]
    %v2842 = vld [vmem:[#allocation4 + $0x22] sm:$0x1]
    %v2843 = vlaneseq
    %v2844 = vshrl.u32 %v2843, 7
    %v2845 = vsub.s32 0, %v2844
    %v2846 = vrot.slane %v2842, %v2845
    %v2851 = vunpack.c.l.b16 %v2838
    %v2852 = vunpack.c.l.b16 %v2839
    %v2853 = vunpack.c.l.b16 %v2840
    %v2854 = vunpack.c.l.b16 %v2841
    %v2855 = vpack.c.b16 %v2852, %v2851
    %v2856 = vpack.c.b16 %v2854, %v2853
    %v2860 = vsel %vm139, %v2837, 0
    %2862 = vmatprep.subr.bf16.mxu0 0
    %2863 = vmatpush1.bf16.msra.mxu0 %v2855
    %2864 = vmatprep.subr.bf16.mxu0 0
    %2865 = vmatpush1.bf16.msra.mxu0 %v2856
    %2866 = vmatprep.subr.bf16.mxu0 0
    %2867 = vmatpush1.bf16.msra.mxu0 0
    %2868 = vmatprep.subr.bf16.mxu0 0
    %2869 = vmatpush1.bf16.msra.mxu0 0
    %2870 = vmatprep.subr.bf16.mxu0 0
    %2871 = vmatpush1.bf16.msra.mxu0 0
    %2872 = vmatprep.subr.bf16.mxu0 0
    %2873 = vmatpush1.bf16.msra.mxu0 0
    %2874 = vmatprep.subr.bf16.mxu0 0
    %2875 = vmatpush1.bf16.msra.mxu0 0
    %2876 = vmatprep.subr.bf16.mxu0 0
    %2877 = vmatpush1.bf16.msra.mxu0 0
    %2878 = vmatprep.subr.bf16.mxu0 0
    %2879 = vmatpush1.bf16.msra.mxu0 0
    %2880 = vmatprep.subr.bf16.mxu0 0
    %2881 = vmatpush1.bf16.msra.mxu0 0
    %2882 = vmatprep.subr.bf16.mxu0 0
    %2883 = vmatpush1.bf16.msra.mxu0 0
    %2884 = vmatprep.subr.bf16.mxu0 0
    %2885 = vmatpush1.bf16.msra.mxu0 0
    %2886 = vmatprep.subr.bf16.mxu0 0
    %2887 = vmatpush1.bf16.msra.mxu0 0
    %2888 = vmatprep.subr.bf16.mxu0 0
    %2889 = vmatpush1.bf16.msra.mxu0 0
    %2890 = vmatprep.subr.bf16.mxu0 0
    %2891 = vmatpush1.bf16.msra.mxu0 0
    %2892 = vmatprep.subr.bf16.mxu0 0
    %2893 = vmatpush1.bf16.msra.mxu0 0
    %2894 = vmatprep.mubr.bf16.mxu0 0
    %2895 = vmatmul.mubr.bf16.gmra.mrb[0].mxu0 %v2860
    %v2896 = vpop.f32.mrb[0].mxu0
    %v2897 = vadd.f32 %v2846, %v2896
    %v2898 = vpop.f32.mrb[0].mxu0
    %v2899 = vpop.f32.mrb[0].mxu0
    %v2900 = vadd.f32 %v2846, %v2899
    %v2901 = vpop.f32.mrb[0].mxu0
    %2902 = vdwg.mxu0
    %2904 = vrot.lane.b32.xlu0 %v2900, 64
    %v2905 = vpop.permute.xlu0 %2904
    %v2907 = vsel %vm92, %v2897, %v2905
    %2908 = vst [vmem:[%s3] sm:$0xff] %v2907
    // Predicated region
    $region22: #{transformer_mlm.1} parent=1 // pred_check
      _
    $region23: #{transformer_mlm.1} parent=1 // pred_check_branch
      %2910 = sbr.rel (0) target = $region25
    $region24: #{transformer_mlm.1} parent=1 // pred_region
      _
    $region25: #{transformer_mlm.1} parent=1 // pred_fallthru
      _
    // Predicated region
    $region26: #{transformer_mlm.1} parent=1 // pred_check
      _
    $region27: #{transformer_mlm.1} parent=1 // pred_check_branch
      %2912 = sbr.rel (0) target = $region29
    $region28: #{transformer_mlm.1} parent=1 // pred_region
      _
    $region29: #{transformer_mlm.1} parent=1 // pred_fallthru
      _
    %2913 = vsyncpa [#allocation3], 1
    %2914 = vsyncpa [#allocation5], 1

</llo_original>
